<compile_context>
chip_gen: v7x
topology: tpu7x:2x2x1
jax: 0.10.0
libtpu: 0.0.40
codegen_flags: <defaults>
</compile_context>

<pallas_src>
import jax
import jax.numpy as jnp
from jax.experimental import pallas as pl
from jax.experimental.pallas import tpu as pltpu

_VMEM_LIMIT_BYTES = 48 * 1024 * 1024   # headroom under v7x's 64 MiB physical VMEM
_LANE = 128

# ConvTranspose2d(k=4, s=2, p=1): output row 2m+ph only sees kernel rows _TAPS[ph] applied to a
# dense 2-row window of the 1-zero-padded activation, so each sub-pixel phase is a dense 2x2
# kernel (validated against lax.conv_general_dilated in the reference below).
_TAPS = ((3, 1), (2, 0))


def _round_up(x, m):
    return (x + m - 1) // m * m


# ----------------------------- Pallas kernels --------------------------------

def _down_kernel(xs_ref, wd_ref, a_ref):
    """LeakyReLU'd input slab -> Conv2d(k4,s2,p1) -> ReLU, one output row per grid step.

    xs_ref: (1, Ho+1, 2, Wo+1, 2*C)  resident per-sample slab (row/col-parity layout), bf16
    wd_ref: (8, 2*C, inner_p)        tap weights, VMEM-resident across the whole grid
    a_ref : (1, 1, Wo, inner_p)      output row, bf16
    """
    r = pl.program_id(1)
    wo = a_ref.shape[2]
    acc = jnp.zeros((wo, a_ref.shape[3]), jnp.float32)
    t = 0
    for rh in range(2):              # output-row group shift
        for rp in range(2):          # input row parity
            for ch in range(2):      # output-col group shift (col parity folded into K)
                v = xs_ref[0, r + rh, rp, ch:ch + wo, :]           # (Wo, 2*C)
                acc += jnp.dot(v, wd_ref[t], preferred_element_type=jnp.float32)
                t += 1
    a_ref[0, 0] = jnp.maximum(acc, 0.0).astype(a_ref.dtype)        # fused `uprelu`


def _up_kernel(ap_ref, wu_ref, y_ref, s_ref):
    """Sub-pixel ConvTranspose2d(k4,s2,p1) + fused BatchNorm partial statistics.

    ap_ref: (1, Ho+2, Wo+2, inner_p) resident haloed activation slab, bf16
    wu_ref: (16, inner_p, outer_p)   per-(phase, tap) weights, VMEM-resident
    y_ref : (1, 4, 1, Wo, outer_p)   pre-BN output row for the 4 sub-pixel phases, bf16
    s_ref : (1, 1, 2, outer_p)       per-row-tile f32 [sum, sum-of-squares]
    """
    m = pl.program_id(1)
    wo = y_ref.shape[3]
    cout = y_ref.shape[4]
    ssum = jnp.zeros((1, cout), jnp.float32)
    ssq = jnp.zeros((1, cout), jnp.float32)
    p = 0
    for ph in range(2):
        for pw in range(2):
            acc = jnp.zeros((wo, cout), jnp.float32)
            for dh in range(2):
                for dw in range(2):
                    v = ap_ref[0, m + ph + dh, pw + dw:pw + dw + wo, :]   # (Wo, inner_p)
                    acc += jnp.dot(v, wu_ref[p * 4 + dh * 2 + dw],
                                   preferred_element_type=jnp.float32)
            y_ref[0, p, 0] = acc.astype(y_ref.dtype)
            # BN statistics come from the f32 accumulator, not the bf16-stored y.
            ssum = ssum + jnp.sum(acc, axis=0, keepdims=True)
            ssq = ssq + jnp.sum(acc * acc, axis=0, keepdims=True)
            p += 1
    s_ref[0, 0, 0:1, :] = ssum
    s_ref[0, 0, 1:2, :] = ssq


# ----------------------------- pallas_call wrappers ---------------------------

def _down_call(xs, wd2, ho, wo):
    n = xs.shape[0]
    cp = wd2.shape[2]
    return pl.pallas_call(
        _down_kernel,
        out_shape=jax.ShapeDtypeStruct((n, ho, wo, cp), jnp.bfloat16),
        grid=(n, ho),
        in_specs=[pl.BlockSpec((1,) + tuple(xs.shape[1:]), lambda i, r: (i, 0, 0, 0, 0)),
                  pl.BlockSpec(tuple(wd2.shape), lambda i, r: (0, 0, 0))],
        out_specs=pl.BlockSpec((1, 1, wo, cp), lambda i, r: (i, r, 0, 0)),
        compiler_params=pltpu.CompilerParams(
            dimension_semantics=("parallel", "parallel"),
            vmem_limit_bytes=_VMEM_LIMIT_BYTES),
    )(xs, wd2)


def _up_call(ap, wu, ho, wo):
    n = ap.shape[0]
    cp = wu.shape[2]
    return pl.pallas_call(
        _up_kernel,
        out_shape=(jax.ShapeDtypeStruct((n, 4, ho, wo, cp), jnp.bfloat16),
                   jax.ShapeDtypeStruct((n, ho, 2, cp), jnp.float32)),
        grid=(n, ho),
        in_specs=[pl.BlockSpec((1,) + tuple(ap.shape[1:]), lambda i, m: (i, 0, 0, 0)),
                  pl.BlockSpec(tuple(wu.shape), lambda i, m: (0, 0, 0))],
        out_specs=(pl.BlockSpec((1, 4, 1, wo, cp), lambda i, m: (i, 0, m, 0, 0)),
                   pl.BlockSpec((1, 1, 2, cp), lambda i, m: (i, m, 0, 0))),
        compiler_params=pltpu.CompilerParams(
            dimension_semantics=("parallel", "parallel"),
            vmem_limit_bytes=_VMEM_LIMIT_BYTES),
    )(ap, wu)


# ------------------------------- JAX glue -------------------------------------

@jax.jit
def unet_innermost_forward(x_nchw, w_down, w_up_t, gamma, beta):
    """Innermost UnetSkipConnectionBlock: cat([x, BN(ConvT(ReLU(Conv(LReLU(x)))))], dim=1).

    x_nchw: (N, outer_nc, H, W)          w_down: (inner_nc, outer_nc, 4, 4)  Conv2d OIHW
    w_up_t: (inner_nc, outer_nc, 4, 4)   ConvTranspose2d (in, out, kh, kw)
    gamma/beta: (outer_nc,)              BatchNorm2d affine, training-mode batch statistics
    """
    n, c_in, h, w = x_nchw.shape
    inner_nc = w_down.shape[0]
    outer_nc = w_up_t.shape[1]
    assert h % 2 == 0 and w % 2 == 0
    ho, wo = h // 2, w // 2
    # NOTE: for >=256-channel configs, rounding to 256 keeps the v6e/v7x 256-wide MXU tiles full.
    cin_p = _round_up(inner_nc, _LANE)
    cout_p = _round_up(outer_nc, _LANE)
    # TODO(synk): for outer_nc << 128 most stored y lanes are zero padding; a narrowed y store
    # (or consuming y in-kernel) would trim that HBM traffic.

    # ---- head: ONE fused XLA layout pass: NCHW->NHWC, LeakyReLU(0.2) (the `downrelu`, riding
    # the transpose pass for free), bf16 cast, 1-px zero pad, and a FREE reshape into the
    # (row-group, row-parity, col-group, col-parity*C) layout the down kernel slices in-VMEM.
    x_nhwc = jnp.transpose(x_nchw, (0, 2, 3, 1)).astype(jnp.float32)
    x_act = jnp.where(x_nhwc >= 0, x_nhwc, 0.2 * x_nhwc).astype(jnp.bfloat16)
    xpad = jnp.pad(x_act, ((0, 0), (1, 1), (1, 1), (0, 0)))
    xs = xpad.reshape(n, ho + 1, 2, wo + 1, 2 * c_in)
    # TODO(synk): NHWC block I/O (natural inside a full UNet recursion) removes this transpose.

    # ---- down-conv tap weights: (8, 2*C, inner_p); tap t=(rh,rp,ch), K = [cp=0 | cp=1] channels
    wd_t = jnp.transpose(w_down, (2, 3, 1, 0)).astype(jnp.bfloat16)   # (kh, kw, C, inner)
    wd_taps = []
    for rh in range(2):
        for rp in range(2):
            for ch in range(2):
                wd_taps.append(jnp.concatenate(
                    [wd_t[2 * rh + rp, 2 * ch], wd_t[2 * rh + rp, 2 * ch + 1]], axis=0))
    wd2 = jnp.pad(jnp.stack(wd_taps, axis=0), ((0, 0), (0, 0), (0, cin_p - inner_nc)))

    a = _down_call(xs, wd2, ho, wo)                  # (N, Ho, Wo, cin_p) bf16, ReLU'd

    # ---- 1-px spatial halo for the transposed conv (cheapest tensor in the block).
    # TODO(synk): fold the halo into the down kernel's out_specs to skip this small XLA pad.
    ap = jnp.pad(a, ((0, 0), (1, 1), (1, 1), (0, 0)))

    # ---- up-conv tap weights: (16, inner_p, outer_p), index = (ph*2+pw)*4 + dh*2 + dw
    wu_taps = []
    for ph in range(2):
        for pw in range(2):
            for dh in range(2):
                for dw in range(2):
                    wu_taps.append(w_up_t[:, :, _TAPS[ph][dh], _TAPS[pw][dw]])
    wu = jnp.stack(wu_taps, axis=0).astype(jnp.bfloat16)
    wu = jnp.pad(wu, ((0, 0), (0, cin_p - inner_nc), (0, cout_p - outer_nc)))

    y, part = _up_call(ap, wu, ho, wo)               # bf16 pre-BN y + f32 partial stats

    # ---- BatchNorm2d finalize (training-mode batch stats, biased variance, eps=1e-5).
    # Stats are exact: every grid tile covers only real pixels and padded output channels are
    # sliced away before the mean/var math (padded lanes are exactly zero by construction).
    stats = jnp.sum(part, axis=(0, 1))               # (2, cout_p)
    cnt = float(n * 4 * ho * wo)                     # N * (2*Ho) * (2*Wo)
    mean = stats[0, :outer_nc] / cnt
    var = jnp.maximum(stats[1, :outer_nc] / cnt - mean * mean, 0.0)
    scale = gamma.astype(jnp.float32) * jax.lax.rsqrt(var + 1e-5)
    shift = beta.astype(jnp.float32) - mean * scale

    # ---- fused XLA tail: per-channel scale/shift + sub-pixel interleave + NCHW skip concat.
    # This is the single unavoidable read of y (global stats must be finalized first), at bf16.
    yb = y[..., :outer_nc].astype(jnp.float32) * scale + shift
    yb = yb.reshape(n, 2, 2, ho, wo, outer_nc)       # (N, ph, pw, Ho, Wo, outer)
    y_nchw = jnp.transpose(yb, (0, 5, 3, 1, 4, 2)).reshape(n, outer_nc, h, w)
    return jnp.concatenate([x_nchw.astype(jnp.float32), y_nchw], axis=1)


# TODO(synk): the outermost / middle UnetSkipConnectionBlock variants and the full
# UnetGenerator recursion (submodule nesting, down-path BatchNorm, Dropout, Tanh) are
# orchestration-level compositions of these same conv/BN kernels and are not implemented here.


# ------------------------------ reference (pure JAX) ---------------------------

def _reference(x, w_down, w_up_t, gamma, beta):
    """Pure-JAX reference using the same bf16 operand quantization with f32 accumulation."""
    x_act = jnp.where(x >= 0, x, 0.2 * x).astype(jnp.bfloat16)
    d = jax.lax.conv_general_dilated(
        x_act, w_down.astype(jnp.bfloat16), (2, 2), ((1, 1), (1, 1)),
        dimension_numbers=("NCHW", "OIHW", "NCHW"),
        preferred_element_type=jnp.float32)
    a = jnp.maximum(d, 0.0).astype(jnp.bfloat16)
    w_eq = jnp.transpose(w_up_t[:, :, ::-1, ::-1], (1, 0, 2, 3)).astype(jnp.bfloat16)
    u = jax.lax.conv_general_dilated(
        a, w_eq, (1, 1), ((2, 2), (2, 2)), lhs_dilation=(2, 2),
        dimension_numbers=("NCHW", "OIHW", "NCHW"),
        preferred_element_type=jnp.float32)
    mean = jnp.mean(u, axis=(0, 2, 3), keepdims=True)
    var = jnp.mean((u - mean) ** 2, axis=(0, 2, 3), keepdims=True)
    bn = (u - mean) * jax.lax.rsqrt(var + 1e-5) * gamma.reshape(1, -1, 1, 1) \
        + beta.reshape(1, -1, 1, 1)
    return jnp.concatenate([x, bn], axis=1)


if __name__ == "__main__":
    N, outer_nc, inner_nc, H, W = 2, 4, 8, 16, 16

    key = jax.random.PRNGKey(0)
    k1, k2, k3, k4, k5 = jax.random.split(key, 5)
    x = jax.random.normal(k1, (N, outer_nc, H, W), jnp.float32)
    w_down = 0.1 * jax.random.normal(k2, (inner_nc, outer_nc, 4, 4), jnp.float32)   # Conv2d
    w_up_t = 0.1 * jax.random.normal(k3, (inner_nc, outer_nc, 4, 4), jnp.float32)   # ConvTranspose2d
    gamma = 1.0 + 0.1 * jax.random.normal(k4, (outer_nc,), jnp.float32)
    beta = 0.1 * jax.random.normal(k5, (outer_nc,), jnp.float32)

    out = jax.block_until_ready(unet_innermost_forward(x, w_down, w_up_t, gamma, beta))
    ref = jax.block_until_ready(_reference(x, w_down, w_up_t, gamma, beta))

    assert out.shape == (N, 2 * outer_nc, H, W), out.shape
    max_err = float(jnp.max(jnp.abs(out - ref)))
    # bf16 GEMM operands with f32 accumulation + bf16 storage of the pre-BN activation (the BN
    # gain ~1/std amplifies that rounding), so allow a slightly wider tolerance than pure f32.
    assert max_err < 3e-2, max_err
    print("KERNEL_OK")
</pallas_src>

<mosaic_0001>
module attributes {stable_mosaic.version = 11 : i64} {
  func.func @_down_kernel(%arg0: i32, %arg1: i32, %arg2: memref<1x9x2x9x8xbf16, #tpu.memory_space<vmem>>, %arg3: memref<8x8x128xbf16, #tpu.memory_space<vmem>>, %arg4: memref<1x1x8x128xbf16, #tpu.memory_space<vmem>>) attributes {dimension_semantics = [#tpu.dimension_semantics<parallel>, #tpu.dimension_semantics<parallel>], iteration_bounds = array<i64: 2, 8>, scalar_prefetch = 0 : i64, scratch_operands = 0 : i64, tpu.core_type = #tpu.core_type<tc>, window_params = [{transform_indices = @transform_0, window_bounds = array<i64: 1, 9, 2, 9, 8>}, {pipeline_mode = #tpu.pipeline_mode<synchronous>, transform_indices = @transform_1, window_bounds = array<i64: 8, 8, 128>}, {transform_indices = @transform_2, window_bounds = array<i64: 1, 1, 8, 128>}]} {
    %cst = arith.constant 0.000000e+00 : f32
    %0 = vector.broadcast %cst : f32 to vector<8x128xf32>
    %c0_i32 = arith.constant 0 : i32
    %1 = arith.addi %arg1, %c0_i32 : i32
    %c0 = arith.constant 0 : index
    %2 = arith.index_cast %1 : i32 to index
    %c0_0 = arith.constant 0 : index
    %c0_1 = arith.constant 0 : index
    %c0_2 = arith.constant 0 : index
    %3 = vector.load %arg2[%c0, %2, %c0_0, %c0_1, %c0_2] : memref<1x9x2x9x8xbf16, #tpu.memory_space<vmem>>, vector<1x1x1x8x8xbf16>
    %4 = vector.shape_cast %3 : vector<1x1x1x8x8xbf16> to vector<8x8xbf16>
    %c0_3 = arith.constant 0 : index
    %c0_4 = arith.constant 0 : index
    %c0_5 = arith.constant 0 : index
    %5 = vector.load %arg3[%c0_3, %c0_4, %c0_5] : memref<8x8x128xbf16, #tpu.memory_space<vmem>>, vector<1x8x128xbf16>
    %6 = vector.shape_cast %5 : vector<1x8x128xbf16> to vector<8x128xbf16>
    %cst_6 = arith.constant dense<0.000000e+00> : vector<8x128xf32>
    %7 = tpu.matmul %4, %6, %cst_6 {dimension_numbers = #tpu.dot_dimension_numbers<[1], [0], [0], [1], [0, 0, 1, 1], [], []>} : vector<8x8xbf16>, vector<8x128xbf16>, vector<8x128xf32> -> vector<8x128xf32>
    %8 = arith.addf %0, %7 : vector<8x128xf32>
    %c0_i32_7 = arith.constant 0 : i32
    %9 = arith.addi %arg1, %c0_i32_7 : i32
    %c0_8 = arith.constant 0 : index
    %10 = arith.index_cast %9 : i32 to index
    %c0_9 = arith.constant 0 : index
    %c1 = arith.constant 1 : index
    %c0_10 = arith.constant 0 : index
    %11 = vector.load %arg2[%c0_8, %10, %c0_9, %c1, %c0_10] : memref<1x9x2x9x8xbf16, #tpu.memory_space<vmem>>, vector<1x1x1x8x8xbf16>
    %12 = vector.shape_cast %11 : vector<1x1x1x8x8xbf16> to vector<8x8xbf16>
    %c1_11 = arith.constant 1 : index
    %c0_12 = arith.constant 0 : index
    %c0_13 = arith.constant 0 : index
    %13 = vector.load %arg3[%c1_11, %c0_12, %c0_13] : memref<8x8x128xbf16, #tpu.memory_space<vmem>>, vector<1x8x128xbf16>
    %14 = vector.shape_cast %13 : vector<1x8x128xbf16> to vector<8x128xbf16>
    %cst_14 = arith.constant dense<0.000000e+00> : vector<8x128xf32>
    %15 = tpu.matmul %12, %14, %cst_14 {dimension_numbers = #tpu.dot_dimension_numbers<[1], [0], [0], [1], [0, 0, 1, 1], [], []>} : vector<8x8xbf16>, vector<8x128xbf16>, vector<8x128xf32> -> vector<8x128xf32>
    %16 = arith.addf %8, %15 : vector<8x128xf32>
    %c0_i32_15 = arith.constant 0 : i32
    %17 = arith.addi %arg1, %c0_i32_15 : i32
    %c0_16 = arith.constant 0 : index
    %18 = arith.index_cast %17 : i32 to index
    %c1_17 = arith.constant 1 : index
    %c0_18 = arith.constant 0 : index
    %c0_19 = arith.constant 0 : index
    %19 = vector.load %arg2[%c0_16, %18, %c1_17, %c0_18, %c0_19] : memref<1x9x2x9x8xbf16, #tpu.memory_space<vmem>>, vector<1x1x1x8x8xbf16>
    %20 = vector.shape_cast %19 : vector<1x1x1x8x8xbf16> to vector<8x8xbf16>
    %c2 = arith.constant 2 : index
    %c0_20 = arith.constant 0 : index
    %c0_21 = arith.constant 0 : index
    %21 = vector.load %arg3[%c2, %c0_20, %c0_21] : memref<8x8x128xbf16, #tpu.memory_space<vmem>>, vector<1x8x128xbf16>
    %22 = vector.shape_cast %21 : vector<1x8x128xbf16> to vector<8x128xbf16>
    %cst_22 = arith.constant dense<0.000000e+00> : vector<8x128xf32>
    %23 = tpu.matmul %20, %22, %cst_22 {dimension_numbers = #tpu.dot_dimension_numbers<[1], [0], [0], [1], [0, 0, 1, 1], [], []>} : vector<8x8xbf16>, vector<8x128xbf16>, vector<8x128xf32> -> vector<8x128xf32>
    %24 = arith.addf %16, %23 : vector<8x128xf32>
    %c0_i32_23 = arith.constant 0 : i32
    %25 = arith.addi %arg1, %c0_i32_23 : i32
    %c0_24 = arith.constant 0 : index
    %26 = arith.index_cast %25 : i32 to index
    %c1_25 = arith.constant 1 : index
    %c1_26 = arith.constant 1 : index
    %c0_27 = arith.constant 0 : index
    %27 = vector.load %arg2[%c0_24, %26, %c1_25, %c1_26, %c0_27] : memref<1x9x2x9x8xbf16, #tpu.memory_space<vmem>>, vector<1x1x1x8x8xbf16>
    %28 = vector.shape_cast %27 : vector<1x1x1x8x8xbf16> to vector<8x8xbf16>
    %c3 = arith.constant 3 : index
    %c0_28 = arith.constant 0 : index
    %c0_29 = arith.constant 0 : index
    %29 = vector.load %arg3[%c3, %c0_28, %c0_29] : memref<8x8x128xbf16, #tpu.memory_space<vmem>>, vector<1x8x128xbf16>
    %30 = vector.shape_cast %29 : vector<1x8x128xbf16> to vector<8x128xbf16>
    %cst_30 = arith.constant dense<0.000000e+00> : vector<8x128xf32>
    %31 = tpu.matmul %28, %30, %cst_30 {dimension_numbers = #tpu.dot_dimension_numbers<[1], [0], [0], [1], [0, 0, 1, 1], [], []>} : vector<8x8xbf16>, vector<8x128xbf16>, vector<8x128xf32> -> vector<8x128xf32>
    %32 = arith.addf %24, %31 : vector<8x128xf32>
    %c1_i32 = arith.constant 1 : i32
    %33 = arith.addi %arg1, %c1_i32 : i32
    %c0_31 = arith.constant 0 : index
    %34 = arith.index_cast %33 : i32 to index
    %c0_32 = arith.constant 0 : index
    %c0_33 = arith.constant 0 : index
    %c0_34 = arith.constant 0 : index
    %35 = vector.load %arg2[%c0_31, %34, %c0_32, %c0_33, %c0_34] : memref<1x9x2x9x8xbf16, #tpu.memory_space<vmem>>, vector<1x1x1x8x8xbf16>
    %36 = vector.shape_cast %35 : vector<1x1x1x8x8xbf16> to vector<8x8xbf16>
    %c4 = arith.constant 4 : index
    %c0_35 = arith.constant 0 : index
    %c0_36 = arith.constant 0 : index
    %37 = vector.load %arg3[%c4, %c0_35, %c0_36] : memref<8x8x128xbf16, #tpu.memory_space<vmem>>, vector<1x8x128xbf16>
    %38 = vector.shape_cast %37 : vector<1x8x128xbf16> to vector<8x128xbf16>
    %cst_37 = arith.constant dense<0.000000e+00> : vector<8x128xf32>
    %39 = tpu.matmul %36, %38, %cst_37 {dimension_numbers = #tpu.dot_dimension_numbers<[1], [0], [0], [1], [0, 0, 1, 1], [], []>} : vector<8x8xbf16>, vector<8x128xbf16>, vector<8x128xf32> -> vector<8x128xf32>
    %40 = arith.addf %32, %39 : vector<8x128xf32>
    %c1_i32_38 = arith.constant 1 : i32
    %41 = arith.addi %arg1, %c1_i32_38 : i32
    %c0_39 = arith.constant 0 : index
    %42 = arith.index_cast %41 : i32 to index
    %c0_40 = arith.constant 0 : index
    %c1_41 = arith.constant 1 : index
    %c0_42 = arith.constant 0 : index
    %43 = vector.load %arg2[%c0_39, %42, %c0_40, %c1_41, %c0_42] : memref<1x9x2x9x8xbf16, #tpu.memory_space<vmem>>, vector<1x1x1x8x8xbf16>
    %44 = vector.shape_cast %43 : vector<1x1x1x8x8xbf16> to vector<8x8xbf16>
    %c5 = arith.constant 5 : index
    %c0_43 = arith.constant 0 : index
    %c0_44 = arith.constant 0 : index
    %45 = vector.load %arg3[%c5, %c0_43, %c0_44] : memref<8x8x128xbf16, #tpu.memory_space<vmem>>, vector<1x8x128xbf16>
    %46 = vector.shape_cast %45 : vector<1x8x128xbf16> to vector<8x128xbf16>
    %cst_45 = arith.constant dense<0.000000e+00> : vector<8x128xf32>
    %47 = tpu.matmul %44, %46, %cst_45 {dimension_numbers = #tpu.dot_dimension_numbers<[1], [0], [0], [1], [0, 0, 1, 1], [], []>} : vector<8x8xbf16>, vector<8x128xbf16>, vector<8x128xf32> -> vector<8x128xf32>
    %48 = arith.addf %40, %47 : vector<8x128xf32>
    %c1_i32_46 = arith.constant 1 : i32
    %49 = arith.addi %arg1, %c1_i32_46 : i32
    %c0_47 = arith.constant 0 : index
    %50 = arith.index_cast %49 : i32 to index
    %c1_48 = arith.constant 1 : index
    %c0_49 = arith.constant 0 : index
    %c0_50 = arith.constant 0 : index
    %51 = vector.load %arg2[%c0_47, %50, %c1_48, %c0_49, %c0_50] : memref<1x9x2x9x8xbf16, #tpu.memory_space<vmem>>, vector<1x1x1x8x8xbf16>
    %52 = vector.shape_cast %51 : vector<1x1x1x8x8xbf16> to vector<8x8xbf16>
    %c6 = arith.constant 6 : index
    %c0_51 = arith.constant 0 : index
    %c0_52 = arith.constant 0 : index
    %53 = vector.load %arg3[%c6, %c0_51, %c0_52] : memref<8x8x128xbf16, #tpu.memory_space<vmem>>, vector<1x8x128xbf16>
    %54 = vector.shape_cast %53 : vector<1x8x128xbf16> to vector<8x128xbf16>
    %cst_53 = arith.constant dense<0.000000e+00> : vector<8x128xf32>
    %55 = tpu.matmul %52, %54, %cst_53 {dimension_numbers = #tpu.dot_dimension_numbers<[1], [0], [0], [1], [0, 0, 1, 1], [], []>} : vector<8x8xbf16>, vector<8x128xbf16>, vector<8x128xf32> -> vector<8x128xf32>
    %56 = arith.addf %48, %55 : vector<8x128xf32>
    %c1_i32_54 = arith.constant 1 : i32
    %57 = arith.addi %arg1, %c1_i32_54 : i32
    %c0_55 = arith.constant 0 : index
    %58 = arith.index_cast %57 : i32 to index
    %c1_56 = arith.constant 1 : index
    %c1_57 = arith.constant 1 : index
    %c0_58 = arith.constant 0 : index
    %59 = vector.load %arg2[%c0_55, %58, %c1_56, %c1_57, %c0_58] : memref<1x9x2x9x8xbf16, #tpu.memory_space<vmem>>, vector<1x1x1x8x8xbf16>
    %60 = vector.shape_cast %59 : vector<1x1x1x8x8xbf16> to vector<8x8xbf16>
    %c7 = arith.constant 7 : index
    %c0_59 = arith.constant 0 : index
    %c0_60 = arith.constant 0 : index
    %61 = vector.load %arg3[%c7, %c0_59, %c0_60] : memref<8x8x128xbf16, #tpu.memory_space<vmem>>, vector<1x8x128xbf16>
    %62 = vector.shape_cast %61 : vector<1x8x128xbf16> to vector<8x128xbf16>
    %cst_61 = arith.constant dense<0.000000e+00> : vector<8x128xf32>
    %63 = tpu.matmul %60, %62, %cst_61 {dimension_numbers = #tpu.dot_dimension_numbers<[1], [0], [0], [1], [0, 0, 1, 1], [], []>} : vector<8x8xbf16>, vector<8x128xbf16>, vector<8x128xf32> -> vector<8x128xf32>
    %64 = arith.addf %56, %63 : vector<8x128xf32>
    %cst_62 = arith.constant 0.000000e+00 : f32
    %65 = vector.broadcast %cst_62 : f32 to vector<8x128xf32>
    %66 = arith.maximumf %64, %65 : vector<8x128xf32>
    %67 = arith.truncf %66 : vector<8x128xf32> to vector<8x128xbf16>
    %c0_63 = arith.constant 0 : index
    %c0_64 = arith.constant 0 : index
    %c0_65 = arith.constant 0 : index
    %c0_66 = arith.constant 0 : index
    %68 = vector.load %arg4[%c0_63, %c0_64, %c0_65, %c0_66] : memref<1x1x8x128xbf16, #tpu.memory_space<vmem>>, vector<1x1x8x128xbf16>
    %69 = vector.shape_cast %68 : vector<1x1x8x128xbf16> to vector<8x128xbf16>
    %70 = vector.shape_cast %67 : vector<8x128xbf16> to vector<1x1x8x128xbf16>
    tpu.vector_store %arg4[%c0_63, %c0_64, %c0_65, %c0_66], %70 {strides = array<i32>} : memref<1x1x8x128xbf16, #tpu.memory_space<vmem>>, vector<1x1x8x128xbf16>,
    return
  }
  func.func @transform_0(%arg0: i32, %arg1: i32) -> (i32, i32, i32, i32, i32) {
    %c0_i32 = arith.constant 0 : i32
    %c0_i32_0 = arith.constant 0 : i32
    %c0_i32_1 = arith.constant 0 : i32
    %c0_i32_2 = arith.constant 0 : i32
    %c0_i32_3 = arith.constant 0 : i32
    return %arg0, %c0_i32, %c0_i32_0, %c0_i32_1, %c0_i32_2 : i32, i32, i32, i32, i32
  }
  func.func @transform_1(%arg0: i32, %arg1: i32) -> (i32, i32, i32) {
    %c0_i32 = arith.constant 0 : i32
    %c0_i32_0 = arith.constant 0 : i32
    %c0_i32_1 = arith.constant 0 : i32
    %c0_i32_2 = arith.constant 0 : i32
    return %c0_i32, %c0_i32_0, %c0_i32_1 : i32, i32, i32
  }
  func.func @transform_2(%arg0: i32, %arg1: i32) -> (i32, i32, i32, i32) {
    %c0_i32 = arith.constant 0 : i32
    %c0_i32_0 = arith.constant 0 : i32
    %c0_i32_1 = arith.constant 0 : i32
    return %arg0, %arg1, %c0_i32, %c0_i32_0 : i32, i32, i32, i32
  }
}

module attributes {stable_mosaic.version = 11 : i64} {
  func.func @_up_kernel(%arg0: i32, %arg1: i32, %arg2: memref<1x10x10x128xbf16, #tpu.memory_space<vmem>>, %arg3: memref<16x128x128xbf16, #tpu.memory_space<vmem>>, %arg4: memref<1x4x1x8x128xbf16, #tpu.memory_space<vmem>>, %arg5: memref<1x1x2x128xf32, #tpu.memory_space<vmem>>) attributes {dimension_semantics = [#tpu.dimension_semantics<parallel>, #tpu.dimension_semantics<parallel>], iteration_bounds = array<i64: 2, 8>, scalar_prefetch = 0 : i64, scratch_operands = 0 : i64, tpu.core_type = #tpu.core_type<tc>, window_params = [{transform_indices = @transform_0, window_bounds = array<i64: 1, 10, 10, 128>}, {pipeline_mode = #tpu.pipeline_mode<synchronous>, transform_indices = @transform_1, window_bounds = array<i64: 16, 128, 128>}, {transform_indices = @transform_2, window_bounds = array<i64: 1, 4, 1, 8, 128>}, {transform_indices = @transform_3, window_bounds = array<i64: 1, 1, 2, 128>}]} {
    %cst = arith.constant 0.000000e+00 : f32
    %0 = vector.broadcast %cst : f32 to vector<1x128xf32>
    %cst_0 = arith.constant 0.000000e+00 : f32
    %1 = vector.broadcast %cst_0 : f32 to vector<1x128xf32>
    %cst_1 = arith.constant 0.000000e+00 : f32
    %2 = vector.broadcast %cst_1 : f32 to vector<8x128xf32>
    %c0_i32 = arith.constant 0 : i32
    %3 = arith.addi %arg1, %c0_i32 : i32
    %c0_i32_2 = arith.constant 0 : i32
    %4 = arith.addi %3, %c0_i32_2 : i32
    %c0 = arith.constant 0 : index
    %5 = arith.index_cast %4 : i32 to index
    %c0_3 = arith.constant 0 : index
    %c0_4 = arith.constant 0 : index
    %6 = vector.load %arg2[%c0, %5, %c0_3, %c0_4] : memref<1x10x10x128xbf16, #tpu.memory_space<vmem>>, vector<1x1x8x128xbf16>
    %7 = vector.shape_cast %6 : vector<1x1x8x128xbf16> to vector<8x128xbf16>
    %c0_5 = arith.constant 0 : index
    %c0_6 = arith.constant 0 : index
    %c0_7 = arith.constant 0 : index
    %8 = vector.load %arg3[%c0_5, %c0_6, %c0_7] : memref<16x128x128xbf16, #tpu.memory_space<vmem>>, vector<1x128x128xbf16>
    %9 = vector.shape_cast %8 : vector<1x128x128xbf16> to vector<128x128xbf16>
    %cst_8 = arith.constant dense<0.000000e+00> : vector<8x128xf32>
    %10 = tpu.matmul %7, %9, %cst_8 {dimension_numbers = #tpu.dot_dimension_numbers<[1], [0], [0], [1], [0, 0, 1, 1], [], []>} : vector<8x128xbf16>, vector<128x128xbf16>, vector<8x128xf32> -> vector<8x128xf32>
    %11 = arith.addf %2, %10 : vector<8x128xf32>
    %c0_i32_9 = arith.constant 0 : i32
    %12 = arith.addi %arg1, %c0_i32_9 : i32
    %c0_i32_10 = arith.constant 0 : i32
    %13 = arith.addi %12, %c0_i32_10 : i32
    %c0_11 = arith.constant 0 : index
    %14 = arith.index_cast %13 : i32 to index
    %c1 = arith.constant 1 : index
    %c0_12 = arith.constant 0 : index
    %15 = vector.load %arg2[%c0_11, %14, %c1, %c0_12] : memref<1x10x10x128xbf16, #tpu.memory_space<vmem>>, vector<1x1x8x128xbf16>
    %16 = vector.shape_cast %15 : vector<1x1x8x128xbf16> to vector<8x128xbf16>
    %c1_13 = arith.constant 1 : index
    %c0_14 = arith.constant 0 : index
    %c0_15 = arith.constant 0 : index
    %17 = vector.load %arg3[%c1_13, %c0_14, %c0_15] : memref<16x128x128xbf16, #tpu.memory_space<vmem>>, vector<1x128x128xbf16>
    %18 = vector.shape_cast %17 : vector<1x128x128xbf16> to vector<128x128xbf16>
    %cst_16 = arith.constant dense<0.000000e+00> : vector<8x128xf32>
    %19 = tpu.matmul %16, %18, %cst_16 {dimension_numbers = #tpu.dot_dimension_numbers<[1], [0], [0], [1], [0, 0, 1, 1], [], []>} : vector<8x128xbf16>, vector<128x128xbf16>, vector<8x128xf32> -> vector<8x128xf32>
    %20 = arith.addf %11, %19 : vector<8x128xf32>
    %c0_i32_17 = arith.constant 0 : i32
    %21 = arith.addi %arg1, %c0_i32_17 : i32
    %c1_i32 = arith.constant 1 : i32
    %22 = arith.addi %21, %c1_i32 : i32
    %c0_18 = arith.constant 0 : index
    %23 = arith.index_cast %22 : i32 to index
    %c0_19 = arith.constant 0 : index
    %c0_20 = arith.constant 0 : index
    %24 = vector.load %arg2[%c0_18, %23, %c0_19, %c0_20] : memref<1x10x10x128xbf16, #tpu.memory_space<vmem>>, vector<1x1x8x128xbf16>
    %25 = vector.shape_cast %24 : vector<1x1x8x128xbf16> to vector<8x128xbf16>
    %c2 = arith.constant 2 : index
    %c0_21 = arith.constant 0 : index
    %c0_22 = arith.constant 0 : index
    %26 = vector.load %arg3[%c2, %c0_21, %c0_22] : memref<16x128x128xbf16, #tpu.memory_space<vmem>>, vector<1x128x128xbf16>
    %27 = vector.shape_cast %26 : vector<1x128x128xbf16> to vector<128x128xbf16>
    %cst_23 = arith.constant dense<0.000000e+00> : vector<8x128xf32>
    %28 = tpu.matmul %25, %27, %cst_23 {dimension_numbers = #tpu.dot_dimension_numbers<[1], [0], [0], [1], [0, 0, 1, 1], [], []>} : vector<8x128xbf16>, vector<128x128xbf16>, vector<8x128xf32> -> vector<8x128xf32>
    %29 = arith.addf %20, %28 : vector<8x128xf32>
    %c0_i32_24 = arith.constant 0 : i32
    %30 = arith.addi %arg1, %c0_i32_24 : i32
    %c1_i32_25 = arith.constant 1 : i32
    %31 = arith.addi %30, %c1_i32_25 : i32
    %c0_26 = arith.constant 0 : index
    %32 = arith.index_cast %31 : i32 to index
    %c1_27 = arith.constant 1 : index
    %c0_28 = arith.constant 0 : index
    %33 = vector.load %arg2[%c0_26, %32, %c1_27, %c0_28] : memref<1x10x10x128xbf16, #tpu.memory_space<vmem>>, vector<1x1x8x128xbf16>
    %34 = vector.shape_cast %33 : vector<1x1x8x128xbf16> to vector<8x128xbf16>
    %c3 = arith.constant 3 : index
    %c0_29 = arith.constant 0 : index
    %c0_30 = arith.constant 0 : index
    %35 = vector.load %arg3[%c3, %c0_29, %c0_30] : memref<16x128x128xbf16, #tpu.memory_space<vmem>>, vector<1x128x128xbf16>
    %36 = vector.shape_cast %35 : vector<1x128x128xbf16> to vector<128x128xbf16>
    %cst_31 = arith.constant dense<0.000000e+00> : vector<8x128xf32>
    %37 = tpu.matmul %34, %36, %cst_31 {dimension_numbers = #tpu.dot_dimension_numbers<[1], [0], [0], [1], [0, 0, 1, 1], [], []>} : vector<8x128xbf16>, vector<128x128xbf16>, vector<8x128xf32> -> vector<8x128xf32>
    %38 = arith.addf %29, %37 : vector<8x128xf32>
    %39 = arith.truncf %38 : vector<8x128xf32> to vector<8x128xbf16>
    %c0_32 = arith.constant 0 : index
    %c0_33 = arith.constant 0 : index
    %c0_34 = arith.constant 0 : index
    %c0_35 = arith.constant 0 : index
    %c0_36 = arith.constant 0 : index
    %40 = vector.load %arg4[%c0_32, %c0_33, %c0_34, %c0_35, %c0_36] : memref<1x4x1x8x128xbf16, #tpu.memory_space<vmem>>, vector<1x1x1x8x128xbf16>
    %41 = vector.shape_cast %40 : vector<1x1x1x8x128xbf16> to vector<8x128xbf16>
    %42 = vector.shape_cast %39 : vector<8x128xbf16> to vector<1x1x1x8x128xbf16>
    tpu.vector_store %arg4[%c0_32, %c0_33, %c0_34, %c0_35, %c0_36], %42 {strides = array<i32>} : memref<1x4x1x8x128xbf16, #tpu.memory_space<vmem>>, vector<1x1x1x8x128xbf16>,
    %cst_37 = arith.constant dense<0.000000e+00> : vector<128xf32>
    %43 = vector.multi_reduction <add>, %38, %cst_37 [0] : vector<8x128xf32> to vector<128xf32>
    %44 = vector.shape_cast %43 : vector<128xf32> to vector<1x128xf32>
    %45 = arith.addf %0, %44 : vector<1x128xf32>
    %46 = arith.mulf %38, %38 : vector<8x128xf32>
    %cst_38 = arith.constant dense<0.000000e+00> : vector<128xf32>
    %47 = vector.multi_reduction <add>, %46, %cst_38 [0] : vector<8x128xf32> to vector<128xf32>
    %48 = vector.shape_cast %47 : vector<128xf32> to vector<1x128xf32>
    %49 = arith.addf %1, %48 : vector<1x128xf32>
    %cst_39 = arith.constant 0.000000e+00 : f32
    %50 = vector.broadcast %cst_39 : f32 to vector<8x128xf32>
    %c0_i32_40 = arith.constant 0 : i32
    %51 = arith.addi %arg1, %c0_i32_40 : i32
    %c0_i32_41 = arith.constant 0 : i32
    %52 = arith.addi %51, %c0_i32_41 : i32
    %c0_42 = arith.constant 0 : index
    %53 = arith.index_cast %52 : i32 to index
    %c1_43 = arith.constant 1 : index
    %c0_44 = arith.constant 0 : index
    %54 = vector.load %arg2[%c0_42, %53, %c1_43, %c0_44] : memref<1x10x10x128xbf16, #tpu.memory_space<vmem>>, vector<1x1x8x128xbf16>
    %55 = vector.shape_cast %54 : vector<1x1x8x128xbf16> to vector<8x128xbf16>
    %c4 = arith.constant 4 : index
    %c0_45 = arith.constant 0 : index
    %c0_46 = arith.constant 0 : index
    %56 = vector.load %arg3[%c4, %c0_45, %c0_46] : memref<16x128x128xbf16, #tpu.memory_space<vmem>>, vector<1x128x128xbf16>
    %57 = vector.shape_cast %56 : vector<1x128x128xbf16> to vector<128x128xbf16>
    %cst_47 = arith.constant dense<0.000000e+00> : vector<8x128xf32>
    %58 = tpu.matmul %55, %57, %cst_47 {dimension_numbers = #tpu.dot_dimension_numbers<[1], [0], [0], [1], [0, 0, 1, 1], [], []>} : vector<8x128xbf16>, vector<128x128xbf16>, vector<8x128xf32> -> vector<8x128xf32>
    %59 = arith.addf %50, %58 : vector<8x128xf32>
    %c0_i32_48 = arith.constant 0 : i32
    %60 = arith.addi %arg1, %c0_i32_48 : i32
    %c0_i32_49 = arith.constant 0 : i32
    %61 = arith.addi %60, %c0_i32_49 : i32
    %c0_50 = arith.constant 0 : index
    %62 = arith.index_cast %61 : i32 to index
    %c2_51 = arith.constant 2 : index
    %c0_52 = arith.constant 0 : index
    %63 = vector.load %arg2[%c0_50, %62, %c2_51, %c0_52] : memref<1x10x10x128xbf16, #tpu.memory_space<vmem>>, vector<1x1x8x128xbf16>
    %64 = vector.shape_cast %63 : vector<1x1x8x128xbf16> to vector<8x128xbf16>
    %c5 = arith.constant 5 : index
    %c0_53 = arith.constant 0 : index
    %c0_54 = arith.constant 0 : index
    %65 = vector.load %arg3[%c5, %c0_53, %c0_54] : memref<16x128x128xbf16, #tpu.memory_space<vmem>>, vector<1x128x128xbf16>
    %66 = vector.shape_cast %65 : vector<1x128x128xbf16> to vector<128x128xbf16>
    %cst_55 = arith.constant dense<0.000000e+00> : vector<8x128xf32>
    %67 = tpu.matmul %64, %66, %cst_55 {dimension_numbers = #tpu.dot_dimension_numbers<[1], [0], [0], [1], [0, 0, 1, 1], [], []>} : vector<8x128xbf16>, vector<128x128xbf16>, vector<8x128xf32> -> vector<8x128xf32>
    %68 = arith.addf %59, %67 : vector<8x128xf32>
    %c0_i32_56 = arith.constant 0 : i32
    %69 = arith.addi %arg1, %c0_i32_56 : i32
    %c1_i32_57 = arith.constant 1 : i32
    %70 = arith.addi %69, %c1_i32_57 : i32
    %c0_58 = arith.constant 0 : index
    %71 = arith.index_cast %70 : i32 to index
    %c1_59 = arith.constant 1 : index
    %c0_60 = arith.constant 0 : index
    %72 = vector.load %arg2[%c0_58, %71, %c1_59, %c0_60] : memref<1x10x10x128xbf16, #tpu.memory_space<vmem>>, vector<1x1x8x128xbf16>
    %73 = vector.shape_cast %72 : vector<1x1x8x128xbf16> to vector<8x128xbf16>
    %c6 = arith.constant 6 : index
    %c0_61 = arith.constant 0 : index
    %c0_62 = arith.constant 0 : index
    %74 = vector.load %arg3[%c6, %c0_61, %c0_62] : memref<16x128x128xbf16, #tpu.memory_space<vmem>>, vector<1x128x128xbf16>
    %75 = vector.shape_cast %74 : vector<1x128x128xbf16> to vector<128x128xbf16>
    %cst_63 = arith.constant dense<0.000000e+00> : vector<8x128xf32>
    %76 = tpu.matmul %73, %75, %cst_63 {dimension_numbers = #tpu.dot_dimension_numbers<[1], [0], [0], [1], [0, 0, 1, 1], [], []>} : vector<8x128xbf16>, vector<128x128xbf16>, vector<8x128xf32> -> vector<8x128xf32>
    %77 = arith.addf %68, %76 : vector<8x128xf32>
    %c0_i32_64 = arith.constant 0 : i32
    %78 = arith.addi %arg1, %c0_i32_64 : i32
    %c1_i32_65 = arith.constant 1 : i32
    %79 = arith.addi %78, %c1_i32_65 : i32
    %c0_66 = arith.constant 0 : index
    %80 = arith.index_cast %79 : i32 to index
    %c2_67 = arith.constant 2 : index
    %c0_68 = arith.constant 0 : index
    %81 = vector.load %arg2[%c0_66, %80, %c2_67, %c0_68] : memref<1x10x10x128xbf16, #tpu.memory_space<vmem>>, vector<1x1x8x128xbf16>
    %82 = vector.shape_cast %81 : vector<1x1x8x128xbf16> to vector<8x128xbf16>
    %c7 = arith.constant 7 : index
    %c0_69 = arith.constant 0 : index
    %c0_70 = arith.constant 0 : index
    %83 = vector.load %arg3[%c7, %c0_69, %c0_70] : memref<16x128x128xbf16, #tpu.memory_space<vmem>>, vector<1x128x128xbf16>
    %84 = vector.shape_cast %83 : vector<1x128x128xbf16> to vector<128x128xbf16>
    %cst_71 = arith.constant dense<0.000000e+00> : vector<8x128xf32>
    %85 = tpu.matmul %82, %84, %cst_71 {dimension_numbers = #tpu.dot_dimension_numbers<[1], [0], [0], [1], [0, 0, 1, 1], [], []>} : vector<8x128xbf16>, vector<128x128xbf16>, vector<8x128xf32> -> vector<8x128xf32>
    %86 = arith.addf %77, %85 : vector<8x128xf32>
    %87 = arith.truncf %86 : vector<8x128xf32> to vector<8x128xbf16>
    %c0_72 = arith.constant 0 : index
    %c1_73 = arith.constant 1 : index
    %c0_74 = arith.constant 0 : index
    %c0_75 = arith.constant 0 : index
    %c0_76 = arith.constant 0 : index
    %88 = vector.load %arg4[%c0_72, %c1_73, %c0_74, %c0_75, %c0_76] : memref<1x4x1x8x128xbf16, #tpu.memory_space<vmem>>, vector<1x1x1x8x128xbf16>
    %89 = vector.shape_cast %88 : vector<1x1x1x8x128xbf16> to vector<8x128xbf16>
    %90 = vector.shape_cast %87 : vector<8x128xbf16> to vector<1x1x1x8x128xbf16>
    tpu.vector_store %arg4[%c0_72, %c1_73, %c0_74, %c0_75, %c0_76], %90 {strides = array<i32>} : memref<1x4x1x8x128xbf16, #tpu.memory_space<vmem>>, vector<1x1x1x8x128xbf16>,
    %cst_77 = arith.constant dense<0.000000e+00> : vector<128xf32>
    %91 = vector.multi_reduction <add>, %86, %cst_77 [0] : vector<8x128xf32> to vector<128xf32>
    %92 = vector.shape_cast %91 : vector<128xf32> to vector<1x128xf32>
    %93 = arith.addf %45, %92 : vector<1x128xf32>
    %94 = arith.mulf %86, %86 : vector<8x128xf32>
    %cst_78 = arith.constant dense<0.000000e+00> : vector<128xf32>
    %95 = vector.multi_reduction <add>, %94, %cst_78 [0] : vector<8x128xf32> to vector<128xf32>
    %96 = vector.shape_cast %95 : vector<128xf32> to vector<1x128xf32>
    %97 = arith.addf %49, %96 : vector<1x128xf32>
    %cst_79 = arith.constant 0.000000e+00 : f32
    %98 = vector.broadcast %cst_79 : f32 to vector<8x128xf32>
    %c1_i32_80 = arith.constant 1 : i32
    %99 = arith.addi %arg1, %c1_i32_80 : i32
    %c0_i32_81 = arith.constant 0 : i32
    %100 = arith.addi %99, %c0_i32_81 : i32
    %c0_82 = arith.constant 0 : index
    %101 = arith.index_cast %100 : i32 to index
    %c0_83 = arith.constant 0 : index
    %c0_84 = arith.constant 0 : index
    %102 = vector.load %arg2[%c0_82, %101, %c0_83, %c0_84] : memref<1x10x10x128xbf16, #tpu.memory_space<vmem>>, vector<1x1x8x128xbf16>
    %103 = vector.shape_cast %102 : vector<1x1x8x128xbf16> to vector<8x128xbf16>
    %c8 = arith.constant 8 : index
    %c0_85 = arith.constant 0 : index
    %c0_86 = arith.constant 0 : index
    %104 = vector.load %arg3[%c8, %c0_85, %c0_86] : memref<16x128x128xbf16, #tpu.memory_space<vmem>>, vector<1x128x128xbf16>
    %105 = vector.shape_cast %104 : vector<1x128x128xbf16> to vector<128x128xbf16>
    %cst_87 = arith.constant dense<0.000000e+00> : vector<8x128xf32>
    %106 = tpu.matmul %103, %105, %cst_87 {dimension_numbers = #tpu.dot_dimension_numbers<[1], [0], [0], [1], [0, 0, 1, 1], [], []>} : vector<8x128xbf16>, vector<128x128xbf16>, vector<8x128xf32> -> vector<8x128xf32>
    %107 = arith.addf %98, %106 : vector<8x128xf32>
    %c1_i32_88 = arith.constant 1 : i32
    %108 = arith.addi %arg1, %c1_i32_88 : i32
    %c0_i32_89 = arith.constant 0 : i32
    %109 = arith.addi %108, %c0_i32_89 : i32
    %c0_90 = arith.constant 0 : index
    %110 = arith.index_cast %109 : i32 to index
    %c1_91 = arith.constant 1 : index
    %c0_92 = arith.constant 0 : index
    %111 = vector.load %arg2[%c0_90, %110, %c1_91, %c0_92] : memref<1x10x10x128xbf16, #tpu.memory_space<vmem>>, vector<1x1x8x128xbf16>
    %112 = vector.shape_cast %111 : vector<1x1x8x128xbf16> to vector<8x128xbf16>
    %c9 = arith.constant 9 : index
    %c0_93 = arith.constant 0 : index
    %c0_94 = arith.constant 0 : index
    %113 = vector.load %arg3[%c9, %c0_93, %c0_94] : memref<16x128x128xbf16, #tpu.memory_space<vmem>>, vector<1x128x128xbf16>
    %114 = vector.shape_cast %113 : vector<1x128x128xbf16> to vector<128x128xbf16>
    %cst_95 = arith.constant dense<0.000000e+00> : vector<8x128xf32>
    %115 = tpu.matmul %112, %114, %cst_95 {dimension_numbers = #tpu.dot_dimension_numbers<[1], [0], [0], [1], [0, 0, 1, 1], [], []>} : vector<8x128xbf16>, vector<128x128xbf16>, vector<8x128xf32> -> vector<8x128xf32>
    %116 = arith.addf %107, %115 : vector<8x128xf32>
    %c1_i32_96 = arith.constant 1 : i32
    %117 = arith.addi %arg1, %c1_i32_96 : i32
    %c1_i32_97 = arith.constant 1 : i32
    %118 = arith.addi %117, %c1_i32_97 : i32
    %c0_98 = arith.constant 0 : index
    %119 = arith.index_cast %118 : i32 to index
    %c0_99 = arith.constant 0 : index
    %c0_100 = arith.constant 0 : index
    %120 = vector.load %arg2[%c0_98, %119, %c0_99, %c0_100] : memref<1x10x10x128xbf16, #tpu.memory_space<vmem>>, vector<1x1x8x128xbf16>
    %121 = vector.shape_cast %120 : vector<1x1x8x128xbf16> to vector<8x128xbf16>
    %c10 = arith.constant 10 : index
    %c0_101 = arith.constant 0 : index
    %c0_102 = arith.constant 0 : index
    %122 = vector.load %arg3[%c10, %c0_101, %c0_102] : memref<16x128x128xbf16, #tpu.memory_space<vmem>>, vector<1x128x128xbf16>
    %123 = vector.shape_cast %122 : vector<1x128x128xbf16> to vector<128x128xbf16>
    %cst_103 = arith.constant dense<0.000000e+00> : vector<8x128xf32>
    %124 = tpu.matmul %121, %123, %cst_103 {dimension_numbers = #tpu.dot_dimension_numbers<[1], [0], [0], [1], [0, 0, 1, 1], [], []>} : vector<8x128xbf16>, vector<128x128xbf16>, vector<8x128xf32> -> vector<8x128xf32>
    %125 = arith.addf %116, %124 : vector<8x128xf32>
    %c1_i32_104 = arith.constant 1 : i32
    %126 = arith.addi %arg1, %c1_i32_104 : i32
    %c1_i32_105 = arith.constant 1 : i32
    %127 = arith.addi %126, %c1_i32_105 : i32
    %c0_106 = arith.constant 0 : index
    %128 = arith.index_cast %127 : i32 to index
    %c1_107 = arith.constant 1 : index
    %c0_108 = arith.constant 0 : index
    %129 = vector.load %arg2[%c0_106, %128, %c1_107, %c0_108] : memref<1x10x10x128xbf16, #tpu.memory_space<vmem>>, vector<1x1x8x128xbf16>
    %130 = vector.shape_cast %129 : vector<1x1x8x128xbf16> to vector<8x128xbf16>
    %c11 = arith.constant 11 : index
    %c0_109 = arith.constant 0 : index
    %c0_110 = arith.constant 0 : index
    %131 = vector.load %arg3[%c11, %c0_109, %c0_110] : memref<16x128x128xbf16, #tpu.memory_space<vmem>>, vector<1x128x128xbf16>
    %132 = vector.shape_cast %131 : vector<1x128x128xbf16> to vector<128x128xbf16>
    %cst_111 = arith.constant dense<0.000000e+00> : vector<8x128xf32>
    %133 = tpu.matmul %130, %132, %cst_111 {dimension_numbers = #tpu.dot_dimension_numbers<[1], [0], [0], [1], [0, 0, 1, 1], [], []>} : vector<8x128xbf16>, vector<128x128xbf16>, vector<8x128xf32> -> vector<8x128xf32>
    %134 = arith.addf %125, %133 : vector<8x128xf32>
    %135 = arith.truncf %134 : vector<8x128xf32> to vector<8x128xbf16>
    %c0_112 = arith.constant 0 : index
    %c2_113 = arith.constant 2 : index
    %c0_114 = arith.constant 0 : index
    %c0_115 = arith.constant 0 : index
    %c0_116 = arith.constant 0 : index
    %136 = vector.load %arg4[%c0_112, %c2_113, %c0_114, %c0_115, %c0_116] : memref<1x4x1x8x128xbf16, #tpu.memory_space<vmem>>, vector<1x1x1x8x128xbf16>
    %137 = vector.shape_cast %136 : vector<1x1x1x8x128xbf16> to vector<8x128xbf16>
    %138 = vector.shape_cast %135 : vector<8x128xbf16> to vector<1x1x1x8x128xbf16>
    tpu.vector_store %arg4[%c0_112, %c2_113, %c0_114, %c0_115, %c0_116], %138 {strides = array<i32>} : memref<1x4x1x8x128xbf16, #tpu.memory_space<vmem>>, vector<1x1x1x8x128xbf16>,
    %cst_117 = arith.constant dense<0.000000e+00> : vector<128xf32>
    %139 = vector.multi_reduction <add>, %134, %cst_117 [0] : vector<8x128xf32> to vector<128xf32>
    %140 = vector.shape_cast %139 : vector<128xf32> to vector<1x128xf32>
    %141 = arith.addf %93, %140 : vector<1x128xf32>
    %142 = arith.mulf %134, %134 : vector<8x128xf32>
    %cst_118 = arith.constant dense<0.000000e+00> : vector<128xf32>
    %143 = vector.multi_reduction <add>, %142, %cst_118 [0] : vector<8x128xf32> to vector<128xf32>
    %144 = vector.shape_cast %143 : vector<128xf32> to vector<1x128xf32>
    %145 = arith.addf %97, %144 : vector<1x128xf32>
    %cst_119 = arith.constant 0.000000e+00 : f32
    %146 = vector.broadcast %cst_119 : f32 to vector<8x128xf32>
    %c1_i32_120 = arith.constant 1 : i32
    %147 = arith.addi %arg1, %c1_i32_120 : i32
    %c0_i32_121 = arith.constant 0 : i32
    %148 = arith.addi %147, %c0_i32_121 : i32
    %c0_122 = arith.constant 0 : index
    %149 = arith.index_cast %148 : i32 to index
    %c1_123 = arith.constant 1 : index
    %c0_124 = arith.constant 0 : index
    %150 = vector.load %arg2[%c0_122, %149, %c1_123, %c0_124] : memref<1x10x10x128xbf16, #tpu.memory_space<vmem>>, vector<1x1x8x128xbf16>
    %151 = vector.shape_cast %150 : vector<1x1x8x128xbf16> to vector<8x128xbf16>
    %c12 = arith.constant 12 : index
    %c0_125 = arith.constant 0 : index
    %c0_126 = arith.constant 0 : index
    %152 = vector.load %arg3[%c12, %c0_125, %c0_126] : memref<16x128x128xbf16, #tpu.memory_space<vmem>>, vector<1x128x128xbf16>
    %153 = vector.shape_cast %152 : vector<1x128x128xbf16> to vector<128x128xbf16>
    %cst_127 = arith.constant dense<0.000000e+00> : vector<8x128xf32>
    %154 = tpu.matmul %151, %153, %cst_127 {dimension_numbers = #tpu.dot_dimension_numbers<[1], [0], [0], [1], [0, 0, 1, 1], [], []>} : vector<8x128xbf16>, vector<128x128xbf16>, vector<8x128xf32> -> vector<8x128xf32>
    %155 = arith.addf %146, %154 : vector<8x128xf32>
    %c1_i32_128 = arith.constant 1 : i32
    %156 = arith.addi %arg1, %c1_i32_128 : i32
    %c0_i32_129 = arith.constant 0 : i32
    %157 = arith.addi %156, %c0_i32_129 : i32
    %c0_130 = arith.constant 0 : index
    %158 = arith.index_cast %157 : i32 to index
    %c2_131 = arith.constant 2 : index
    %c0_132 = arith.constant 0 : index
    %159 = vector.load %arg2[%c0_130, %158, %c2_131, %c0_132] : memref<1x10x10x128xbf16, #tpu.memory_space<vmem>>, vector<1x1x8x128xbf16>
    %160 = vector.shape_cast %159 : vector<1x1x8x128xbf16> to vector<8x128xbf16>
    %c13 = arith.constant 13 : index
    %c0_133 = arith.constant 0 : index
    %c0_134 = arith.constant 0 : index
    %161 = vector.load %arg3[%c13, %c0_133, %c0_134] : memref<16x128x128xbf16, #tpu.memory_space<vmem>>, vector<1x128x128xbf16>
    %162 = vector.shape_cast %161 : vector<1x128x128xbf16> to vector<128x128xbf16>
    %cst_135 = arith.constant dense<0.000000e+00> : vector<8x128xf32>
    %163 = tpu.matmul %160, %162, %cst_135 {dimension_numbers = #tpu.dot_dimension_numbers<[1], [0], [0], [1], [0, 0, 1, 1], [], []>} : vector<8x128xbf16>, vector<128x128xbf16>, vector<8x128xf32> -> vector<8x128xf32>
    %164 = arith.addf %155, %163 : vector<8x128xf32>
    %c1_i32_136 = arith.constant 1 : i32
    %165 = arith.addi %arg1, %c1_i32_136 : i32
    %c1_i32_137 = arith.constant 1 : i32
    %166 = arith.addi %165, %c1_i32_137 : i32
    %c0_138 = arith.constant 0 : index
    %167 = arith.index_cast %166 : i32 to index
    %c1_139 = arith.constant 1 : index
    %c0_140 = arith.constant 0 : index
    %168 = vector.load %arg2[%c0_138, %167, %c1_139, %c0_140] : memref<1x10x10x128xbf16, #tpu.memory_space<vmem>>, vector<1x1x8x128xbf16>
    %169 = vector.shape_cast %168 : vector<1x1x8x128xbf16> to vector<8x128xbf16>
    %c14 = arith.constant 14 : index
    %c0_141 = arith.constant 0 : index
    %c0_142 = arith.constant 0 : index
    %170 = vector.load %arg3[%c14, %c0_141, %c0_142] : memref<16x128x128xbf16, #tpu.memory_space<vmem>>, vector<1x128x128xbf16>
    %171 = vector.shape_cast %170 : vector<1x128x128xbf16> to vector<128x128xbf16>
    %cst_143 = arith.constant dense<0.000000e+00> : vector<8x128xf32>
    %172 = tpu.matmul %169, %171, %cst_143 {dimension_numbers = #tpu.dot_dimension_numbers<[1], [0], [0], [1], [0, 0, 1, 1], [], []>} : vector<8x128xbf16>, vector<128x128xbf16>, vector<8x128xf32> -> vector<8x128xf32>
    %173 = arith.addf %164, %172 : vector<8x128xf32>
    %c1_i32_144 = arith.constant 1 : i32
    %174 = arith.addi %arg1, %c1_i32_144 : i32
    %c1_i32_145 = arith.constant 1 : i32
    %175 = arith.addi %174, %c1_i32_145 : i32
    %c0_146 = arith.constant 0 : index
    %176 = arith.index_cast %175 : i32 to index
    %c2_147 = arith.constant 2 : index
    %c0_148 = arith.constant 0 : index
    %177 = vector.load %arg2[%c0_146, %176, %c2_147, %c0_148] : memref<1x10x10x128xbf16, #tpu.memory_space<vmem>>, vector<1x1x8x128xbf16>
    %178 = vector.shape_cast %177 : vector<1x1x8x128xbf16> to vector<8x128xbf16>
    %c15 = arith.constant 15 : index
    %c0_149 = arith.constant 0 : index
    %c0_150 = arith.constant 0 : index
    %179 = vector.load %arg3[%c15, %c0_149, %c0_150] : memref<16x128x128xbf16, #tpu.memory_space<vmem>>, vector<1x128x128xbf16>
    %180 = vector.shape_cast %179 : vector<1x128x128xbf16> to vector<128x128xbf16>
    %cst_151 = arith.constant dense<0.000000e+00> : vector<8x128xf32>
    %181 = tpu.matmul %178, %180, %cst_151 {dimension_numbers = #tpu.dot_dimension_numbers<[1], [0], [0], [1], [0, 0, 1, 1], [], []>} : vector<8x128xbf16>, vector<128x128xbf16>, vector<8x128xf32> -> vector<8x128xf32>
    %182 = arith.addf %173, %181 : vector<8x128xf32>
    %183 = arith.truncf %182 : vector<8x128xf32> to vector<8x128xbf16>
    %c0_152 = arith.constant 0 : index
    %c3_153 = arith.constant 3 : index
    %c0_154 = arith.constant 0 : index
    %c0_155 = arith.constant 0 : index
    %c0_156 = arith.constant 0 : index
    %184 = vector.load %arg4[%c0_152, %c3_153, %c0_154, %c0_155, %c0_156] : memref<1x4x1x8x128xbf16, #tpu.memory_space<vmem>>, vector<1x1x1x8x128xbf16>
    %185 = vector.shape_cast %184 : vector<1x1x1x8x128xbf16> to vector<8x128xbf16>
    %186 = vector.shape_cast %183 : vector<8x128xbf16> to vector<1x1x1x8x128xbf16>
    tpu.vector_store %arg4[%c0_152, %c3_153, %c0_154, %c0_155, %c0_156], %186 {strides = array<i32>} : memref<1x4x1x8x128xbf16, #tpu.memory_space<vmem>>, vector<1x1x1x8x128xbf16>,
    %cst_157 = arith.constant dense<0.000000e+00> : vector<128xf32>
    %187 = vector.multi_reduction <add>, %182, %cst_157 [0] : vector<8x128xf32> to vector<128xf32>
    %188 = vector.shape_cast %187 : vector<128xf32> to vector<1x128xf32>
    %189 = arith.addf %141, %188 : vector<1x128xf32>
    %190 = arith.mulf %182, %182 : vector<8x128xf32>
    %cst_158 = arith.constant dense<0.000000e+00> : vector<128xf32>
    %191 = vector.multi_reduction <add>, %190, %cst_158 [0] : vector<8x128xf32> to vector<128xf32>
    %192 = vector.shape_cast %191 : vector<128xf32> to vector<1x128xf32>
    %193 = arith.addf %145, %192 : vector<1x128xf32>
    %c0_159 = arith.constant 0 : index
    %c0_160 = arith.constant 0 : index
    %c0_161 = arith.constant 0 : index
    %c0_162 = arith.constant 0 : index
    %194 = vector.load %arg5[%c0_159, %c0_160, %c0_161, %c0_162] : memref<1x1x2x128xf32, #tpu.memory_space<vmem>>, vector<1x1x1x128xf32>
    %195 = vector.shape_cast %194 : vector<1x1x1x128xf32> to vector<1x128xf32>
    %196 = vector.shape_cast %189 : vector<1x128xf32> to vector<1x1x1x128xf32>
    tpu.vector_store %arg5[%c0_159, %c0_160, %c0_161, %c0_162], %196 {strides = array<i32>} : memref<1x1x2x128xf32, #tpu.memory_space<vmem>>, vector<1x1x1x128xf32>,
    %c0_163 = arith.constant 0 : index
    %c0_164 = arith.constant 0 : index
    %c1_165 = arith.constant 1 : index
    %c0_166 = arith.constant 0 : index
    %197 = vector.load %arg5[%c0_163, %c0_164, %c1_165, %c0_166] : memref<1x1x2x128xf32, #tpu.memory_space<vmem>>, vector<1x1x1x128xf32>
    %198 = vector.shape_cast %197 : vector<1x1x1x128xf32> to vector<1x128xf32>
    %199 = vector.shape_cast %193 : vector<1x128xf32> to vector<1x1x1x128xf32>
    tpu.vector_store %arg5[%c0_163, %c0_164, %c1_165, %c0_166], %199 {strides = array<i32>} : memref<1x1x2x128xf32, #tpu.memory_space<vmem>>, vector<1x1x1x128xf32>,
    return
  }
  func.func @transform_0(%arg0: i32, %arg1: i32) -> (i32, i32, i32, i32) {
    %c0_i32 = arith.constant 0 : i32
    %c0_i32_0 = arith.constant 0 : i32
    %c0_i32_1 = arith.constant 0 : i32
    %c0_i32_2 = arith.constant 0 : i32
    return %arg0, %c0_i32, %c0_i32_0, %c0_i32_1 : i32, i32, i32, i32
  }
  func.func @transform_1(%arg0: i32, %arg1: i32) -> (i32, i32, i32) {
    %c0_i32 = arith.constant 0 : i32
    %c0_i32_0 = arith.constant 0 : i32
    %c0_i32_1 = arith.constant 0 : i32
    %c0_i32_2 = arith.constant 0 : i32
    return %c0_i32, %c0_i32_0, %c0_i32_1 : i32, i32, i32
  }
  func.func @transform_2(%arg0: i32, %arg1: i32) -> (i32, i32, i32, i32, i32) {
    %c0_i32 = arith.constant 0 : i32
    %c0_i32_0 = arith.constant 0 : i32
    %c0_i32_1 = arith.constant 0 : i32
    %c0_i32_2 = arith.constant 0 : i32
    return %arg0, %c0_i32, %arg1, %c0_i32_0, %c0_i32_1 : i32, i32, i32, i32, i32
  }
  func.func @transform_3(%arg0: i32, %arg1: i32) -> (i32, i32, i32, i32) {
    %c0_i32 = arith.constant 0 : i32
    %c0_i32_0 = arith.constant 0 : i32
    %c0_i32_1 = arith.constant 0 : i32
    return %arg0, %arg1, %c0_i32, %c0_i32_0 : i32, i32, i32, i32
  }
}

</mosaic_0001>

<llo_original>
// kernel: unet_innermost_forward.2
$region0: #{unet_innermost_forward.2}
  #allocation0 [shape = 'u32[]', space=smem, size = 0x4, offset = 0x4, fixed_abs, tag = 'smem constant byte address 0x4 - core index']
  #allocation1 [shape = 'u32[144,128]{1,0:T(1,128)}', space=vmem, size = 0x12000, scoped, tag = 'internal scratch']
  %s0 = inlined_call_operand.vmem [shape: bf16[2,9,2,9,8], index: 0, kind: input, shape index: {}]
  %s1 = inlined_call_operand.vmem [shape: bf16[8,8,128], index: 1, kind: input, shape index: {}]
  %s2 = inlined_call_operand.vmem [shape: bf16[2,8,8,128], index: 2, kind: output, shape index: {}]
  %s3 = sld [smem:[#allocation0]]
  $region41: #{unet_innermost_forward.2} parent=0
    _
  %s5 = ssub.s32 1, %s3
  %s6 = scalar_select 0, %s5, %s3
  loop: start=0, step=1, limit=18
  $region2: #{unet_innermost_forward.2} parent=0 // loop_pre_header
    _
  $region3: #{unet_innermost_forward.2} parent=0 // loop_header
    %s8 = sphi 0, %s12
    %p9 = scmp.ge.s32.totalorder %s8, 18
    %s15 = sphi 0, %s27
    %s16 = sphi 0, %s23
    %s17 = sphi 0, %s15
    %s18 = sphi 0, %s16
    %s19 = sphi 0, %s17
    %s20 = sphi 0, %s18
    %s30 = sphi 0, %s32
    %s33 = sphi 0, %s30
    %s34 = sphi 0, %s33
    %s50 = sphi 0, %s34
    %s54 = sphi 0, %s54
    %s56 = sphi 0, %s54
    %s57 = sphi 0, %s56
    %s71 = sphi 0, %s57
    %s79 = sphi 0, %s81
    %s82 = sphi 0, %s79
    %s83 = sphi 0, %s82
    %s99 = sphi 0, %s83
  $region4: #{unet_innermost_forward.2} parent=0 // loop_header_branch
    %11 = sbr.rel (%p9) target = $region8
  $region5: #{unet_innermost_forward.2} parent=0 // loop_body
    %s13 = ssub.s32 %s8, 1
    %s14 = ssub.s32 %s8, 2
    %s21 = sadd.s32 1, %s16
    %p22 = scmp.ge.s32.totalorder %s21, 8
    %s23 = scalar_select %p22, 0, %s21
    %s24 = sadd.s32 1, %s15
    %s25 = scalar_select %p22, %s24, %s15
    %p26 = scmp.ge.s32.totalorder %s25, 2
    %s27 = scalar_select %p26, 0, %s25
    %s28 = ssub.s32 %s15, %s27
    %p29 = scmp.eq.s32.totalorder %s28, 0
    %s31 = sadd.s32 %s30, 1
    %s32 = scalar_select %p29, %s30, %s31
    %p35 = pneg %p29
    %p36 = scmp.eq.s32.totalorder %s8, 15
    %p37 = por %p35, %p36
    %p38 = scmp.ne.s32.totalorder %s30, %s33
    %p39 = scmp.eq.s32.totalorder %s8, 0
    %p40 = por %p38, %p39
    %p41 = scmp.ne.s32.totalorder %s30, %s33
    %p42 = scmp.eq.s32.totalorder %s13, 15
    %p43 = por %p41, %p42
    %p44 = scmp.ne.s32.totalorder %s33, %s34
    %p45 = scmp.eq.s32.totalorder %s13, 0
    %p46 = por %p44, %p45
    %p47 = scmp.ne.s32.totalorder %s33, %s34
    %p48 = scmp.eq.s32.totalorder %s14, 15
    %p49 = por %p47, %p48
    %p51 = scmp.ne.s32.totalorder %s34, %s50
    %p52 = scmp.eq.s32.totalorder %s14, 0
    %p53 = por %p51, %p52
    %s55 = sadd.s32 %s54, 1
    %p58 = scmp.eq.s32.totalorder %s8, 15
    %p59 = scmp.ne.s32.totalorder %s54, %s56
    %p60 = scmp.eq.s32.totalorder %s8, 0
    %p61 = por %p59, %p60
    %p62 = scmp.ne.s32.totalorder %s54, %s56
    %p63 = scmp.eq.s32.totalorder %s13, 15
    %p64 = por %p62, %p63
    %p65 = scmp.ne.s32.totalorder %s56, %s57
    %p66 = scmp.eq.s32.totalorder %s13, 0
    %p67 = por %p65, %p66
    %p68 = scmp.ne.s32.totalorder %s56, %s57
    %p69 = scmp.eq.s32.totalorder %s14, 15
    %p70 = por %p68, %p69
    %p72 = scmp.ne.s32.totalorder %s57, %s71
    %p73 = scmp.eq.s32.totalorder %s14, 0
    %p74 = por %p72, %p73
    %s75 = ssub.s32 %s15, %s27
    %s76 = ssub.s32 %s16, %s23
    %s77 = sor.u32 %s75, %s76
    %p78 = scmp.eq.s32.totalorder %s77, 0
    %s80 = sadd.s32 %s79, 1
    %s81 = scalar_select %p78, %s79, %s80
    %p84 = pneg %p78
    %p85 = scmp.eq.s32.totalorder %s8, 15
    %p86 = por %p84, %p85
    %p87 = scmp.ne.s32.totalorder %s79, %s82
    %p88 = scmp.eq.s32.totalorder %s8, 0
    %p89 = por %p87, %p88
    %p90 = scmp.ne.s32.totalorder %s79, %s82
    %p91 = scmp.eq.s32.totalorder %s13, 15
    %p92 = por %p90, %p91
    %p93 = scmp.ne.s32.totalorder %s82, %s83
    %p94 = scmp.eq.s32.totalorder %s13, 0
    %p95 = por %p93, %p94
    %p96 = scmp.ne.s32.totalorder %s82, %s83
    %p97 = scmp.eq.s32.totalorder %s14, 15
    %p98 = por %p96, %p97
    %p100 = scmp.ne.s32.totalorder %s83, %s99
    %p101 = scmp.eq.s32.totalorder %s14, 0
    %p102 = por %p100, %p101
    %p103 = scmp.le.s32.totalorder 1, %s8
    %p104 = scmp.lt.s32.totalorder %s8, 17
    %p105 = pnand %p103, %p104
    %p106 = pneg %p105
    // Predicated region
    $region9: #{unet_innermost_forward.2} parent=5 // pred_check
      _
    $region10: #{unet_innermost_forward.2} parent=5 // pred_check_branch
      %108 = sbr.rel (%p105) target = $region12
    $region11: #{unet_innermost_forward.2} parent=5 // pred_region
      %s109 = ssub.s32 %s8, 1
      // Predicated region
      $region13: #{unet_innermost_forward.2} parent=11 // pred_check
        %p110 = pneg %p67
      $region14: #{unet_innermost_forward.2} parent=11 // pred_check_branch
        %112 = sbr.rel (%p110) target = $region16
      $region15: #{unet_innermost_forward.2} parent=11 // pred_region
        _
      $region16: #{unet_innermost_forward.2} parent=11 // pred_fallthru
        _
    $region12: #{unet_innermost_forward.2} parent=5 // pred_fallthru
      _
    %p113 = scmp.lt.s32.totalorder %s8, 16
    // Predicated region
    $region17: #{unet_innermost_forward.2} parent=5 // pred_check
      %p114 = pneg %p113
    $region18: #{unet_innermost_forward.2} parent=5 // pred_check_branch
      %116 = sbr.rel (%p114) target = $region20
    $region19: #{unet_innermost_forward.2} parent=5 // pred_region
      // Predicated region
      $region21: #{unet_innermost_forward.2} parent=19 // pred_check
        %p117 = pneg %p40
      $region22: #{unet_innermost_forward.2} parent=19 // pred_check_branch
        %119 = sbr.rel (%p117) target = $region24
      $region23: #{unet_innermost_forward.2} parent=19 // pred_region
        %p120 = scmp.lt.s32.totalorder %s15, 1
        %s121 = scalar_select %p120, %s15, 1
        %s122 = smul.addr %s121, 36
        %s123 = smul.addr %s122, 4
        %s124 = scalar_lea.vmem %s0, %s123
      $region24: #{unet_innermost_forward.2} parent=19 // pred_fallthru
        _
    $region20: #{unet_innermost_forward.2} parent=5 // pred_fallthru
      _
    %p125 = scmp.le.s32.totalorder 1, %s8
    %p126 = scmp.lt.s32.totalorder %s8, 17
    %p127 = pnand %p125, %p126
    %p128 = pneg %p127
    // Predicated region
    $region25: #{unet_innermost_forward.2} parent=5 // pred_check
      _
    $region26: #{unet_innermost_forward.2} parent=5 // pred_check_branch
      %130 = sbr.rel (%p127) target = $region28
    $region27: #{unet_innermost_forward.2} parent=5 // pred_region
      %s131 = ssub.s32 %s8, 1
      %p132 = scmp.lt.s32.totalorder %s17, 1
      %s133 = scalar_select %p132, %s17, 1
      %s134 = smul.addr %s133, 36
      %s135 = smul.addr %s134, 4
      %s136 = scalar_lea.vmem %s0, %s135
      %p137 = pneg %p46
      %p138 = pneg %p43
      %p139 = pneg %p67
      %p140 = pneg %p64
      %p141 = pneg %p95
      %p142 = pneg %p92
      %p143 = scmp.lt.s32.totalorder %s17, 1
      %s144 = scalar_select %p143, %s17, 1
      %p145 = scmp.lt.s32.totalorder %s18, 7
      %s146 = scalar_select %p145, %s18, 7
      %s147 = smul.addr %s144, 8
      %s148 = sadd.s32 %s146, %s147
      %s149 = smul.addr %s148, 4
      %s150 = scalar_lea.vmem %s2, %s149
      %p151 = scmp.lt.s32.totalorder %s17, 1
      %s152 = scalar_select %p151, %s17, 1
      %s153 = smul.addr %s152, 36
      %s154 = smul.addr %s153, 4
      %s155 = scalar_lea.vmem %s0, %s154
      %p156 = scmp.lt.s32.totalorder %s17, 1
      %s157 = scalar_select %p156, %s17, 1
      %p158 = scmp.lt.s32.totalorder %s18, 7
      %s159 = scalar_select %p158, %s18, 7
      %s160 = smul.addr %s157, 8
      %s161 = sadd.s32 %s159, %s160
      %s162 = smul.addr %s161, 4
      %s163 = scalar_lea.vmem %s2, %s162
      %s165 = smul.u32 %s18, 4
      %s166 = smul.addr %s165, 4
      %s167 = scalar_lea.vmem %s155, %s166
      %v168 = vld [vmem:[%s167] sm:$0xf]
      %v169 = vld [vmem:[%s1] sm:$0xf]
      %v170 = vld [vmem:[%s167 + $0x4] sm:$0x1]
      %s171 = scalar_lea.vmem %s1, 4
      %v172 = vld [vmem:[%s171] sm:$0xf]
      %v175 = vunpack.c.l.b16 %v168
      %v176 = vunpack.c.l.b16 %v170
      %v177 = vpack.c.b16 %v176, %v175
      %v179 = vshrl.u32 %v177, 16
      %v181 = vshll.u32 %v177, 16
      %v183 = vrot.slane %v181, 1
      %v184 = vor.u32 %v179, %v183
      %vm185 = vcmask 64512
      %v187 = vsel %vm185, %v184, 0
      %vm189 = vcmask 1043456
      %v191 = vsel %vm189, %v172, 0
      %193 = vmatprep.subr.bf16.mxu0 0
      %194 = vmatpush1.bf16.msra.mxu0 %v191
      %195 = vmatprep.subr.bf16.mxu0 0
      %196 = vmatpush1.bf16.msra.mxu0 0
      %197 = vmatprep.subr.bf16.mxu0 0
      %198 = vmatpush1.bf16.msra.mxu0 0
      %199 = vmatprep.subr.bf16.mxu0 0
      %200 = vmatpush1.bf16.msra.mxu0 0
      %201 = vmatprep.subr.bf16.mxu0 0
      %202 = vmatpush1.bf16.msra.mxu0 0
      %203 = vmatprep.subr.bf16.mxu0 0
      %204 = vmatpush1.bf16.msra.mxu0 0
      %205 = vmatprep.subr.bf16.mxu0 0
      %206 = vmatpush1.bf16.msra.mxu0 0
      %207 = vmatprep.subr.bf16.mxu0 0
      %208 = vmatpush1.bf16.msra.mxu0 0
      %209 = vmatprep.subr.bf16.mxu0 0
      %210 = vmatpush1.bf16.msra.mxu0 0
      %211 = vmatprep.subr.bf16.mxu0 0
      %212 = vmatpush1.bf16.msra.mxu0 0
      %213 = vmatprep.subr.bf16.mxu0 0
      %214 = vmatpush1.bf16.msra.mxu0 0
      %215 = vmatprep.subr.bf16.mxu0 0
      %216 = vmatpush1.bf16.msra.mxu0 0
      %217 = vmatprep.subr.bf16.mxu0 0
      %218 = vmatpush1.bf16.msra.mxu0 0
      %219 = vmatprep.subr.bf16.mxu0 0
      %220 = vmatpush1.bf16.msra.mxu0 0
      %221 = vmatprep.subr.bf16.mxu0 0
      %222 = vmatpush1.bf16.msra.mxu0 0
      %223 = vmatprep.subr.bf16.mxu0 0
      %224 = vmatpush1.bf16.msra.mxu0 0
      %225 = vmatprep.mubr.bf16.mxu0 0
      %226 = vmatmul.mubr.bf16.gmra.mrb[0].mxu0 %v187
      %v227 = vpop.f32.mrb[0].mxu0
      %v228 = vadd.f32 0.0, %v227
      %v229 = vpop.f32.mrb[0].mxu0
      %v230 = vpop.f32.mrb[0].mxu0
      %v231 = vpop.f32.mrb[0].mxu0
      %232 = vdwg.mxu0
      %v234 = vsel %vm185, %v168, 0
      %v237 = vsel %vm189, %v169, 0
      %239 = vmatprep.subr.bf16.mxu0 0
      %240 = vmatpush1.bf16.msra.mxu0 %v237
      %241 = vmatprep.subr.bf16.mxu0 0
      %242 = vmatpush1.bf16.msra.mxu0 0
      %243 = vmatprep.subr.bf16.mxu0 0
      %244 = vmatpush1.bf16.msra.mxu0 0
      %245 = vmatprep.subr.bf16.mxu0 0
      %246 = vmatpush1.bf16.msra.mxu0 0
      %247 = vmatprep.subr.bf16.mxu0 0
      %248 = vmatpush1.bf16.msra.mxu0 0
      %249 = vmatprep.subr.bf16.mxu0 0
      %250 = vmatpush1.bf16.msra.mxu0 0
      %251 = vmatprep.subr.bf16.mxu0 0
      %252 = vmatpush1.bf16.msra.mxu0 0
      %253 = vmatprep.subr.bf16.mxu0 0
      %254 = vmatpush1.bf16.msra.mxu0 0
      %255 = vmatprep.subr.bf16.mxu0 0
      %256 = vmatpush1.bf16.msra.mxu0 0
      %257 = vmatprep.subr.bf16.mxu0 0
      %258 = vmatpush1.bf16.msra.mxu0 0
      %259 = vmatprep.subr.bf16.mxu0 0
      %260 = vmatpush1.bf16.msra.mxu0 0
      %261 = vmatprep.subr.bf16.mxu0 0
      %262 = vmatpush1.bf16.msra.mxu0 0
      %263 = vmatprep.subr.bf16.mxu0 0
      %264 = vmatpush1.bf16.msra.mxu0 0
      %265 = vmatprep.subr.bf16.mxu0 0
      %266 = vmatpush1.bf16.msra.mxu0 0
      %267 = vmatprep.subr.bf16.mxu0 0
      %268 = vmatpush1.bf16.msra.mxu0 0
      %269 = vmatprep.subr.bf16.mxu0 0
      %270 = vmatpush1.bf16.msra.mxu0 0
      %271 = vmatprep.mubr.bf16.mxu0 0
      %272 = vmatmul.mubr.bf16.gmra.mrb[0].mxu0 %v234
      %v273 = vpop.f32.mrb[0].mxu0
      %v274 = vadd.f32 %v228, %v273
      %v275 = vpop.f32.mrb[0].mxu0
      %v276 = vpop.f32.mrb[0].mxu0
      %v277 = vpop.f32.mrb[0].mxu0
      %278 = vdwg.mxu0
      %s279 = sadd.s32 2, %s165
      %s280 = smul.addr %s279, 4
      %s281 = scalar_lea.vmem %s155, %s280
      %v282 = vld [vmem:[%s281] sm:$0xf]
      %s283 = scalar_lea.vmem %s1, 8
      %v284 = vld [vmem:[%s283] sm:$0xf]
      %v286 = vsel %vm185, %v282, 0
      %v289 = vsel %vm189, %v284, 0
      %291 = vmatprep.subr.bf16.mxu0 0
      %292 = vmatpush1.bf16.msra.mxu0 %v289
      %293 = vmatprep.subr.bf16.mxu0 0
      %294 = vmatpush1.bf16.msra.mxu0 0
      %295 = vmatprep.subr.bf16.mxu0 0
      %296 = vmatpush1.bf16.msra.mxu0 0
      %297 = vmatprep.subr.bf16.mxu0 0
      %298 = vmatpush1.bf16.msra.mxu0 0
      %299 = vmatprep.subr.bf16.mxu0 0
      %300 = vmatpush1.bf16.msra.mxu0 0
      %301 = vmatprep.subr.bf16.mxu0 0
      %302 = vmatpush1.bf16.msra.mxu0 0
      %303 = vmatprep.subr.bf16.mxu0 0
      %304 = vmatpush1.bf16.msra.mxu0 0
      %305 = vmatprep.subr.bf16.mxu0 0
      %306 = vmatpush1.bf16.msra.mxu0 0
      %307 = vmatprep.subr.bf16.mxu0 0
      %308 = vmatpush1.bf16.msra.mxu0 0
      %309 = vmatprep.subr.bf16.mxu0 0
      %310 = vmatpush1.bf16.msra.mxu0 0
      %311 = vmatprep.subr.bf16.mxu0 0
      %312 = vmatpush1.bf16.msra.mxu0 0
      %313 = vmatprep.subr.bf16.mxu0 0
      %314 = vmatpush1.bf16.msra.mxu0 0
      %315 = vmatprep.subr.bf16.mxu0 0
      %316 = vmatpush1.bf16.msra.mxu0 0
      %317 = vmatprep.subr.bf16.mxu0 0
      %318 = vmatpush1.bf16.msra.mxu0 0
      %319 = vmatprep.subr.bf16.mxu0 0
      %320 = vmatpush1.bf16.msra.mxu0 0
      %321 = vmatprep.subr.bf16.mxu0 0
      %322 = vmatpush1.bf16.msra.mxu0 0
      %323 = vmatprep.mubr.bf16.mxu0 0
      %324 = vmatmul.mubr.bf16.gmra.mrb[0].mxu0 %v286
      %v325 = vpop.f32.mrb[0].mxu0
      %v326 = vadd.f32 0.0, %v325
      %v327 = vpop.f32.mrb[0].mxu0
      %v328 = vpop.f32.mrb[0].mxu0
      %v329 = vpop.f32.mrb[0].mxu0
      %330 = vdwg.mxu0
      %v331 = vadd.f32 %v274, %v326
      %v332 = vld [vmem:[%s281] sm:$0xf]
      %v333 = vld [vmem:[%s281 + $0x4] sm:$0x1]
      %s334 = scalar_lea.vmem %s1, 12
      %v335 = vld [vmem:[%s334] sm:$0xf]
      %v338 = vunpack.c.l.b16 %v332
      %v339 = vunpack.c.l.b16 %v333
      %v340 = vpack.c.b16 %v339, %v338
      %v342 = vshrl.u32 %v340, 16
      %v344 = vshll.u32 %v340, 16
      %v346 = vrot.slane %v344, 1
      %v347 = vor.u32 %v342, %v346
      %v349 = vsel %vm185, %v347, 0
      %v352 = vsel %vm189, %v335, 0
      %354 = vmatprep.subr.bf16.mxu0 0
      %355 = vmatpush1.bf16.msra.mxu0 %v352
      %356 = vmatprep.subr.bf16.mxu0 0
      %357 = vmatpush1.bf16.msra.mxu0 0
      %358 = vmatprep.subr.bf16.mxu0 0
      %359 = vmatpush1.bf16.msra.mxu0 0
      %360 = vmatprep.subr.bf16.mxu0 0
      %361 = vmatpush1.bf16.msra.mxu0 0
      %362 = vmatprep.subr.bf16.mxu0 0
      %363 = vmatpush1.bf16.msra.mxu0 0
      %364 = vmatprep.subr.bf16.mxu0 0
      %365 = vmatpush1.bf16.msra.mxu0 0
      %366 = vmatprep.subr.bf16.mxu0 0
      %367 = vmatpush1.bf16.msra.mxu0 0
      %368 = vmatprep.subr.bf16.mxu0 0
      %369 = vmatpush1.bf16.msra.mxu0 0
      %370 = vmatprep.subr.bf16.mxu0 0
      %371 = vmatpush1.bf16.msra.mxu0 0
      %372 = vmatprep.subr.bf16.mxu0 0
      %373 = vmatpush1.bf16.msra.mxu0 0
      %374 = vmatprep.subr.bf16.mxu0 0
      %375 = vmatpush1.bf16.msra.mxu0 0
      %376 = vmatprep.subr.bf16.mxu0 0
      %377 = vmatpush1.bf16.msra.mxu0 0
      %378 = vmatprep.subr.bf16.mxu0 0
      %379 = vmatpush1.bf16.msra.mxu0 0
      %380 = vmatprep.subr.bf16.mxu0 0
      %381 = vmatpush1.bf16.msra.mxu0 0
      %382 = vmatprep.subr.bf16.mxu0 0
      %383 = vmatpush1.bf16.msra.mxu0 0
      %384 = vmatprep.subr.bf16.mxu0 0
      %385 = vmatpush1.bf16.msra.mxu0 0
      %386 = vmatprep.mubr.bf16.mxu0 0
      %387 = vmatmul.mubr.bf16.gmra.mrb[0].mxu0 %v349
      %v388 = vpop.f32.mrb[0].mxu0
      %v389 = vadd.f32 0.0, %v388
      %v390 = vpop.f32.mrb[0].mxu0
      %v391 = vpop.f32.mrb[0].mxu0
      %v392 = vpop.f32.mrb[0].mxu0
      %393 = vdwg.mxu0
      %v394 = vadd.f32 %v331, %v389
      %s395 = sadd.s32 %s18, 1
      %s396 = smul.u32 %s395, 4
      %s397 = smul.addr %s396, 4
      %s398 = scalar_lea.vmem %s155, %s397
      %v399 = vld [vmem:[%s398] sm:$0xf]
      %s400 = scalar_lea.vmem %s1, 16
      %v401 = vld [vmem:[%s400] sm:$0xf]
      %v403 = vsel %vm185, %v399, 0
      %v406 = vsel %vm189, %v401, 0
      %408 = vmatprep.subr.bf16.mxu0 0
      %409 = vmatpush1.bf16.msra.mxu0 %v406
      %410 = vmatprep.subr.bf16.mxu0 0
      %411 = vmatpush1.bf16.msra.mxu0 0
      %412 = vmatprep.subr.bf16.mxu0 0
      %413 = vmatpush1.bf16.msra.mxu0 0
      %414 = vmatprep.subr.bf16.mxu0 0
      %415 = vmatpush1.bf16.msra.mxu0 0
      %416 = vmatprep.subr.bf16.mxu0 0
      %417 = vmatpush1.bf16.msra.mxu0 0
      %418 = vmatprep.subr.bf16.mxu0 0
      %419 = vmatpush1.bf16.msra.mxu0 0
      %420 = vmatprep.subr.bf16.mxu0 0
      %421 = vmatpush1.bf16.msra.mxu0 0
      %422 = vmatprep.subr.bf16.mxu0 0
      %423 = vmatpush1.bf16.msra.mxu0 0
      %424 = vmatprep.subr.bf16.mxu0 0
      %425 = vmatpush1.bf16.msra.mxu0 0
      %426 = vmatprep.subr.bf16.mxu0 0
      %427 = vmatpush1.bf16.msra.mxu0 0
      %428 = vmatprep.subr.bf16.mxu0 0
      %429 = vmatpush1.bf16.msra.mxu0 0
      %430 = vmatprep.subr.bf16.mxu0 0
      %431 = vmatpush1.bf16.msra.mxu0 0
      %432 = vmatprep.subr.bf16.mxu0 0
      %433 = vmatpush1.bf16.msra.mxu0 0
      %434 = vmatprep.subr.bf16.mxu0 0
      %435 = vmatpush1.bf16.msra.mxu0 0
      %436 = vmatprep.subr.bf16.mxu0 0
      %437 = vmatpush1.bf16.msra.mxu0 0
      %438 = vmatprep.subr.bf16.mxu0 0
      %439 = vmatpush1.bf16.msra.mxu0 0
      %440 = vmatprep.mubr.bf16.mxu0 0
      %441 = vmatmul.mubr.bf16.gmra.mrb[0].mxu0 %v403
      %v442 = vpop.f32.mrb[0].mxu0
      %v443 = vadd.f32 0.0, %v442
      %v444 = vpop.f32.mrb[0].mxu0
      %v445 = vpop.f32.mrb[0].mxu0
      %v446 = vpop.f32.mrb[0].mxu0
      %447 = vdwg.mxu0
      %v448 = vadd.f32 %v394, %v443
      %v449 = vld [vmem:[%s398] sm:$0xf]
      %v450 = vld [vmem:[%s398 + $0x4] sm:$0x1]
      %s451 = scalar_lea.vmem %s1, 20
      %v452 = vld [vmem:[%s451] sm:$0xf]
      %v455 = vunpack.c.l.b16 %v449
      %v456 = vunpack.c.l.b16 %v450
      %v457 = vpack.c.b16 %v456, %v455
      %v459 = vshrl.u32 %v457, 16
      %v461 = vshll.u32 %v457, 16
      %v463 = vrot.slane %v461, 1
      %v464 = vor.u32 %v459, %v463
      %v466 = vsel %vm185, %v464, 0
      %v469 = vsel %vm189, %v452, 0
      %471 = vmatprep.subr.bf16.mxu0 0
      %472 = vmatpush1.bf16.msra.mxu0 %v469
      %473 = vmatprep.subr.bf16.mxu0 0
      %474 = vmatpush1.bf16.msra.mxu0 0
      %475 = vmatprep.subr.bf16.mxu0 0
      %476 = vmatpush1.bf16.msra.mxu0 0
      %477 = vmatprep.subr.bf16.mxu0 0
      %478 = vmatpush1.bf16.msra.mxu0 0
      %479 = vmatprep.subr.bf16.mxu0 0
      %480 = vmatpush1.bf16.msra.mxu0 0
      %481 = vmatprep.subr.bf16.mxu0 0
      %482 = vmatpush1.bf16.msra.mxu0 0
      %483 = vmatprep.subr.bf16.mxu0 0
      %484 = vmatpush1.bf16.msra.mxu0 0
      %485 = vmatprep.subr.bf16.mxu0 0
      %486 = vmatpush1.bf16.msra.mxu0 0
      %487 = vmatprep.subr.bf16.mxu0 0
      %488 = vmatpush1.bf16.msra.mxu0 0
      %489 = vmatprep.subr.bf16.mxu0 0
      %490 = vmatpush1.bf16.msra.mxu0 0
      %491 = vmatprep.subr.bf16.mxu0 0
      %492 = vmatpush1.bf16.msra.mxu0 0
      %493 = vmatprep.subr.bf16.mxu0 0
      %494 = vmatpush1.bf16.msra.mxu0 0
      %495 = vmatprep.subr.bf16.mxu0 0
      %496 = vmatpush1.bf16.msra.mxu0 0
      %497 = vmatprep.subr.bf16.mxu0 0
      %498 = vmatpush1.bf16.msra.mxu0 0
      %499 = vmatprep.subr.bf16.mxu0 0
      %500 = vmatpush1.bf16.msra.mxu0 0
      %501 = vmatprep.subr.bf16.mxu0 0
      %502 = vmatpush1.bf16.msra.mxu0 0
      %503 = vmatprep.mubr.bf16.mxu0 0
      %504 = vmatmul.mubr.bf16.gmra.mrb[0].mxu0 %v466
      %v505 = vpop.f32.mrb[0].mxu0
      %v506 = vadd.f32 0.0, %v505
      %v507 = vpop.f32.mrb[0].mxu0
      %v508 = vpop.f32.mrb[0].mxu0
      %v509 = vpop.f32.mrb[0].mxu0
      %510 = vdwg.mxu0
      %v511 = vadd.f32 %v448, %v506
      %s512 = sadd.s32 2, %s396
      %s513 = smul.addr %s512, 4
      %s514 = scalar_lea.vmem %s155, %s513
      %v515 = vld [vmem:[%s514] sm:$0xf]
      %s516 = scalar_lea.vmem %s1, 24
      %v517 = vld [vmem:[%s516] sm:$0xf]
      %v519 = vsel %vm185, %v515, 0
      %v522 = vsel %vm189, %v517, 0
      %524 = vmatprep.subr.bf16.mxu0 0
      %525 = vmatpush1.bf16.msra.mxu0 %v522
      %526 = vmatprep.subr.bf16.mxu0 0
      %527 = vmatpush1.bf16.msra.mxu0 0
      %528 = vmatprep.subr.bf16.mxu0 0
      %529 = vmatpush1.bf16.msra.mxu0 0
      %530 = vmatprep.subr.bf16.mxu0 0
      %531 = vmatpush1.bf16.msra.mxu0 0
      %532 = vmatprep.subr.bf16.mxu0 0
      %533 = vmatpush1.bf16.msra.mxu0 0
      %534 = vmatprep.subr.bf16.mxu0 0
      %535 = vmatpush1.bf16.msra.mxu0 0
      %536 = vmatprep.subr.bf16.mxu0 0
      %537 = vmatpush1.bf16.msra.mxu0 0
      %538 = vmatprep.subr.bf16.mxu0 0
      %539 = vmatpush1.bf16.msra.mxu0 0
      %540 = vmatprep.subr.bf16.mxu0 0
      %541 = vmatpush1.bf16.msra.mxu0 0
      %542 = vmatprep.subr.bf16.mxu0 0
      %543 = vmatpush1.bf16.msra.mxu0 0
      %544 = vmatprep.subr.bf16.mxu0 0
      %545 = vmatpush1.bf16.msra.mxu0 0
      %546 = vmatprep.subr.bf16.mxu0 0
      %547 = vmatpush1.bf16.msra.mxu0 0
      %548 = vmatprep.subr.bf16.mxu0 0
      %549 = vmatpush1.bf16.msra.mxu0 0
      %550 = vmatprep.subr.bf16.mxu0 0
      %551 = vmatpush1.bf16.msra.mxu0 0
      %552 = vmatprep.subr.bf16.mxu0 0
      %553 = vmatpush1.bf16.msra.mxu0 0
      %554 = vmatprep.subr.bf16.mxu0 0
      %555 = vmatpush1.bf16.msra.mxu0 0
      %556 = vmatprep.mubr.bf16.mxu0 0
      %557 = vmatmul.mubr.bf16.gmra.mrb[0].mxu0 %v519
      %v558 = vpop.f32.mrb[0].mxu0
      %v559 = vadd.f32 0.0, %v558
      %v560 = vpop.f32.mrb[0].mxu0
      %v561 = vpop.f32.mrb[0].mxu0
      %v562 = vpop.f32.mrb[0].mxu0
      %563 = vdwg.mxu0
      %v564 = vadd.f32 %v511, %v559
      %v565 = vld [vmem:[%s514] sm:$0xf]
      %v566 = vld [vmem:[%s514 + $0x4] sm:$0x1]
      %s567 = scalar_lea.vmem %s1, 28
      %v568 = vld [vmem:[%s567] sm:$0xf]
      %v571 = vunpack.c.l.b16 %v565
      %v572 = vunpack.c.l.b16 %v566
      %v573 = vpack.c.b16 %v572, %v571
      %v575 = vshrl.u32 %v573, 16
      %v577 = vshll.u32 %v573, 16
      %v579 = vrot.slane %v577, 1
      %v580 = vor.u32 %v575, %v579
      %v582 = vsel %vm185, %v580, 0
      %v585 = vsel %vm189, %v568, 0
      %587 = vmatprep.subr.bf16.mxu0 0
      %588 = vmatpush1.bf16.msra.mxu0 %v585
      %589 = vmatprep.subr.bf16.mxu0 0
      %590 = vmatpush1.bf16.msra.mxu0 0
      %591 = vmatprep.subr.bf16.mxu0 0
      %592 = vmatpush1.bf16.msra.mxu0 0
      %593 = vmatprep.subr.bf16.mxu0 0
      %594 = vmatpush1.bf16.msra.mxu0 0
      %595 = vmatprep.subr.bf16.mxu0 0
      %596 = vmatpush1.bf16.msra.mxu0 0
      %597 = vmatprep.subr.bf16.mxu0 0
      %598 = vmatpush1.bf16.msra.mxu0 0
      %599 = vmatprep.subr.bf16.mxu0 0
      %600 = vmatpush1.bf16.msra.mxu0 0
      %601 = vmatprep.subr.bf16.mxu0 0
      %602 = vmatpush1.bf16.msra.mxu0 0
      %603 = vmatprep.subr.bf16.mxu0 0
      %604 = vmatpush1.bf16.msra.mxu0 0
      %605 = vmatprep.subr.bf16.mxu0 0
      %606 = vmatpush1.bf16.msra.mxu0 0
      %607 = vmatprep.subr.bf16.mxu0 0
      %608 = vmatpush1.bf16.msra.mxu0 0
      %609 = vmatprep.subr.bf16.mxu0 0
      %610 = vmatpush1.bf16.msra.mxu0 0
      %611 = vmatprep.subr.bf16.mxu0 0
      %612 = vmatpush1.bf16.msra.mxu0 0
      %613 = vmatprep.subr.bf16.mxu0 0
      %614 = vmatpush1.bf16.msra.mxu0 0
      %615 = vmatprep.subr.bf16.mxu0 0
      %616 = vmatpush1.bf16.msra.mxu0 0
      %617 = vmatprep.subr.bf16.mxu0 0
      %618 = vmatpush1.bf16.msra.mxu0 0
      %619 = vmatprep.mubr.bf16.mxu0 0
      %620 = vmatmul.mubr.bf16.gmra.mrb[0].mxu0 %v582
      %v621 = vpop.f32.mrb[0].mxu0
      %v622 = vadd.f32 0.0, %v621
      %v623 = vpop.f32.mrb[0].mxu0
      %v624 = vpop.f32.mrb[0].mxu0
      %v625 = vpop.f32.mrb[0].mxu0
      %626 = vdwg.mxu0
      %v627 = vadd.f32 %v564, %v622
      %v628 = vmax.f32 %v627, 0.0
      %v629 = vpack.c.bf16 %v628, %v628
      %630 = vst [vmem:[%s163] sm:$0xf] %v629
      %p631 = scmp.lt.s32.totalorder %s17, 1
      %s632 = scalar_select %p631, %s17, 1
      %p633 = scmp.lt.s32.totalorder %s18, 7
      %s634 = scalar_select %p633, %s18, 7
      %s635 = smul.addr %s632, 8
      %s636 = sadd.s32 %s634, %s635
      %s637 = smul.addr %s636, 4
      %s638 = scalar_lea.vmem %s2, %s637
      // Predicated region
      $region29: #{unet_innermost_forward.2} parent=27 // pred_check
        %p639 = pneg %p92
      $region30: #{unet_innermost_forward.2} parent=27 // pred_check_branch
        %641 = sbr.rel (%p639) target = $region32
      $region31: #{unet_innermost_forward.2} parent=27 // pred_region
        _
      $region32: #{unet_innermost_forward.2} parent=27 // pred_fallthru
        _
    $region28: #{unet_innermost_forward.2} parent=5 // pred_fallthru
      _
    %p642 = scmp.le.s32.totalorder 2, %s8
    // Predicated region
    $region33: #{unet_innermost_forward.2} parent=5 // pred_check
      %p643 = pneg %p642
    $region34: #{unet_innermost_forward.2} parent=5 // pred_check_branch
      %645 = sbr.rel (%p643) target = $region36
    $region35: #{unet_innermost_forward.2} parent=5 // pred_region
      %s646 = ssub.s32 %s8, 2
      // Predicated region
      $region37: #{unet_innermost_forward.2} parent=35 // pred_check
        %p647 = pneg %p98
      $region38: #{unet_innermost_forward.2} parent=35 // pred_check_branch
        %649 = sbr.rel (%p647) target = $region40
      $region39: #{unet_innermost_forward.2} parent=35 // pred_region
        %p650 = scmp.lt.s32.totalorder %s19, 1
        %s651 = scalar_select %p650, %s19, 1
        %p652 = scmp.lt.s32.totalorder %s20, 7
        %s653 = scalar_select %p652, %s20, 7
        %s654 = smul.addr %s651, 8
        %s655 = sadd.s32 %s653, %s654
        %s656 = smul.addr %s655, 4
        %s657 = scalar_lea.vmem %s2, %s656
      $region40: #{unet_innermost_forward.2} parent=35 // pred_fallthru
        _
    $region36: #{unet_innermost_forward.2} parent=5 // pred_fallthru
      _
  $region6: #{unet_innermost_forward.2} parent=0 // loop_footer
    %s12 = sadd.s32 1, %s8
  $region7: #{unet_innermost_forward.2} parent=0 // loop_footer_branch
    %7 = sbr.rel target = $region3
  $region8: #{unet_innermost_forward.2} parent=0 // loop_exit
    _

// kernel: unet_innermost_forward.3
$region0: #{unet_innermost_forward.3}
  #allocation0 [shape = 'u32[]', space=smem, size = 0x4, offset = 0x4, fixed_abs, tag = 'smem constant byte address 0x4 - core index']
  #allocation1 [shape = 'u32[144,128]{1,0:T(1,128)}', space=vmem, size = 0x12000, scoped, tag = 'internal scratch']
  %s0 = inlined_call_operand.vmem [shape: bf16[2,10,10,128], index: 0, kind: input, shape index: {}]
  %s1 = inlined_call_operand.vmem [shape: bf16[16,128,128], index: 1, kind: input, shape index: {}]
  %s2 = inlined_call_operand.vmem [shape: bf16[2,4,8,8,128], index: 2, kind: output, shape index: {0}]
  %s3 = inlined_call_operand.vmem [shape: f32[2,8,2,128], index: 3, kind: output, shape index: {1}]
  %4 = xla_tuple %s2, %s3
  %s5 = sld [smem:[#allocation0]]
  $region86: #{unet_innermost_forward.3} parent=0
    _
  %s7 = ssub.s32 1, %s5
  %s8 = scalar_select 0, %s7, %s5
  $region1: #{unet_innermost_forward.3} parent=0
    #allocation2 [shape = 'u8[16384]{0}', space=vmem, size = 0x4000, scoped, tag = 'output window, operand 0']
    loop: start=0, step=1, limit=18
    $region2: #{unet_innermost_forward.3} parent=1 // loop_pre_header
      _
    $region3: #{unet_innermost_forward.3} parent=1 // loop_header
      %s10 = sphi 0, %s14
      %p11 = scmp.ge.s32.totalorder %s10, 18
      %s17 = sphi 0, %s29
      %s18 = sphi 0, %s25
      %s19 = sphi 0, %s17
      %s20 = sphi 0, %s18
      %s21 = sphi 0, %s19
      %s22 = sphi 0, %s20
      %s32 = sphi 0, %s34
      %s35 = sphi 0, %s32
      %s36 = sphi 0, %s35
      %s52 = sphi 0, %s36
      %s56 = sphi 0, %s56
      %s58 = sphi 0, %s56
      %s59 = sphi 0, %s58
      %s73 = sphi 0, %s59
      %s81 = sphi 0, %s83
      %s84 = sphi 0, %s81
      %s85 = sphi 0, %s84
      %s101 = sphi 0, %s85
      %s109 = sphi 0, %s111
      %s112 = sphi 0, %s109
      %s113 = sphi 0, %s112
      %s129 = sphi 0, %s113
    $region4: #{unet_innermost_forward.3} parent=1 // loop_header_branch
      %13 = sbr.rel (%p11) target = $region8
    $region5: #{unet_innermost_forward.3} parent=1 // loop_body
      %s15 = ssub.s32 %s10, 1
      %s16 = ssub.s32 %s10, 2
      %s23 = sadd.s32 1, %s18
      %p24 = scmp.ge.s32.totalorder %s23, 8
      %s25 = scalar_select %p24, 0, %s23
      %s26 = sadd.s32 1, %s17
      %s27 = scalar_select %p24, %s26, %s17
      %p28 = scmp.ge.s32.totalorder %s27, 2
      %s29 = scalar_select %p28, 0, %s27
      %s30 = ssub.s32 %s17, %s29
      %p31 = scmp.eq.s32.totalorder %s30, 0
      %s33 = sadd.s32 %s32, 1
      %s34 = scalar_select %p31, %s32, %s33
      %p37 = pneg %p31
      %p38 = scmp.eq.s32.totalorder %s10, 15
      %p39 = por %p37, %p38
      %p40 = scmp.ne.s32.totalorder %s32, %s35
      %p41 = scmp.eq.s32.totalorder %s10, 0
      %p42 = por %p40, %p41
      %p43 = scmp.ne.s32.totalorder %s32, %s35
      %p44 = scmp.eq.s32.totalorder %s15, 15
      %p45 = por %p43, %p44
      %p46 = scmp.ne.s32.totalorder %s35, %s36
      %p47 = scmp.eq.s32.totalorder %s15, 0
      %p48 = por %p46, %p47
      %p49 = scmp.ne.s32.totalorder %s35, %s36
      %p50 = scmp.eq.s32.totalorder %s16, 15
      %p51 = por %p49, %p50
      %p53 = scmp.ne.s32.totalorder %s36, %s52
      %p54 = scmp.eq.s32.totalorder %s16, 0
      %p55 = por %p53, %p54
      %s57 = sadd.s32 %s56, 1
      %p60 = scmp.eq.s32.totalorder %s10, 15
      %p61 = scmp.ne.s32.totalorder %s56, %s58
      %p62 = scmp.eq.s32.totalorder %s10, 0
      %p63 = por %p61, %p62
      %p64 = scmp.ne.s32.totalorder %s56, %s58
      %p65 = scmp.eq.s32.totalorder %s15, 15
      %p66 = por %p64, %p65
      %p67 = scmp.ne.s32.totalorder %s58, %s59
      %p68 = scmp.eq.s32.totalorder %s15, 0
      %p69 = por %p67, %p68
      %p70 = scmp.ne.s32.totalorder %s58, %s59
      %p71 = scmp.eq.s32.totalorder %s16, 15
      %p72 = por %p70, %p71
      %p74 = scmp.ne.s32.totalorder %s59, %s73
      %p75 = scmp.eq.s32.totalorder %s16, 0
      %p76 = por %p74, %p75
      %s77 = ssub.s32 %s17, %s29
      %s78 = ssub.s32 %s18, %s25
      %s79 = sor.u32 %s77, %s78
      %p80 = scmp.eq.s32.totalorder %s79, 0
      %s82 = sadd.s32 %s81, 1
      %s83 = scalar_select %p80, %s81, %s82
      %p86 = pneg %p80
      %p87 = scmp.eq.s32.totalorder %s10, 15
      %p88 = por %p86, %p87
      %p89 = scmp.ne.s32.totalorder %s81, %s84
      %p90 = scmp.eq.s32.totalorder %s10, 0
      %p91 = por %p89, %p90
      %p92 = scmp.ne.s32.totalorder %s81, %s84
      %p93 = scmp.eq.s32.totalorder %s15, 15
      %p94 = por %p92, %p93
      %p95 = scmp.ne.s32.totalorder %s84, %s85
      %p96 = scmp.eq.s32.totalorder %s15, 0
      %p97 = por %p95, %p96
      %p98 = scmp.ne.s32.totalorder %s84, %s85
      %p99 = scmp.eq.s32.totalorder %s16, 15
      %p100 = por %p98, %p99
      %p102 = scmp.ne.s32.totalorder %s85, %s101
      %p103 = scmp.eq.s32.totalorder %s16, 0
      %p104 = por %p102, %p103
      %s105 = ssub.s32 %s17, %s29
      %s106 = ssub.s32 %s18, %s25
      %s107 = sor.u32 %s105, %s106
      %p108 = scmp.eq.s32.totalorder %s107, 0
      %s110 = sadd.s32 %s109, 1
      %s111 = scalar_select %p108, %s109, %s110
      %p114 = pneg %p108
      %p115 = scmp.eq.s32.totalorder %s10, 15
      %p116 = por %p114, %p115
      %p117 = scmp.ne.s32.totalorder %s109, %s112
      %p118 = scmp.eq.s32.totalorder %s10, 0
      %p119 = por %p117, %p118
      %p120 = scmp.ne.s32.totalorder %s109, %s112
      %p121 = scmp.eq.s32.totalorder %s15, 15
      %p122 = por %p120, %p121
      %p123 = scmp.ne.s32.totalorder %s112, %s113
      %p124 = scmp.eq.s32.totalorder %s15, 0
      %p125 = por %p123, %p124
      %p126 = scmp.ne.s32.totalorder %s112, %s113
      %p127 = scmp.eq.s32.totalorder %s16, 15
      %p128 = por %p126, %p127
      %p130 = scmp.ne.s32.totalorder %s113, %s129
      %p131 = scmp.eq.s32.totalorder %s16, 0
      %p132 = por %p130, %p131
      %p133 = scmp.le.s32.totalorder 1, %s10
      %p134 = scmp.lt.s32.totalorder %s10, 17
      %p135 = pnand %p133, %p134
      %p136 = pneg %p135
      // Predicated region
      $region9: #{unet_innermost_forward.3} parent=5 // pred_check
        _
      $region10: #{unet_innermost_forward.3} parent=5 // pred_check_branch
        %138 = sbr.rel (%p135) target = $region12
      $region11: #{unet_innermost_forward.3} parent=5 // pred_region
        %s139 = ssub.s32 %s10, 1
        // Predicated region
        $region13: #{unet_innermost_forward.3} parent=11 // pred_check
          %p140 = pneg %p69
        $region14: #{unet_innermost_forward.3} parent=11 // pred_check_branch
          %142 = sbr.rel (%p140) target = $region16
        $region15: #{unet_innermost_forward.3} parent=11 // pred_region
          _
        $region16: #{unet_innermost_forward.3} parent=11 // pred_fallthru
          _
      $region12: #{unet_innermost_forward.3} parent=5 // pred_fallthru
        _
      %p143 = scmp.lt.s32.totalorder %s10, 16
      // Predicated region
      $region17: #{unet_innermost_forward.3} parent=5 // pred_check
        %p144 = pneg %p143
      $region18: #{unet_innermost_forward.3} parent=5 // pred_check_branch
        %146 = sbr.rel (%p144) target = $region20
      $region19: #{unet_innermost_forward.3} parent=5 // pred_region
        // Predicated region
        $region21: #{unet_innermost_forward.3} parent=19 // pred_check
          %p147 = pneg %p42
        $region22: #{unet_innermost_forward.3} parent=19 // pred_check_branch
          %149 = sbr.rel (%p147) target = $region24
        $region23: #{unet_innermost_forward.3} parent=19 // pred_region
          %p150 = scmp.lt.s32.totalorder %s17, 1
          %s151 = scalar_select %p150, %s17, 1
          %s152 = smul.addr %s151, 20
          %s153 = smul.addr %s152, 4
          %s154 = scalar_lea.vmem %s0, %s153
        $region24: #{unet_innermost_forward.3} parent=19 // pred_fallthru
          _
      $region20: #{unet_innermost_forward.3} parent=5 // pred_fallthru
        _
      %p155 = scmp.le.s32.totalorder 1, %s10
      %p156 = scmp.lt.s32.totalorder %s10, 17
      %p157 = pnand %p155, %p156
      %p158 = pneg %p157
      // Predicated region
      $region25: #{unet_innermost_forward.3} parent=5 // pred_check
        _
      $region26: #{unet_innermost_forward.3} parent=5 // pred_check_branch
        %160 = sbr.rel (%p157) target = $region28
      $region27: #{unet_innermost_forward.3} parent=5 // pred_region
        %s161 = ssub.s32 %s10, 1
        %p162 = scmp.lt.s32.totalorder %s19, 1
        %s163 = scalar_select %p162, %s19, 1
        %s164 = smul.addr %s163, 20
        %s165 = smul.addr %s164, 4
        %s166 = scalar_lea.vmem %s0, %s165
        %p167 = pneg %p48
        %p168 = pneg %p45
        %p169 = pneg %p69
        %p170 = pneg %p66
        %p171 = pneg %p97
        %p172 = pneg %p94
        %s173 = sand.u32 %s84, 1
        %s174 = sand.u32 %s84, 1
        %s175 = smul.addr %s174, 16
        %s176 = scalar_lea.vmem [#allocation2], %s175
        %p177 = pneg %p125
        %p178 = pneg %p122
        %p179 = scmp.lt.s32.totalorder %s19, 1
        %s180 = scalar_select %p179, %s19, 1
        %p181 = scmp.lt.s32.totalorder %s20, 7
        %s182 = scalar_select %p181, %s20, 7
        %s183 = smul.addr %s180, 8
        %s184 = sadd.s32 %s182, %s183
        %s185 = smul.addr %s184, 2
        %s186 = scalar_lea.vmem %s3, %s185
        %p187 = scmp.lt.s32.totalorder %s19, 1
        %s188 = scalar_select %p187, %s19, 1
        %s189 = smul.addr %s188, 20
        %s190 = smul.addr %s189, 4
        %s191 = scalar_lea.vmem %s0, %s190
        %p192 = scmp.lt.s32.totalorder %s19, 1
        %s193 = scalar_select %p192, %s19, 1
        %p194 = scmp.lt.s32.totalorder %s20, 7
        %s195 = scalar_select %p194, %s20, 7
        %s196 = smul.addr %s193, 8
        %s197 = sadd.s32 %s195, %s196
        %s198 = smul.addr %s197, 2
        %s199 = scalar_lea.vmem %s3, %s198
        %s201 = smul.u32 %s20, 2
        %s202 = smul.addr %s201, 4
        %s203 = scalar_lea.vmem %s191, %s202
        %v204 = vld [vmem:[%s203] sm:$0xf]
        %v205 = vld [vmem:[%s1] sm:$0xf]
        %v206 = vld [vmem:[%s1 + $0x4] sm:$0xf]
        %v207 = vld [vmem:[%s1 + $0x8] sm:$0xf]
        %v208 = vld [vmem:[%s1 + $0xc] sm:$0xf]
        %v209 = vld [vmem:[%s1 + $0x10] sm:$0xf]
        %v210 = vld [vmem:[%s1 + $0x14] sm:$0xf]
        %v211 = vld [vmem:[%s1 + $0x18] sm:$0xf]
        %v212 = vld [vmem:[%s1 + $0x1c] sm:$0xf]
        %v213 = vld [vmem:[%s1 + $0x20] sm:$0xf]
        %v214 = vld [vmem:[%s1 + $0x24] sm:$0xf]
        %v215 = vld [vmem:[%s1 + $0x28] sm:$0xf]
        %v216 = vld [vmem:[%s1 + $0x2c] sm:$0xf]
        %v217 = vld [vmem:[%s1 + $0x30] sm:$0xf]
        %v218 = vld [vmem:[%s1 + $0x34] sm:$0xf]
        %v219 = vld [vmem:[%s1 + $0x38] sm:$0xf]
        %v220 = vld [vmem:[%s1 + $0x3c] sm:$0xf]
        %v221 = vld [vmem:[%s203 + $0x4] sm:$0x1]
        %s222 = scalar_lea.vmem %s1, 64
        %v223 = vld [vmem:[%s222] sm:$0xf]
        %v224 = vld [vmem:[%s222 + $0x4] sm:$0xf]
        %v225 = vld [vmem:[%s222 + $0x8] sm:$0xf]
        %v226 = vld [vmem:[%s222 + $0xc] sm:$0xf]
        %v227 = vld [vmem:[%s222 + $0x10] sm:$0xf]
        %v228 = vld [vmem:[%s222 + $0x14] sm:$0xf]
        %v229 = vld [vmem:[%s222 + $0x18] sm:$0xf]
        %v230 = vld [vmem:[%s222 + $0x1c] sm:$0xf]
        %v231 = vld [vmem:[%s222 + $0x20] sm:$0xf]
        %v232 = vld [vmem:[%s222 + $0x24] sm:$0xf]
        %v233 = vld [vmem:[%s222 + $0x28] sm:$0xf]
        %v234 = vld [vmem:[%s222 + $0x2c] sm:$0xf]
        %v235 = vld [vmem:[%s222 + $0x30] sm:$0xf]
        %v236 = vld [vmem:[%s222 + $0x34] sm:$0xf]
        %v237 = vld [vmem:[%s222 + $0x38] sm:$0xf]
        %v238 = vld [vmem:[%s222 + $0x3c] sm:$0xf]
        %v241 = vunpack.c.l.b16 %v204
        %v242 = vunpack.c.l.b16 %v221
        %v243 = vpack.c.b16 %v242, %v241
        %v245 = vshrl.u32 %v243, 16
        %v247 = vshll.u32 %v243, 16
        %v249 = vrot.slane %v247, 1
        %v250 = vor.u32 %v245, %v249
        %v268 = vunpack.c.l.b16 %v223
        %v269 = vunpack.c.l.b16 %v224
        %v270 = vunpack.c.l.b16 %v225
        %v271 = vunpack.c.l.b16 %v226
        %v272 = vunpack.c.l.b16 %v227
        %v273 = vunpack.c.l.b16 %v228
        %v274 = vunpack.c.l.b16 %v229
        %v275 = vunpack.c.l.b16 %v230
        %v276 = vunpack.c.l.b16 %v231
        %v277 = vunpack.c.l.b16 %v232
        %v278 = vunpack.c.l.b16 %v233
        %v279 = vunpack.c.l.b16 %v234
        %v280 = vunpack.c.l.b16 %v235
        %v281 = vunpack.c.l.b16 %v236
        %v282 = vunpack.c.l.b16 %v237
        %v283 = vunpack.c.l.b16 %v238
        %v284 = vpack.c.b16 %v269, %v268
        %v285 = vpack.c.b16 %v271, %v270
        %v286 = vpack.c.b16 %v273, %v272
        %v287 = vpack.c.b16 %v275, %v274
        %v288 = vpack.c.b16 %v277, %v276
        %v289 = vpack.c.b16 %v279, %v278
        %v290 = vpack.c.b16 %v281, %v280
        %v291 = vpack.c.b16 %v283, %v282
        %300 = vmatprep.subr.bf16.mxu0 0
        %301 = vmatpush1.bf16.msra.mxu0 %v284
        %302 = vmatprep.subr.bf16.mxu0 0
        %303 = vmatpush1.bf16.msra.mxu0 %v285
        %304 = vmatprep.subr.bf16.mxu0 0
        %305 = vmatpush1.bf16.msra.mxu0 %v286
        %306 = vmatprep.subr.bf16.mxu0 0
        %307 = vmatpush1.bf16.msra.mxu0 %v287
        %308 = vmatprep.subr.bf16.mxu0 0
        %309 = vmatpush1.bf16.msra.mxu0 %v288
        %310 = vmatprep.subr.bf16.mxu0 0
        %311 = vmatpush1.bf16.msra.mxu0 %v289
        %312 = vmatprep.subr.bf16.mxu0 0
        %313 = vmatpush1.bf16.msra.mxu0 %v290
        %314 = vmatprep.subr.bf16.mxu0 0
        %315 = vmatpush1.bf16.msra.mxu0 %v291
        %316 = vmatprep.subr.bf16.mxu0 0
        %317 = vmatpush1.bf16.msra.mxu0 0
        %318 = vmatprep.subr.bf16.mxu0 0
        %319 = vmatpush1.bf16.msra.mxu0 0
        %320 = vmatprep.subr.bf16.mxu0 0
        %321 = vmatpush1.bf16.msra.mxu0 0
        %322 = vmatprep.subr.bf16.mxu0 0
        %323 = vmatpush1.bf16.msra.mxu0 0
        %324 = vmatprep.subr.bf16.mxu0 0
        %325 = vmatpush1.bf16.msra.mxu0 0
        %326 = vmatprep.subr.bf16.mxu0 0
        %327 = vmatpush1.bf16.msra.mxu0 0
        %328 = vmatprep.subr.bf16.mxu0 0
        %329 = vmatpush1.bf16.msra.mxu0 0
        %330 = vmatprep.subr.bf16.mxu0 0
        %331 = vmatpush1.bf16.msra.mxu0 0
        %332 = vmatprep.mubr.bf16.mxu0 0
        %333 = vmatmul.mubr.bf16.gmra.mrb[0].mxu0 %v250
        %v334 = vpop.f32.mrb[0].mxu0
        %v335 = vadd.f32 0.0, %v334
        %v336 = vpop.f32.mrb[0].mxu0
        %v337 = vpop.f32.mrb[0].mxu0
        %v338 = vpop.f32.mrb[0].mxu0
        %339 = vdwg.mxu0
        %v356 = vunpack.c.l.b16 %v205
        %v357 = vunpack.c.l.b16 %v206
        %v358 = vunpack.c.l.b16 %v207
        %v359 = vunpack.c.l.b16 %v208
        %v360 = vunpack.c.l.b16 %v209
        %v361 = vunpack.c.l.b16 %v210
        %v362 = vunpack.c.l.b16 %v211
        %v363 = vunpack.c.l.b16 %v212
        %v364 = vunpack.c.l.b16 %v213
        %v365 = vunpack.c.l.b16 %v214
        %v366 = vunpack.c.l.b16 %v215
        %v367 = vunpack.c.l.b16 %v216
        %v368 = vunpack.c.l.b16 %v217
        %v369 = vunpack.c.l.b16 %v218
        %v370 = vunpack.c.l.b16 %v219
        %v371 = vunpack.c.l.b16 %v220
        %v372 = vpack.c.b16 %v357, %v356
        %v373 = vpack.c.b16 %v359, %v358
        %v374 = vpack.c.b16 %v361, %v360
        %v375 = vpack.c.b16 %v363, %v362
        %v376 = vpack.c.b16 %v365, %v364
        %v377 = vpack.c.b16 %v367, %v366
        %v378 = vpack.c.b16 %v369, %v368
        %v379 = vpack.c.b16 %v371, %v370
        %388 = vmatprep.subr.bf16.mxu0 0
        %389 = vmatpush1.bf16.msra.mxu0 %v372
        %390 = vmatprep.subr.bf16.mxu0 0
        %391 = vmatpush1.bf16.msra.mxu0 %v373
        %392 = vmatprep.subr.bf16.mxu0 0
        %393 = vmatpush1.bf16.msra.mxu0 %v374
        %394 = vmatprep.subr.bf16.mxu0 0
        %395 = vmatpush1.bf16.msra.mxu0 %v375
        %396 = vmatprep.subr.bf16.mxu0 0
        %397 = vmatpush1.bf16.msra.mxu0 %v376
        %398 = vmatprep.subr.bf16.mxu0 0
        %399 = vmatpush1.bf16.msra.mxu0 %v377
        %400 = vmatprep.subr.bf16.mxu0 0
        %401 = vmatpush1.bf16.msra.mxu0 %v378
        %402 = vmatprep.subr.bf16.mxu0 0
        %403 = vmatpush1.bf16.msra.mxu0 %v379
        %404 = vmatprep.subr.bf16.mxu0 0
        %405 = vmatpush1.bf16.msra.mxu0 0
        %406 = vmatprep.subr.bf16.mxu0 0
        %407 = vmatpush1.bf16.msra.mxu0 0
        %408 = vmatprep.subr.bf16.mxu0 0
        %409 = vmatpush1.bf16.msra.mxu0 0
        %410 = vmatprep.subr.bf16.mxu0 0
        %411 = vmatpush1.bf16.msra.mxu0 0
        %412 = vmatprep.subr.bf16.mxu0 0
        %413 = vmatpush1.bf16.msra.mxu0 0
        %414 = vmatprep.subr.bf16.mxu0 0
        %415 = vmatpush1.bf16.msra.mxu0 0
        %416 = vmatprep.subr.bf16.mxu0 0
        %417 = vmatpush1.bf16.msra.mxu0 0
        %418 = vmatprep.subr.bf16.mxu0 0
        %419 = vmatpush1.bf16.msra.mxu0 0
        %420 = vmatprep.mubr.bf16.mxu0 0
        %421 = vmatmul.mubr.bf16.gmra.mrb[0].mxu0 %v204
        %v422 = vpop.f32.mrb[0].mxu0
        %v423 = vadd.f32 %v335, %v422
        %v424 = vpop.f32.mrb[0].mxu0
        %v425 = vpop.f32.mrb[0].mxu0
        %v426 = vpop.f32.mrb[0].mxu0
        %427 = vdwg.mxu0
        %s428 = sadd.s32 %s20, 1
        %s429 = smul.u32 %s428, 2
        %s430 = smul.addr %s429, 4
        %s431 = scalar_lea.vmem %s191, %s430
        %v432 = vld [vmem:[%s431] sm:$0xf]
        %s433 = scalar_lea.vmem %s1, 128
        %v434 = vld [vmem:[%s433] sm:$0xf]
        %v435 = vld [vmem:[%s433 + $0x4] sm:$0xf]
        %v436 = vld [vmem:[%s433 + $0x8] sm:$0xf]
        %v437 = vld [vmem:[%s433 + $0xc] sm:$0xf]
        %v438 = vld [vmem:[%s433 + $0x10] sm:$0xf]
        %v439 = vld [vmem:[%s433 + $0x14] sm:$0xf]
        %v440 = vld [vmem:[%s433 + $0x18] sm:$0xf]
        %v441 = vld [vmem:[%s433 + $0x1c] sm:$0xf]
        %v442 = vld [vmem:[%s433 + $0x20] sm:$0xf]
        %v443 = vld [vmem:[%s433 + $0x24] sm:$0xf]
        %v444 = vld [vmem:[%s433 + $0x28] sm:$0xf]
        %v445 = vld [vmem:[%s433 + $0x2c] sm:$0xf]
        %v446 = vld [vmem:[%s433 + $0x30] sm:$0xf]
        %v447 = vld [vmem:[%s433 + $0x34] sm:$0xf]
        %v448 = vld [vmem:[%s433 + $0x38] sm:$0xf]
        %v449 = vld [vmem:[%s433 + $0x3c] sm:$0xf]
        %v466 = vunpack.c.l.b16 %v434
        %v467 = vunpack.c.l.b16 %v435
        %v468 = vunpack.c.l.b16 %v436
        %v469 = vunpack.c.l.b16 %v437
        %v470 = vunpack.c.l.b16 %v438
        %v471 = vunpack.c.l.b16 %v439
        %v472 = vunpack.c.l.b16 %v440
        %v473 = vunpack.c.l.b16 %v441
        %v474 = vunpack.c.l.b16 %v442
        %v475 = vunpack.c.l.b16 %v443
        %v476 = vunpack.c.l.b16 %v444
        %v477 = vunpack.c.l.b16 %v445
        %v478 = vunpack.c.l.b16 %v446
        %v479 = vunpack.c.l.b16 %v447
        %v480 = vunpack.c.l.b16 %v448
        %v481 = vunpack.c.l.b16 %v449
        %v482 = vpack.c.b16 %v467, %v466
        %v483 = vpack.c.b16 %v469, %v468
        %v484 = vpack.c.b16 %v471, %v470
        %v485 = vpack.c.b16 %v473, %v472
        %v486 = vpack.c.b16 %v475, %v474
        %v487 = vpack.c.b16 %v477, %v476
        %v488 = vpack.c.b16 %v479, %v478
        %v489 = vpack.c.b16 %v481, %v480
        %498 = vmatprep.subr.bf16.mxu0 0
        %499 = vmatpush1.bf16.msra.mxu0 %v482
        %500 = vmatprep.subr.bf16.mxu0 0
        %501 = vmatpush1.bf16.msra.mxu0 %v483
        %502 = vmatprep.subr.bf16.mxu0 0
        %503 = vmatpush1.bf16.msra.mxu0 %v484
        %504 = vmatprep.subr.bf16.mxu0 0
        %505 = vmatpush1.bf16.msra.mxu0 %v485
        %506 = vmatprep.subr.bf16.mxu0 0
        %507 = vmatpush1.bf16.msra.mxu0 %v486
        %508 = vmatprep.subr.bf16.mxu0 0
        %509 = vmatpush1.bf16.msra.mxu0 %v487
        %510 = vmatprep.subr.bf16.mxu0 0
        %511 = vmatpush1.bf16.msra.mxu0 %v488
        %512 = vmatprep.subr.bf16.mxu0 0
        %513 = vmatpush1.bf16.msra.mxu0 %v489
        %514 = vmatprep.subr.bf16.mxu0 0
        %515 = vmatpush1.bf16.msra.mxu0 0
        %516 = vmatprep.subr.bf16.mxu0 0
        %517 = vmatpush1.bf16.msra.mxu0 0
        %518 = vmatprep.subr.bf16.mxu0 0
        %519 = vmatpush1.bf16.msra.mxu0 0
        %520 = vmatprep.subr.bf16.mxu0 0
        %521 = vmatpush1.bf16.msra.mxu0 0
        %522 = vmatprep.subr.bf16.mxu0 0
        %523 = vmatpush1.bf16.msra.mxu0 0
        %524 = vmatprep.subr.bf16.mxu0 0
        %525 = vmatpush1.bf16.msra.mxu0 0
        %526 = vmatprep.subr.bf16.mxu0 0
        %527 = vmatpush1.bf16.msra.mxu0 0
        %528 = vmatprep.subr.bf16.mxu0 0
        %529 = vmatpush1.bf16.msra.mxu0 0
        %530 = vmatprep.mubr.bf16.mxu0 0
        %531 = vmatmul.mubr.bf16.gmra.mrb[0].mxu0 %v432
        %v532 = vpop.f32.mrb[0].mxu0
        %v533 = vadd.f32 0.0, %v532
        %v534 = vpop.f32.mrb[0].mxu0
        %v535 = vpop.f32.mrb[0].mxu0
        %v536 = vpop.f32.mrb[0].mxu0
        %537 = vdwg.mxu0
        %v538 = vadd.f32 %v423, %v533
        %v539 = vld [vmem:[%s431] sm:$0xf]
        %v540 = vld [vmem:[%s431 + $0x4] sm:$0x1]
        %s541 = scalar_lea.vmem %s1, 192
        %v542 = vld [vmem:[%s541] sm:$0xf]
        %v543 = vld [vmem:[%s541 + $0x4] sm:$0xf]
        %v544 = vld [vmem:[%s541 + $0x8] sm:$0xf]
        %v545 = vld [vmem:[%s541 + $0xc] sm:$0xf]
        %v546 = vld [vmem:[%s541 + $0x10] sm:$0xf]
        %v547 = vld [vmem:[%s541 + $0x14] sm:$0xf]
        %v548 = vld [vmem:[%s541 + $0x18] sm:$0xf]
        %v549 = vld [vmem:[%s541 + $0x1c] sm:$0xf]
        %v550 = vld [vmem:[%s541 + $0x20] sm:$0xf]
        %v551 = vld [vmem:[%s541 + $0x24] sm:$0xf]
        %v552 = vld [vmem:[%s541 + $0x28] sm:$0xf]
        %v553 = vld [vmem:[%s541 + $0x2c] sm:$0xf]
        %v554 = vld [vmem:[%s541 + $0x30] sm:$0xf]
        %v555 = vld [vmem:[%s541 + $0x34] sm:$0xf]
        %v556 = vld [vmem:[%s541 + $0x38] sm:$0xf]
        %v557 = vld [vmem:[%s541 + $0x3c] sm:$0xf]
        %v560 = vunpack.c.l.b16 %v539
        %v561 = vunpack.c.l.b16 %v540
        %v562 = vpack.c.b16 %v561, %v560
        %v564 = vshrl.u32 %v562, 16
        %v566 = vshll.u32 %v562, 16
        %v568 = vrot.slane %v566, 1
        %v569 = vor.u32 %v564, %v568
        %v587 = vunpack.c.l.b16 %v542
        %v588 = vunpack.c.l.b16 %v543
        %v589 = vunpack.c.l.b16 %v544
        %v590 = vunpack.c.l.b16 %v545
        %v591 = vunpack.c.l.b16 %v546
        %v592 = vunpack.c.l.b16 %v547
        %v593 = vunpack.c.l.b16 %v548
        %v594 = vunpack.c.l.b16 %v549
        %v595 = vunpack.c.l.b16 %v550
        %v596 = vunpack.c.l.b16 %v551
        %v597 = vunpack.c.l.b16 %v552
        %v598 = vunpack.c.l.b16 %v553
        %v599 = vunpack.c.l.b16 %v554
        %v600 = vunpack.c.l.b16 %v555
        %v601 = vunpack.c.l.b16 %v556
        %v602 = vunpack.c.l.b16 %v557
        %v603 = vpack.c.b16 %v588, %v587
        %v604 = vpack.c.b16 %v590, %v589
        %v605 = vpack.c.b16 %v592, %v591
        %v606 = vpack.c.b16 %v594, %v593
        %v607 = vpack.c.b16 %v596, %v595
        %v608 = vpack.c.b16 %v598, %v597
        %v609 = vpack.c.b16 %v600, %v599
        %v610 = vpack.c.b16 %v602, %v601
        %619 = vmatprep.subr.bf16.mxu0 0
        %620 = vmatpush1.bf16.msra.mxu0 %v603
        %621 = vmatprep.subr.bf16.mxu0 0
        %622 = vmatpush1.bf16.msra.mxu0 %v604
        %623 = vmatprep.subr.bf16.mxu0 0
        %624 = vmatpush1.bf16.msra.mxu0 %v605
        %625 = vmatprep.subr.bf16.mxu0 0
        %626 = vmatpush1.bf16.msra.mxu0 %v606
        %627 = vmatprep.subr.bf16.mxu0 0
        %628 = vmatpush1.bf16.msra.mxu0 %v607
        %629 = vmatprep.subr.bf16.mxu0 0
        %630 = vmatpush1.bf16.msra.mxu0 %v608
        %631 = vmatprep.subr.bf16.mxu0 0
        %632 = vmatpush1.bf16.msra.mxu0 %v609
        %633 = vmatprep.subr.bf16.mxu0 0
        %634 = vmatpush1.bf16.msra.mxu0 %v610
        %635 = vmatprep.subr.bf16.mxu0 0
        %636 = vmatpush1.bf16.msra.mxu0 0
        %637 = vmatprep.subr.bf16.mxu0 0
        %638 = vmatpush1.bf16.msra.mxu0 0
        %639 = vmatprep.subr.bf16.mxu0 0
        %640 = vmatpush1.bf16.msra.mxu0 0
        %641 = vmatprep.subr.bf16.mxu0 0
        %642 = vmatpush1.bf16.msra.mxu0 0
        %643 = vmatprep.subr.bf16.mxu0 0
        %644 = vmatpush1.bf16.msra.mxu0 0
        %645 = vmatprep.subr.bf16.mxu0 0
        %646 = vmatpush1.bf16.msra.mxu0 0
        %647 = vmatprep.subr.bf16.mxu0 0
        %648 = vmatpush1.bf16.msra.mxu0 0
        %649 = vmatprep.subr.bf16.mxu0 0
        %650 = vmatpush1.bf16.msra.mxu0 0
        %651 = vmatprep.mubr.bf16.mxu0 0
        %652 = vmatmul.mubr.bf16.gmra.mrb[0].mxu0 %v569
        %v653 = vpop.f32.mrb[0].mxu0
        %v654 = vadd.f32 0.0, %v653
        %v655 = vpop.f32.mrb[0].mxu0
        %v656 = vpop.f32.mrb[0].mxu0
        %v657 = vpop.f32.mrb[0].mxu0
        %658 = vdwg.mxu0
        %v659 = vadd.f32 %v538, %v654
        %v660 = vpack.c.bf16 %v659, %v659
        %661 = vst [vmem:[%s176] sm:$0xf] %v660
        %v662 = vrot.slane %v659, 4
        %v663 = vadd.f32 %v659, %v662
        %v664 = vrot.slane %v663, 2
        %v665 = vadd.f32 %v663, %v664
        %v666 = vrot.slane %v665, 1
        %v667 = vadd.f32 %v665, %v666
        %v668 = vadd.f32 %v667, 0.0
        %v669 = vmul.f32 %v659, %v659
        %v670 = vrot.slane %v669, 4
        %v671 = vadd.f32 %v669, %v670
        %v672 = vrot.slane %v671, 2
        %v673 = vadd.f32 %v671, %v672
        %v674 = vrot.slane %v673, 1
        %v675 = vadd.f32 %v673, %v674
        %v676 = vadd.f32 %v675, 0.0
        %v677 = vld [vmem:[%s203] sm:$0xf]
        %v678 = vld [vmem:[%s203 + $0x4] sm:$0x1]
        %s679 = scalar_lea.vmem %s1, 256
        %v680 = vld [vmem:[%s679] sm:$0xf]
        %v681 = vld [vmem:[%s679 + $0x4] sm:$0xf]
        %v682 = vld [vmem:[%s679 + $0x8] sm:$0xf]
        %v683 = vld [vmem:[%s679 + $0xc] sm:$0xf]
        %v684 = vld [vmem:[%s679 + $0x10] sm:$0xf]
        %v685 = vld [vmem:[%s679 + $0x14] sm:$0xf]
        %v686 = vld [vmem:[%s679 + $0x18] sm:$0xf]
        %v687 = vld [vmem:[%s679 + $0x1c] sm:$0xf]
        %v688 = vld [vmem:[%s679 + $0x20] sm:$0xf]
        %v689 = vld [vmem:[%s679 + $0x24] sm:$0xf]
        %v690 = vld [vmem:[%s679 + $0x28] sm:$0xf]
        %v691 = vld [vmem:[%s679 + $0x2c] sm:$0xf]
        %v692 = vld [vmem:[%s679 + $0x30] sm:$0xf]
        %v693 = vld [vmem:[%s679 + $0x34] sm:$0xf]
        %v694 = vld [vmem:[%s679 + $0x38] sm:$0xf]
        %v695 = vld [vmem:[%s679 + $0x3c] sm:$0xf]
        %v696 = vld [vmem:[%s203] sm:$0xe]
        %s697 = scalar_lea.vmem %s1, 320
        %v698 = vld [vmem:[%s697] sm:$0xf]
        %v699 = vld [vmem:[%s697 + $0x4] sm:$0xf]
        %v700 = vld [vmem:[%s697 + $0x8] sm:$0xf]
        %v701 = vld [vmem:[%s697 + $0xc] sm:$0xf]
        %v702 = vld [vmem:[%s697 + $0x10] sm:$0xf]
        %v703 = vld [vmem:[%s697 + $0x14] sm:$0xf]
        %v704 = vld [vmem:[%s697 + $0x18] sm:$0xf]
        %v705 = vld [vmem:[%s697 + $0x1c] sm:$0xf]
        %v706 = vld [vmem:[%s697 + $0x20] sm:$0xf]
        %v707 = vld [vmem:[%s697 + $0x24] sm:$0xf]
        %v708 = vld [vmem:[%s697 + $0x28] sm:$0xf]
        %v709 = vld [vmem:[%s697 + $0x2c] sm:$0xf]
        %v710 = vld [vmem:[%s697 + $0x30] sm:$0xf]
        %v711 = vld [vmem:[%s697 + $0x34] sm:$0xf]
        %v712 = vld [vmem:[%s697 + $0x38] sm:$0xf]
        %v713 = vld [vmem:[%s697 + $0x3c] sm:$0xf]
        %v716 = vunpack.c.l.b16 %v696
        %v717 = vunpack.c.l.b16 %v678
        %v718 = vpack.c.b16 %v717, %v716
        %v719 = vrot.slane %v718, 1
        %v737 = vunpack.c.l.b16 %v698
        %v738 = vunpack.c.l.b16 %v699
        %v739 = vunpack.c.l.b16 %v700
        %v740 = vunpack.c.l.b16 %v701
        %v741 = vunpack.c.l.b16 %v702
        %v742 = vunpack.c.l.b16 %v703
        %v743 = vunpack.c.l.b16 %v704
        %v744 = vunpack.c.l.b16 %v705
        %v745 = vunpack.c.l.b16 %v706
        %v746 = vunpack.c.l.b16 %v707
        %v747 = vunpack.c.l.b16 %v708
        %v748 = vunpack.c.l.b16 %v709
        %v749 = vunpack.c.l.b16 %v710
        %v750 = vunpack.c.l.b16 %v711
        %v751 = vunpack.c.l.b16 %v712
        %v752 = vunpack.c.l.b16 %v713
        %v753 = vpack.c.b16 %v738, %v737
        %v754 = vpack.c.b16 %v740, %v739
        %v755 = vpack.c.b16 %v742, %v741
        %v756 = vpack.c.b16 %v744, %v743
        %v757 = vpack.c.b16 %v746, %v745
        %v758 = vpack.c.b16 %v748, %v747
        %v759 = vpack.c.b16 %v750, %v749
        %v760 = vpack.c.b16 %v752, %v751
        %769 = vmatprep.subr.bf16.mxu0 0
        %770 = vmatpush1.bf16.msra.mxu0 %v753
        %771 = vmatprep.subr.bf16.mxu0 0
        %772 = vmatpush1.bf16.msra.mxu0 %v754
        %773 = vmatprep.subr.bf16.mxu0 0
        %774 = vmatpush1.bf16.msra.mxu0 %v755
        %775 = vmatprep.subr.bf16.mxu0 0
        %776 = vmatpush1.bf16.msra.mxu0 %v756
        %777 = vmatprep.subr.bf16.mxu0 0
        %778 = vmatpush1.bf16.msra.mxu0 %v757
        %779 = vmatprep.subr.bf16.mxu0 0
        %780 = vmatpush1.bf16.msra.mxu0 %v758
        %781 = vmatprep.subr.bf16.mxu0 0
        %782 = vmatpush1.bf16.msra.mxu0 %v759
        %783 = vmatprep.subr.bf16.mxu0 0
        %784 = vmatpush1.bf16.msra.mxu0 %v760
        %785 = vmatprep.subr.bf16.mxu0 0
        %786 = vmatpush1.bf16.msra.mxu0 0
        %787 = vmatprep.subr.bf16.mxu0 0
        %788 = vmatpush1.bf16.msra.mxu0 0
        %789 = vmatprep.subr.bf16.mxu0 0
        %790 = vmatpush1.bf16.msra.mxu0 0
        %791 = vmatprep.subr.bf16.mxu0 0
        %792 = vmatpush1.bf16.msra.mxu0 0
        %793 = vmatprep.subr.bf16.mxu0 0
        %794 = vmatpush1.bf16.msra.mxu0 0
        %795 = vmatprep.subr.bf16.mxu0 0
        %796 = vmatpush1.bf16.msra.mxu0 0
        %797 = vmatprep.subr.bf16.mxu0 0
        %798 = vmatpush1.bf16.msra.mxu0 0
        %799 = vmatprep.subr.bf16.mxu0 0
        %800 = vmatpush1.bf16.msra.mxu0 0
        %801 = vmatprep.mubr.bf16.mxu0 0
        %802 = vmatmul.mubr.bf16.gmra.mrb[0].mxu0 %v719
        %v803 = vpop.f32.mrb[0].mxu0
        %v804 = vadd.f32 0.0, %v803
        %v805 = vpop.f32.mrb[0].mxu0
        %v806 = vpop.f32.mrb[0].mxu0
        %v807 = vpop.f32.mrb[0].mxu0
        %808 = vdwg.mxu0
        %v810 = vunpack.c.l.b16 %v677
        %v811 = vpack.c.b16 %v717, %v810
        %v813 = vshrl.u32 %v811, 16
        %v815 = vshll.u32 %v811, 16
        %v817 = vrot.slane %v815, 1
        %v818 = vor.u32 %v813, %v817
        %v836 = vunpack.c.l.b16 %v680
        %v837 = vunpack.c.l.b16 %v681
        %v838 = vunpack.c.l.b16 %v682
        %v839 = vunpack.c.l.b16 %v683
        %v840 = vunpack.c.l.b16 %v684
        %v841 = vunpack.c.l.b16 %v685
        %v842 = vunpack.c.l.b16 %v686
        %v843 = vunpack.c.l.b16 %v687
        %v844 = vunpack.c.l.b16 %v688
        %v845 = vunpack.c.l.b16 %v689
        %v846 = vunpack.c.l.b16 %v690
        %v847 = vunpack.c.l.b16 %v691
        %v848 = vunpack.c.l.b16 %v692
        %v849 = vunpack.c.l.b16 %v693
        %v850 = vunpack.c.l.b16 %v694
        %v851 = vunpack.c.l.b16 %v695
        %v852 = vpack.c.b16 %v837, %v836
        %v853 = vpack.c.b16 %v839, %v838
        %v854 = vpack.c.b16 %v841, %v840
        %v855 = vpack.c.b16 %v843, %v842
        %v856 = vpack.c.b16 %v845, %v844
        %v857 = vpack.c.b16 %v847, %v846
        %v858 = vpack.c.b16 %v849, %v848
        %v859 = vpack.c.b16 %v851, %v850
        %868 = vmatprep.subr.bf16.mxu0 0
        %869 = vmatpush1.bf16.msra.mxu0 %v852
        %870 = vmatprep.subr.bf16.mxu0 0
        %871 = vmatpush1.bf16.msra.mxu0 %v853
        %872 = vmatprep.subr.bf16.mxu0 0
        %873 = vmatpush1.bf16.msra.mxu0 %v854
        %874 = vmatprep.subr.bf16.mxu0 0
        %875 = vmatpush1.bf16.msra.mxu0 %v855
        %876 = vmatprep.subr.bf16.mxu0 0
        %877 = vmatpush1.bf16.msra.mxu0 %v856
        %878 = vmatprep.subr.bf16.mxu0 0
        %879 = vmatpush1.bf16.msra.mxu0 %v857
        %880 = vmatprep.subr.bf16.mxu0 0
        %881 = vmatpush1.bf16.msra.mxu0 %v858
        %882 = vmatprep.subr.bf16.mxu0 0
        %883 = vmatpush1.bf16.msra.mxu0 %v859
        %884 = vmatprep.subr.bf16.mxu0 0
        %885 = vmatpush1.bf16.msra.mxu0 0
        %886 = vmatprep.subr.bf16.mxu0 0
        %887 = vmatpush1.bf16.msra.mxu0 0
        %888 = vmatprep.subr.bf16.mxu0 0
        %889 = vmatpush1.bf16.msra.mxu0 0
        %890 = vmatprep.subr.bf16.mxu0 0
        %891 = vmatpush1.bf16.msra.mxu0 0
        %892 = vmatprep.subr.bf16.mxu0 0
        %893 = vmatpush1.bf16.msra.mxu0 0
        %894 = vmatprep.subr.bf16.mxu0 0
        %895 = vmatpush1.bf16.msra.mxu0 0
        %896 = vmatprep.subr.bf16.mxu0 0
        %897 = vmatpush1.bf16.msra.mxu0 0
        %898 = vmatprep.subr.bf16.mxu0 0
        %899 = vmatpush1.bf16.msra.mxu0 0
        %900 = vmatprep.mubr.bf16.mxu0 0
        %901 = vmatmul.mubr.bf16.gmra.mrb[0].mxu0 %v818
        %v902 = vpop.f32.mrb[0].mxu0
        %v903 = vadd.f32 %v804, %v902
        %v904 = vpop.f32.mrb[0].mxu0
        %v905 = vpop.f32.mrb[0].mxu0
        %v906 = vpop.f32.mrb[0].mxu0
        %907 = vdwg.mxu0
        %v908 = vld [vmem:[%s431] sm:$0xf]
        %v909 = vld [vmem:[%s431 + $0x4] sm:$0x1]
        %s910 = scalar_lea.vmem %s1, 384
        %v911 = vld [vmem:[%s910] sm:$0xf]
        %v912 = vld [vmem:[%s910 + $0x4] sm:$0xf]
        %v913 = vld [vmem:[%s910 + $0x8] sm:$0xf]
        %v914 = vld [vmem:[%s910 + $0xc] sm:$0xf]
        %v915 = vld [vmem:[%s910 + $0x10] sm:$0xf]
        %v916 = vld [vmem:[%s910 + $0x14] sm:$0xf]
        %v917 = vld [vmem:[%s910 + $0x18] sm:$0xf]
        %v918 = vld [vmem:[%s910 + $0x1c] sm:$0xf]
        %v919 = vld [vmem:[%s910 + $0x20] sm:$0xf]
        %v920 = vld [vmem:[%s910 + $0x24] sm:$0xf]
        %v921 = vld [vmem:[%s910 + $0x28] sm:$0xf]
        %v922 = vld [vmem:[%s910 + $0x2c] sm:$0xf]
        %v923 = vld [vmem:[%s910 + $0x30] sm:$0xf]
        %v924 = vld [vmem:[%s910 + $0x34] sm:$0xf]
        %v925 = vld [vmem:[%s910 + $0x38] sm:$0xf]
        %v926 = vld [vmem:[%s910 + $0x3c] sm:$0xf]
        %v929 = vunpack.c.l.b16 %v908
        %v930 = vunpack.c.l.b16 %v909
        %v931 = vpack.c.b16 %v930, %v929
        %v933 = vshrl.u32 %v931, 16
        %v935 = vshll.u32 %v931, 16
        %v937 = vrot.slane %v935, 1
        %v938 = vor.u32 %v933, %v937
        %v956 = vunpack.c.l.b16 %v911
        %v957 = vunpack.c.l.b16 %v912
        %v958 = vunpack.c.l.b16 %v913
        %v959 = vunpack.c.l.b16 %v914
        %v960 = vunpack.c.l.b16 %v915
        %v961 = vunpack.c.l.b16 %v916
        %v962 = vunpack.c.l.b16 %v917
        %v963 = vunpack.c.l.b16 %v918
        %v964 = vunpack.c.l.b16 %v919
        %v965 = vunpack.c.l.b16 %v920
        %v966 = vunpack.c.l.b16 %v921
        %v967 = vunpack.c.l.b16 %v922
        %v968 = vunpack.c.l.b16 %v923
        %v969 = vunpack.c.l.b16 %v924
        %v970 = vunpack.c.l.b16 %v925
        %v971 = vunpack.c.l.b16 %v926
        %v972 = vpack.c.b16 %v957, %v956
        %v973 = vpack.c.b16 %v959, %v958
        %v974 = vpack.c.b16 %v961, %v960
        %v975 = vpack.c.b16 %v963, %v962
        %v976 = vpack.c.b16 %v965, %v964
        %v977 = vpack.c.b16 %v967, %v966
        %v978 = vpack.c.b16 %v969, %v968
        %v979 = vpack.c.b16 %v971, %v970
        %988 = vmatprep.subr.bf16.mxu0 0
        %989 = vmatpush1.bf16.msra.mxu0 %v972
        %990 = vmatprep.subr.bf16.mxu0 0
        %991 = vmatpush1.bf16.msra.mxu0 %v973
        %992 = vmatprep.subr.bf16.mxu0 0
        %993 = vmatpush1.bf16.msra.mxu0 %v974
        %994 = vmatprep.subr.bf16.mxu0 0
        %995 = vmatpush1.bf16.msra.mxu0 %v975
        %996 = vmatprep.subr.bf16.mxu0 0
        %997 = vmatpush1.bf16.msra.mxu0 %v976
        %998 = vmatprep.subr.bf16.mxu0 0
        %999 = vmatpush1.bf16.msra.mxu0 %v977
        %1000 = vmatprep.subr.bf16.mxu0 0
        %1001 = vmatpush1.bf16.msra.mxu0 %v978
        %1002 = vmatprep.subr.bf16.mxu0 0
        %1003 = vmatpush1.bf16.msra.mxu0 %v979
        %1004 = vmatprep.subr.bf16.mxu0 0
        %1005 = vmatpush1.bf16.msra.mxu0 0
        %1006 = vmatprep.subr.bf16.mxu0 0
        %1007 = vmatpush1.bf16.msra.mxu0 0
        %1008 = vmatprep.subr.bf16.mxu0 0
        %1009 = vmatpush1.bf16.msra.mxu0 0
        %1010 = vmatprep.subr.bf16.mxu0 0
        %1011 = vmatpush1.bf16.msra.mxu0 0
        %1012 = vmatprep.subr.bf16.mxu0 0
        %1013 = vmatpush1.bf16.msra.mxu0 0
        %1014 = vmatprep.subr.bf16.mxu0 0
        %1015 = vmatpush1.bf16.msra.mxu0 0
        %1016 = vmatprep.subr.bf16.mxu0 0
        %1017 = vmatpush1.bf16.msra.mxu0 0
        %1018 = vmatprep.subr.bf16.mxu0 0
        %1019 = vmatpush1.bf16.msra.mxu0 0
        %1020 = vmatprep.mubr.bf16.mxu0 0
        %1021 = vmatmul.mubr.bf16.gmra.mrb[0].mxu0 %v938
        %v1022 = vpop.f32.mrb[0].mxu0
        %v1023 = vadd.f32 0.0, %v1022
        %v1024 = vpop.f32.mrb[0].mxu0
        %v1025 = vpop.f32.mrb[0].mxu0
        %v1026 = vpop.f32.mrb[0].mxu0
        %1027 = vdwg.mxu0
        %v1028 = vadd.f32 %v903, %v1023
        %v1029 = vld [vmem:[%s431] sm:$0xe]
        %s1030 = scalar_lea.vmem %s1, 448
        %v1031 = vld [vmem:[%s1030] sm:$0xf]
        %v1032 = vld [vmem:[%s1030 + $0x4] sm:$0xf]
        %v1033 = vld [vmem:[%s1030 + $0x8] sm:$0xf]
        %v1034 = vld [vmem:[%s1030 + $0xc] sm:$0xf]
        %v1035 = vld [vmem:[%s1030 + $0x10] sm:$0xf]
        %v1036 = vld [vmem:[%s1030 + $0x14] sm:$0xf]
        %v1037 = vld [vmem:[%s1030 + $0x18] sm:$0xf]
        %v1038 = vld [vmem:[%s1030 + $0x1c] sm:$0xf]
        %v1039 = vld [vmem:[%s1030 + $0x20] sm:$0xf]
        %v1040 = vld [vmem:[%s1030 + $0x24] sm:$0xf]
        %v1041 = vld [vmem:[%s1030 + $0x28] sm:$0xf]
        %v1042 = vld [vmem:[%s1030 + $0x2c] sm:$0xf]
        %v1043 = vld [vmem:[%s1030 + $0x30] sm:$0xf]
        %v1044 = vld [vmem:[%s1030 + $0x34] sm:$0xf]
        %v1045 = vld [vmem:[%s1030 + $0x38] sm:$0xf]
        %v1046 = vld [vmem:[%s1030 + $0x3c] sm:$0xf]
        %v1048 = vunpack.c.l.b16 %v1029
        %v1049 = vpack.c.b16 %v930, %v1048
        %v1050 = vrot.slane %v1049, 1
        %v1068 = vunpack.c.l.b16 %v1031
        %v1069 = vunpack.c.l.b16 %v1032
        %v1070 = vunpack.c.l.b16 %v1033
        %v1071 = vunpack.c.l.b16 %v1034
        %v1072 = vunpack.c.l.b16 %v1035
        %v1073 = vunpack.c.l.b16 %v1036
        %v1074 = vunpack.c.l.b16 %v1037
        %v1075 = vunpack.c.l.b16 %v1038
        %v1076 = vunpack.c.l.b16 %v1039
        %v1077 = vunpack.c.l.b16 %v1040
        %v1078 = vunpack.c.l.b16 %v1041
        %v1079 = vunpack.c.l.b16 %v1042
        %v1080 = vunpack.c.l.b16 %v1043
        %v1081 = vunpack.c.l.b16 %v1044
        %v1082 = vunpack.c.l.b16 %v1045
        %v1083 = vunpack.c.l.b16 %v1046
        %v1084 = vpack.c.b16 %v1069, %v1068
        %v1085 = vpack.c.b16 %v1071, %v1070
        %v1086 = vpack.c.b16 %v1073, %v1072
        %v1087 = vpack.c.b16 %v1075, %v1074
        %v1088 = vpack.c.b16 %v1077, %v1076
        %v1089 = vpack.c.b16 %v1079, %v1078
        %v1090 = vpack.c.b16 %v1081, %v1080
        %v1091 = vpack.c.b16 %v1083, %v1082
        %1100 = vmatprep.subr.bf16.mxu0 0
        %1101 = vmatpush1.bf16.msra.mxu0 %v1084
        %1102 = vmatprep.subr.bf16.mxu0 0
        %1103 = vmatpush1.bf16.msra.mxu0 %v1085
        %1104 = vmatprep.subr.bf16.mxu0 0
        %1105 = vmatpush1.bf16.msra.mxu0 %v1086
        %1106 = vmatprep.subr.bf16.mxu0 0
        %1107 = vmatpush1.bf16.msra.mxu0 %v1087
        %1108 = vmatprep.subr.bf16.mxu0 0
        %1109 = vmatpush1.bf16.msra.mxu0 %v1088
        %1110 = vmatprep.subr.bf16.mxu0 0
        %1111 = vmatpush1.bf16.msra.mxu0 %v1089
        %1112 = vmatprep.subr.bf16.mxu0 0
        %1113 = vmatpush1.bf16.msra.mxu0 %v1090
        %1114 = vmatprep.subr.bf16.mxu0 0
        %1115 = vmatpush1.bf16.msra.mxu0 %v1091
        %1116 = vmatprep.subr.bf16.mxu0 0
        %1117 = vmatpush1.bf16.msra.mxu0 0
        %1118 = vmatprep.subr.bf16.mxu0 0
        %1119 = vmatpush1.bf16.msra.mxu0 0
        %1120 = vmatprep.subr.bf16.mxu0 0
        %1121 = vmatpush1.bf16.msra.mxu0 0
        %1122 = vmatprep.subr.bf16.mxu0 0
        %1123 = vmatpush1.bf16.msra.mxu0 0
        %1124 = vmatprep.subr.bf16.mxu0 0
        %1125 = vmatpush1.bf16.msra.mxu0 0
        %1126 = vmatprep.subr.bf16.mxu0 0
        %1127 = vmatpush1.bf16.msra.mxu0 0
        %1128 = vmatprep.subr.bf16.mxu0 0
        %1129 = vmatpush1.bf16.msra.mxu0 0
        %1130 = vmatprep.subr.bf16.mxu0 0
        %1131 = vmatpush1.bf16.msra.mxu0 0
        %1132 = vmatprep.mubr.bf16.mxu0 0
        %1133 = vmatmul.mubr.bf16.gmra.mrb[0].mxu0 %v1050
        %v1134 = vpop.f32.mrb[0].mxu0
        %v1135 = vadd.f32 0.0, %v1134
        %v1136 = vpop.f32.mrb[0].mxu0
        %v1137 = vpop.f32.mrb[0].mxu0
        %v1138 = vpop.f32.mrb[0].mxu0
        %1139 = vdwg.mxu0
        %v1140 = vadd.f32 %v1028, %v1135
        %v1141 = vpack.c.bf16 %v1140, %v1140
        %s1142 = scalar_lea.vmem %s176, 4 [#allocation2]
        %1143 = vst [vmem:[%s1142] sm:$0xf] %v1141
        %v1144 = vrot.slane %v1140, 4
        %v1145 = vadd.f32 %v1140, %v1144
        %v1146 = vrot.slane %v1145, 2
        %v1147 = vadd.f32 %v1145, %v1146
        %v1148 = vrot.slane %v1147, 1
        %v1149 = vadd.f32 %v1147, %v1148
        %v1150 = vadd.f32 %v668, %v1149
        %v1151 = vmul.f32 %v1140, %v1140
        %v1152 = vrot.slane %v1151, 4
        %v1153 = vadd.f32 %v1151, %v1152
        %v1154 = vrot.slane %v1153, 2
        %v1155 = vadd.f32 %v1153, %v1154
        %v1156 = vrot.slane %v1155, 1
        %v1157 = vadd.f32 %v1155, %v1156
        %v1158 = vadd.f32 %v676, %v1157
        %v1159 = vld [vmem:[%s431] sm:$0xf]
        %s1160 = scalar_lea.vmem %s1, 512
        %v1161 = vld [vmem:[%s1160] sm:$0xf]
        %v1162 = vld [vmem:[%s1160 + $0x4] sm:$0xf]
        %v1163 = vld [vmem:[%s1160 + $0x8] sm:$0xf]
        %v1164 = vld [vmem:[%s1160 + $0xc] sm:$0xf]
        %v1165 = vld [vmem:[%s1160 + $0x10] sm:$0xf]
        %v1166 = vld [vmem:[%s1160 + $0x14] sm:$0xf]
        %v1167 = vld [vmem:[%s1160 + $0x18] sm:$0xf]
        %v1168 = vld [vmem:[%s1160 + $0x1c] sm:$0xf]
        %v1169 = vld [vmem:[%s1160 + $0x20] sm:$0xf]
        %v1170 = vld [vmem:[%s1160 + $0x24] sm:$0xf]
        %v1171 = vld [vmem:[%s1160 + $0x28] sm:$0xf]
        %v1172 = vld [vmem:[%s1160 + $0x2c] sm:$0xf]
        %v1173 = vld [vmem:[%s1160 + $0x30] sm:$0xf]
        %v1174 = vld [vmem:[%s1160 + $0x34] sm:$0xf]
        %v1175 = vld [vmem:[%s1160 + $0x38] sm:$0xf]
        %v1176 = vld [vmem:[%s1160 + $0x3c] sm:$0xf]
        %v1177 = vld [vmem:[%s431 + $0x4] sm:$0x1]
        %s1178 = scalar_lea.vmem %s1, 576
        %v1179 = vld [vmem:[%s1178] sm:$0xf]
        %v1180 = vld [vmem:[%s1178 + $0x4] sm:$0xf]
        %v1181 = vld [vmem:[%s1178 + $0x8] sm:$0xf]
        %v1182 = vld [vmem:[%s1178 + $0xc] sm:$0xf]
        %v1183 = vld [vmem:[%s1178 + $0x10] sm:$0xf]
        %v1184 = vld [vmem:[%s1178 + $0x14] sm:$0xf]
        %v1185 = vld [vmem:[%s1178 + $0x18] sm:$0xf]
        %v1186 = vld [vmem:[%s1178 + $0x1c] sm:$0xf]
        %v1187 = vld [vmem:[%s1178 + $0x20] sm:$0xf]
        %v1188 = vld [vmem:[%s1178 + $0x24] sm:$0xf]
        %v1189 = vld [vmem:[%s1178 + $0x28] sm:$0xf]
        %v1190 = vld [vmem:[%s1178 + $0x2c] sm:$0xf]
        %v1191 = vld [vmem:[%s1178 + $0x30] sm:$0xf]
        %v1192 = vld [vmem:[%s1178 + $0x34] sm:$0xf]
        %v1193 = vld [vmem:[%s1178 + $0x38] sm:$0xf]
        %v1194 = vld [vmem:[%s1178 + $0x3c] sm:$0xf]
        %v1197 = vunpack.c.l.b16 %v1159
        %v1198 = vunpack.c.l.b16 %v1177
        %v1199 = vpack.c.b16 %v1198, %v1197
        %v1201 = vshrl.u32 %v1199, 16
        %v1203 = vshll.u32 %v1199, 16
        %v1205 = vrot.slane %v1203, 1
        %v1206 = vor.u32 %v1201, %v1205
        %v1224 = vunpack.c.l.b16 %v1179
        %v1225 = vunpack.c.l.b16 %v1180
        %v1226 = vunpack.c.l.b16 %v1181
        %v1227 = vunpack.c.l.b16 %v1182
        %v1228 = vunpack.c.l.b16 %v1183
        %v1229 = vunpack.c.l.b16 %v1184
        %v1230 = vunpack.c.l.b16 %v1185
        %v1231 = vunpack.c.l.b16 %v1186
        %v1232 = vunpack.c.l.b16 %v1187
        %v1233 = vunpack.c.l.b16 %v1188
        %v1234 = vunpack.c.l.b16 %v1189
        %v1235 = vunpack.c.l.b16 %v1190
        %v1236 = vunpack.c.l.b16 %v1191
        %v1237 = vunpack.c.l.b16 %v1192
        %v1238 = vunpack.c.l.b16 %v1193
        %v1239 = vunpack.c.l.b16 %v1194
        %v1240 = vpack.c.b16 %v1225, %v1224
        %v1241 = vpack.c.b16 %v1227, %v1226
        %v1242 = vpack.c.b16 %v1229, %v1228
        %v1243 = vpack.c.b16 %v1231, %v1230
        %v1244 = vpack.c.b16 %v1233, %v1232
        %v1245 = vpack.c.b16 %v1235, %v1234
        %v1246 = vpack.c.b16 %v1237, %v1236
        %v1247 = vpack.c.b16 %v1239, %v1238
        %1256 = vmatprep.subr.bf16.mxu0 0
        %1257 = vmatpush1.bf16.msra.mxu0 %v1240
        %1258 = vmatprep.subr.bf16.mxu0 0
        %1259 = vmatpush1.bf16.msra.mxu0 %v1241
        %1260 = vmatprep.subr.bf16.mxu0 0
        %1261 = vmatpush1.bf16.msra.mxu0 %v1242
        %1262 = vmatprep.subr.bf16.mxu0 0
        %1263 = vmatpush1.bf16.msra.mxu0 %v1243
        %1264 = vmatprep.subr.bf16.mxu0 0
        %1265 = vmatpush1.bf16.msra.mxu0 %v1244
        %1266 = vmatprep.subr.bf16.mxu0 0
        %1267 = vmatpush1.bf16.msra.mxu0 %v1245
        %1268 = vmatprep.subr.bf16.mxu0 0
        %1269 = vmatpush1.bf16.msra.mxu0 %v1246
        %1270 = vmatprep.subr.bf16.mxu0 0
        %1271 = vmatpush1.bf16.msra.mxu0 %v1247
        %1272 = vmatprep.subr.bf16.mxu0 0
        %1273 = vmatpush1.bf16.msra.mxu0 0
        %1274 = vmatprep.subr.bf16.mxu0 0
        %1275 = vmatpush1.bf16.msra.mxu0 0
        %1276 = vmatprep.subr.bf16.mxu0 0
        %1277 = vmatpush1.bf16.msra.mxu0 0
        %1278 = vmatprep.subr.bf16.mxu0 0
        %1279 = vmatpush1.bf16.msra.mxu0 0
        %1280 = vmatprep.subr.bf16.mxu0 0
        %1281 = vmatpush1.bf16.msra.mxu0 0
        %1282 = vmatprep.subr.bf16.mxu0 0
        %1283 = vmatpush1.bf16.msra.mxu0 0
        %1284 = vmatprep.subr.bf16.mxu0 0
        %1285 = vmatpush1.bf16.msra.mxu0 0
        %1286 = vmatprep.subr.bf16.mxu0 0
        %1287 = vmatpush1.bf16.msra.mxu0 0
        %1288 = vmatprep.mubr.bf16.mxu0 0
        %1289 = vmatmul.mubr.bf16.gmra.mrb[0].mxu0 %v1206
        %v1290 = vpop.f32.mrb[0].mxu0
        %v1291 = vadd.f32 0.0, %v1290
        %v1292 = vpop.f32.mrb[0].mxu0
        %v1293 = vpop.f32.mrb[0].mxu0
        %v1294 = vpop.f32.mrb[0].mxu0
        %1295 = vdwg.mxu0
        %v1312 = vunpack.c.l.b16 %v1161
        %v1313 = vunpack.c.l.b16 %v1162
        %v1314 = vunpack.c.l.b16 %v1163
        %v1315 = vunpack.c.l.b16 %v1164
        %v1316 = vunpack.c.l.b16 %v1165
        %v1317 = vunpack.c.l.b16 %v1166
        %v1318 = vunpack.c.l.b16 %v1167
        %v1319 = vunpack.c.l.b16 %v1168
        %v1320 = vunpack.c.l.b16 %v1169
        %v1321 = vunpack.c.l.b16 %v1170
        %v1322 = vunpack.c.l.b16 %v1171
        %v1323 = vunpack.c.l.b16 %v1172
        %v1324 = vunpack.c.l.b16 %v1173
        %v1325 = vunpack.c.l.b16 %v1174
        %v1326 = vunpack.c.l.b16 %v1175
        %v1327 = vunpack.c.l.b16 %v1176
        %v1328 = vpack.c.b16 %v1313, %v1312
        %v1329 = vpack.c.b16 %v1315, %v1314
        %v1330 = vpack.c.b16 %v1317, %v1316
        %v1331 = vpack.c.b16 %v1319, %v1318
        %v1332 = vpack.c.b16 %v1321, %v1320
        %v1333 = vpack.c.b16 %v1323, %v1322
        %v1334 = vpack.c.b16 %v1325, %v1324
        %v1335 = vpack.c.b16 %v1327, %v1326
        %1344 = vmatprep.subr.bf16.mxu0 0
        %1345 = vmatpush1.bf16.msra.mxu0 %v1328
        %1346 = vmatprep.subr.bf16.mxu0 0
        %1347 = vmatpush1.bf16.msra.mxu0 %v1329
        %1348 = vmatprep.subr.bf16.mxu0 0
        %1349 = vmatpush1.bf16.msra.mxu0 %v1330
        %1350 = vmatprep.subr.bf16.mxu0 0
        %1351 = vmatpush1.bf16.msra.mxu0 %v1331
        %1352 = vmatprep.subr.bf16.mxu0 0
        %1353 = vmatpush1.bf16.msra.mxu0 %v1332
        %1354 = vmatprep.subr.bf16.mxu0 0
        %1355 = vmatpush1.bf16.msra.mxu0 %v1333
        %1356 = vmatprep.subr.bf16.mxu0 0
        %1357 = vmatpush1.bf16.msra.mxu0 %v1334
        %1358 = vmatprep.subr.bf16.mxu0 0
        %1359 = vmatpush1.bf16.msra.mxu0 %v1335
        %1360 = vmatprep.subr.bf16.mxu0 0
        %1361 = vmatpush1.bf16.msra.mxu0 0
        %1362 = vmatprep.subr.bf16.mxu0 0
        %1363 = vmatpush1.bf16.msra.mxu0 0
        %1364 = vmatprep.subr.bf16.mxu0 0
        %1365 = vmatpush1.bf16.msra.mxu0 0
        %1366 = vmatprep.subr.bf16.mxu0 0
        %1367 = vmatpush1.bf16.msra.mxu0 0
        %1368 = vmatprep.subr.bf16.mxu0 0
        %1369 = vmatpush1.bf16.msra.mxu0 0
        %1370 = vmatprep.subr.bf16.mxu0 0
        %1371 = vmatpush1.bf16.msra.mxu0 0
        %1372 = vmatprep.subr.bf16.mxu0 0
        %1373 = vmatpush1.bf16.msra.mxu0 0
        %1374 = vmatprep.subr.bf16.mxu0 0
        %1375 = vmatpush1.bf16.msra.mxu0 0
        %1376 = vmatprep.mubr.bf16.mxu0 0
        %1377 = vmatmul.mubr.bf16.gmra.mrb[0].mxu0 %v1159
        %v1378 = vpop.f32.mrb[0].mxu0
        %v1379 = vadd.f32 %v1291, %v1378
        %v1380 = vpop.f32.mrb[0].mxu0
        %v1381 = vpop.f32.mrb[0].mxu0
        %v1382 = vpop.f32.mrb[0].mxu0
        %1383 = vdwg.mxu0
        %s1384 = sadd.s32 %s20, 2
        %s1385 = smul.u32 %s1384, 2
        %s1386 = smul.addr %s1385, 4
        %s1387 = scalar_lea.vmem %s191, %s1386
        %v1388 = vld [vmem:[%s1387] sm:$0xf]
        %s1389 = scalar_lea.vmem %s1, 640
        %v1390 = vld [vmem:[%s1389] sm:$0xf]
        %v1391 = vld [vmem:[%s1389 + $0x4] sm:$0xf]
        %v1392 = vld [vmem:[%s1389 + $0x8] sm:$0xf]
        %v1393 = vld [vmem:[%s1389 + $0xc] sm:$0xf]
        %v1394 = vld [vmem:[%s1389 + $0x10] sm:$0xf]
        %v1395 = vld [vmem:[%s1389 + $0x14] sm:$0xf]
        %v1396 = vld [vmem:[%s1389 + $0x18] sm:$0xf]
        %v1397 = vld [vmem:[%s1389 + $0x1c] sm:$0xf]
        %v1398 = vld [vmem:[%s1389 + $0x20] sm:$0xf]
        %v1399 = vld [vmem:[%s1389 + $0x24] sm:$0xf]
        %v1400 = vld [vmem:[%s1389 + $0x28] sm:$0xf]
        %v1401 = vld [vmem:[%s1389 + $0x2c] sm:$0xf]
        %v1402 = vld [vmem:[%s1389 + $0x30] sm:$0xf]
        %v1403 = vld [vmem:[%s1389 + $0x34] sm:$0xf]
        %v1404 = vld [vmem:[%s1389 + $0x38] sm:$0xf]
        %v1405 = vld [vmem:[%s1389 + $0x3c] sm:$0xf]
        %v1422 = vunpack.c.l.b16 %v1390
        %v1423 = vunpack.c.l.b16 %v1391
        %v1424 = vunpack.c.l.b16 %v1392
        %v1425 = vunpack.c.l.b16 %v1393
        %v1426 = vunpack.c.l.b16 %v1394
        %v1427 = vunpack.c.l.b16 %v1395
        %v1428 = vunpack.c.l.b16 %v1396
        %v1429 = vunpack.c.l.b16 %v1397
        %v1430 = vunpack.c.l.b16 %v1398
        %v1431 = vunpack.c.l.b16 %v1399
        %v1432 = vunpack.c.l.b16 %v1400
        %v1433 = vunpack.c.l.b16 %v1401
        %v1434 = vunpack.c.l.b16 %v1402
        %v1435 = vunpack.c.l.b16 %v1403
        %v1436 = vunpack.c.l.b16 %v1404
        %v1437 = vunpack.c.l.b16 %v1405
        %v1438 = vpack.c.b16 %v1423, %v1422
        %v1439 = vpack.c.b16 %v1425, %v1424
        %v1440 = vpack.c.b16 %v1427, %v1426
        %v1441 = vpack.c.b16 %v1429, %v1428
        %v1442 = vpack.c.b16 %v1431, %v1430
        %v1443 = vpack.c.b16 %v1433, %v1432
        %v1444 = vpack.c.b16 %v1435, %v1434
        %v1445 = vpack.c.b16 %v1437, %v1436
        %1454 = vmatprep.subr.bf16.mxu0 0
        %1455 = vmatpush1.bf16.msra.mxu0 %v1438
        %1456 = vmatprep.subr.bf16.mxu0 0
        %1457 = vmatpush1.bf16.msra.mxu0 %v1439
        %1458 = vmatprep.subr.bf16.mxu0 0
        %1459 = vmatpush1.bf16.msra.mxu0 %v1440
        %1460 = vmatprep.subr.bf16.mxu0 0
        %1461 = vmatpush1.bf16.msra.mxu0 %v1441
        %1462 = vmatprep.subr.bf16.mxu0 0
        %1463 = vmatpush1.bf16.msra.mxu0 %v1442
        %1464 = vmatprep.subr.bf16.mxu0 0
        %1465 = vmatpush1.bf16.msra.mxu0 %v1443
        %1466 = vmatprep.subr.bf16.mxu0 0
        %1467 = vmatpush1.bf16.msra.mxu0 %v1444
        %1468 = vmatprep.subr.bf16.mxu0 0
        %1469 = vmatpush1.bf16.msra.mxu0 %v1445
        %1470 = vmatprep.subr.bf16.mxu0 0
        %1471 = vmatpush1.bf16.msra.mxu0 0
        %1472 = vmatprep.subr.bf16.mxu0 0
        %1473 = vmatpush1.bf16.msra.mxu0 0
        %1474 = vmatprep.subr.bf16.mxu0 0
        %1475 = vmatpush1.bf16.msra.mxu0 0
        %1476 = vmatprep.subr.bf16.mxu0 0
        %1477 = vmatpush1.bf16.msra.mxu0 0
        %1478 = vmatprep.subr.bf16.mxu0 0
        %1479 = vmatpush1.bf16.msra.mxu0 0
        %1480 = vmatprep.subr.bf16.mxu0 0
        %1481 = vmatpush1.bf16.msra.mxu0 0
        %1482 = vmatprep.subr.bf16.mxu0 0
        %1483 = vmatpush1.bf16.msra.mxu0 0
        %1484 = vmatprep.subr.bf16.mxu0 0
        %1485 = vmatpush1.bf16.msra.mxu0 0
        %1486 = vmatprep.mubr.bf16.mxu0 0
        %1487 = vmatmul.mubr.bf16.gmra.mrb[0].mxu0 %v1388
        %v1488 = vpop.f32.mrb[0].mxu0
        %v1489 = vadd.f32 0.0, %v1488
        %v1490 = vpop.f32.mrb[0].mxu0
        %v1491 = vpop.f32.mrb[0].mxu0
        %v1492 = vpop.f32.mrb[0].mxu0
        %1493 = vdwg.mxu0
        %v1494 = vadd.f32 %v1379, %v1489
        %v1495 = vld [vmem:[%s1387] sm:$0xf]
        %v1496 = vld [vmem:[%s1387 + $0x4] sm:$0x1]
        %s1497 = scalar_lea.vmem %s1, 704
        %v1498 = vld [vmem:[%s1497] sm:$0xf]
        %v1499 = vld [vmem:[%s1497 + $0x4] sm:$0xf]
        %v1500 = vld [vmem:[%s1497 + $0x8] sm:$0xf]
        %v1501 = vld [vmem:[%s1497 + $0xc] sm:$0xf]
        %v1502 = vld [vmem:[%s1497 + $0x10] sm:$0xf]
        %v1503 = vld [vmem:[%s1497 + $0x14] sm:$0xf]
        %v1504 = vld [vmem:[%s1497 + $0x18] sm:$0xf]
        %v1505 = vld [vmem:[%s1497 + $0x1c] sm:$0xf]
        %v1506 = vld [vmem:[%s1497 + $0x20] sm:$0xf]
        %v1507 = vld [vmem:[%s1497 + $0x24] sm:$0xf]
        %v1508 = vld [vmem:[%s1497 + $0x28] sm:$0xf]
        %v1509 = vld [vmem:[%s1497 + $0x2c] sm:$0xf]
        %v1510 = vld [vmem:[%s1497 + $0x30] sm:$0xf]
        %v1511 = vld [vmem:[%s1497 + $0x34] sm:$0xf]
        %v1512 = vld [vmem:[%s1497 + $0x38] sm:$0xf]
        %v1513 = vld [vmem:[%s1497 + $0x3c] sm:$0xf]
        %v1516 = vunpack.c.l.b16 %v1495
        %v1517 = vunpack.c.l.b16 %v1496
        %v1518 = vpack.c.b16 %v1517, %v1516
        %v1520 = vshrl.u32 %v1518, 16
        %v1522 = vshll.u32 %v1518, 16
        %v1524 = vrot.slane %v1522, 1
        %v1525 = vor.u32 %v1520, %v1524
        %v1543 = vunpack.c.l.b16 %v1498
        %v1544 = vunpack.c.l.b16 %v1499
        %v1545 = vunpack.c.l.b16 %v1500
        %v1546 = vunpack.c.l.b16 %v1501
        %v1547 = vunpack.c.l.b16 %v1502
        %v1548 = vunpack.c.l.b16 %v1503
        %v1549 = vunpack.c.l.b16 %v1504
        %v1550 = vunpack.c.l.b16 %v1505
        %v1551 = vunpack.c.l.b16 %v1506
        %v1552 = vunpack.c.l.b16 %v1507
        %v1553 = vunpack.c.l.b16 %v1508
        %v1554 = vunpack.c.l.b16 %v1509
        %v1555 = vunpack.c.l.b16 %v1510
        %v1556 = vunpack.c.l.b16 %v1511
        %v1557 = vunpack.c.l.b16 %v1512
        %v1558 = vunpack.c.l.b16 %v1513
        %v1559 = vpack.c.b16 %v1544, %v1543
        %v1560 = vpack.c.b16 %v1546, %v1545
        %v1561 = vpack.c.b16 %v1548, %v1547
        %v1562 = vpack.c.b16 %v1550, %v1549
        %v1563 = vpack.c.b16 %v1552, %v1551
        %v1564 = vpack.c.b16 %v1554, %v1553
        %v1565 = vpack.c.b16 %v1556, %v1555
        %v1566 = vpack.c.b16 %v1558, %v1557
        %1575 = vmatprep.subr.bf16.mxu0 0
        %1576 = vmatpush1.bf16.msra.mxu0 %v1559
        %1577 = vmatprep.subr.bf16.mxu0 0
        %1578 = vmatpush1.bf16.msra.mxu0 %v1560
        %1579 = vmatprep.subr.bf16.mxu0 0
        %1580 = vmatpush1.bf16.msra.mxu0 %v1561
        %1581 = vmatprep.subr.bf16.mxu0 0
        %1582 = vmatpush1.bf16.msra.mxu0 %v1562
        %1583 = vmatprep.subr.bf16.mxu0 0
        %1584 = vmatpush1.bf16.msra.mxu0 %v1563
        %1585 = vmatprep.subr.bf16.mxu0 0
        %1586 = vmatpush1.bf16.msra.mxu0 %v1564
        %1587 = vmatprep.subr.bf16.mxu0 0
        %1588 = vmatpush1.bf16.msra.mxu0 %v1565
        %1589 = vmatprep.subr.bf16.mxu0 0
        %1590 = vmatpush1.bf16.msra.mxu0 %v1566
        %1591 = vmatprep.subr.bf16.mxu0 0
        %1592 = vmatpush1.bf16.msra.mxu0 0
        %1593 = vmatprep.subr.bf16.mxu0 0
        %1594 = vmatpush1.bf16.msra.mxu0 0
        %1595 = vmatprep.subr.bf16.mxu0 0
        %1596 = vmatpush1.bf16.msra.mxu0 0
        %1597 = vmatprep.subr.bf16.mxu0 0
        %1598 = vmatpush1.bf16.msra.mxu0 0
        %1599 = vmatprep.subr.bf16.mxu0 0
        %1600 = vmatpush1.bf16.msra.mxu0 0
        %1601 = vmatprep.subr.bf16.mxu0 0
        %1602 = vmatpush1.bf16.msra.mxu0 0
        %1603 = vmatprep.subr.bf16.mxu0 0
        %1604 = vmatpush1.bf16.msra.mxu0 0
        %1605 = vmatprep.subr.bf16.mxu0 0
        %1606 = vmatpush1.bf16.msra.mxu0 0
        %1607 = vmatprep.mubr.bf16.mxu0 0
        %1608 = vmatmul.mubr.bf16.gmra.mrb[0].mxu0 %v1525
        %v1609 = vpop.f32.mrb[0].mxu0
        %v1610 = vadd.f32 0.0, %v1609
        %v1611 = vpop.f32.mrb[0].mxu0
        %v1612 = vpop.f32.mrb[0].mxu0
        %v1613 = vpop.f32.mrb[0].mxu0
        %1614 = vdwg.mxu0
        %v1615 = vadd.f32 %v1494, %v1610
        %v1616 = vpack.c.bf16 %v1615, %v1615
        %s1617 = scalar_lea.vmem %s176, 8 [#allocation2]
        %1618 = vst [vmem:[%s1617] sm:$0xf] %v1616
        %v1619 = vrot.slane %v1615, 4
        %v1620 = vadd.f32 %v1615, %v1619
        %v1621 = vrot.slane %v1620, 2
        %v1622 = vadd.f32 %v1620, %v1621
        %v1623 = vrot.slane %v1622, 1
        %v1624 = vadd.f32 %v1622, %v1623
        %v1625 = vadd.f32 %v1150, %v1624
        %v1626 = vmul.f32 %v1615, %v1615
        %v1627 = vrot.slane %v1626, 4
        %v1628 = vadd.f32 %v1626, %v1627
        %v1629 = vrot.slane %v1628, 2
        %v1630 = vadd.f32 %v1628, %v1629
        %v1631 = vrot.slane %v1630, 1
        %v1632 = vadd.f32 %v1630, %v1631
        %v1633 = vadd.f32 %v1158, %v1632
        %v1634 = vld [vmem:[%s431] sm:$0xf]
        %v1635 = vld [vmem:[%s431 + $0x4] sm:$0x1]
        %s1636 = scalar_lea.vmem %s1, 768
        %v1637 = vld [vmem:[%s1636] sm:$0xf]
        %v1638 = vld [vmem:[%s1636 + $0x4] sm:$0xf]
        %v1639 = vld [vmem:[%s1636 + $0x8] sm:$0xf]
        %v1640 = vld [vmem:[%s1636 + $0xc] sm:$0xf]
        %v1641 = vld [vmem:[%s1636 + $0x10] sm:$0xf]
        %v1642 = vld [vmem:[%s1636 + $0x14] sm:$0xf]
        %v1643 = vld [vmem:[%s1636 + $0x18] sm:$0xf]
        %v1644 = vld [vmem:[%s1636 + $0x1c] sm:$0xf]
        %v1645 = vld [vmem:[%s1636 + $0x20] sm:$0xf]
        %v1646 = vld [vmem:[%s1636 + $0x24] sm:$0xf]
        %v1647 = vld [vmem:[%s1636 + $0x28] sm:$0xf]
        %v1648 = vld [vmem:[%s1636 + $0x2c] sm:$0xf]
        %v1649 = vld [vmem:[%s1636 + $0x30] sm:$0xf]
        %v1650 = vld [vmem:[%s1636 + $0x34] sm:$0xf]
        %v1651 = vld [vmem:[%s1636 + $0x38] sm:$0xf]
        %v1652 = vld [vmem:[%s1636 + $0x3c] sm:$0xf]
        %v1653 = vld [vmem:[%s431] sm:$0xe]
        %s1654 = scalar_lea.vmem %s1, 832
        %v1655 = vld [vmem:[%s1654] sm:$0xf]
        %v1656 = vld [vmem:[%s1654 + $0x4] sm:$0xf]
        %v1657 = vld [vmem:[%s1654 + $0x8] sm:$0xf]
        %v1658 = vld [vmem:[%s1654 + $0xc] sm:$0xf]
        %v1659 = vld [vmem:[%s1654 + $0x10] sm:$0xf]
        %v1660 = vld [vmem:[%s1654 + $0x14] sm:$0xf]
        %v1661 = vld [vmem:[%s1654 + $0x18] sm:$0xf]
        %v1662 = vld [vmem:[%s1654 + $0x1c] sm:$0xf]
        %v1663 = vld [vmem:[%s1654 + $0x20] sm:$0xf]
        %v1664 = vld [vmem:[%s1654 + $0x24] sm:$0xf]
        %v1665 = vld [vmem:[%s1654 + $0x28] sm:$0xf]
        %v1666 = vld [vmem:[%s1654 + $0x2c] sm:$0xf]
        %v1667 = vld [vmem:[%s1654 + $0x30] sm:$0xf]
        %v1668 = vld [vmem:[%s1654 + $0x34] sm:$0xf]
        %v1669 = vld [vmem:[%s1654 + $0x38] sm:$0xf]
        %v1670 = vld [vmem:[%s1654 + $0x3c] sm:$0xf]
        %v1673 = vunpack.c.l.b16 %v1653
        %v1674 = vunpack.c.l.b16 %v1635
        %v1675 = vpack.c.b16 %v1674, %v1673
        %v1676 = vrot.slane %v1675, 1
        %v1694 = vunpack.c.l.b16 %v1655
        %v1695 = vunpack.c.l.b16 %v1656
        %v1696 = vunpack.c.l.b16 %v1657
        %v1697 = vunpack.c.l.b16 %v1658
        %v1698 = vunpack.c.l.b16 %v1659
        %v1699 = vunpack.c.l.b16 %v1660
        %v1700 = vunpack.c.l.b16 %v1661
        %v1701 = vunpack.c.l.b16 %v1662
        %v1702 = vunpack.c.l.b16 %v1663
        %v1703 = vunpack.c.l.b16 %v1664
        %v1704 = vunpack.c.l.b16 %v1665
        %v1705 = vunpack.c.l.b16 %v1666
        %v1706 = vunpack.c.l.b16 %v1667
        %v1707 = vunpack.c.l.b16 %v1668
        %v1708 = vunpack.c.l.b16 %v1669
        %v1709 = vunpack.c.l.b16 %v1670
        %v1710 = vpack.c.b16 %v1695, %v1694
        %v1711 = vpack.c.b16 %v1697, %v1696
        %v1712 = vpack.c.b16 %v1699, %v1698
        %v1713 = vpack.c.b16 %v1701, %v1700
        %v1714 = vpack.c.b16 %v1703, %v1702
        %v1715 = vpack.c.b16 %v1705, %v1704
        %v1716 = vpack.c.b16 %v1707, %v1706
        %v1717 = vpack.c.b16 %v1709, %v1708
        %1726 = vmatprep.subr.bf16.mxu0 0
        %1727 = vmatpush1.bf16.msra.mxu0 %v1710
        %1728 = vmatprep.subr.bf16.mxu0 0
        %1729 = vmatpush1.bf16.msra.mxu0 %v1711
        %1730 = vmatprep.subr.bf16.mxu0 0
        %1731 = vmatpush1.bf16.msra.mxu0 %v1712
        %1732 = vmatprep.subr.bf16.mxu0 0
        %1733 = vmatpush1.bf16.msra.mxu0 %v1713
        %1734 = vmatprep.subr.bf16.mxu0 0
        %1735 = vmatpush1.bf16.msra.mxu0 %v1714
        %1736 = vmatprep.subr.bf16.mxu0 0
        %1737 = vmatpush1.bf16.msra.mxu0 %v1715
        %1738 = vmatprep.subr.bf16.mxu0 0
        %1739 = vmatpush1.bf16.msra.mxu0 %v1716
        %1740 = vmatprep.subr.bf16.mxu0 0
        %1741 = vmatpush1.bf16.msra.mxu0 %v1717
        %1742 = vmatprep.subr.bf16.mxu0 0
        %1743 = vmatpush1.bf16.msra.mxu0 0
        %1744 = vmatprep.subr.bf16.mxu0 0
        %1745 = vmatpush1.bf16.msra.mxu0 0
        %1746 = vmatprep.subr.bf16.mxu0 0
        %1747 = vmatpush1.bf16.msra.mxu0 0
        %1748 = vmatprep.subr.bf16.mxu0 0
        %1749 = vmatpush1.bf16.msra.mxu0 0
        %1750 = vmatprep.subr.bf16.mxu0 0
        %1751 = vmatpush1.bf16.msra.mxu0 0
        %1752 = vmatprep.subr.bf16.mxu0 0
        %1753 = vmatpush1.bf16.msra.mxu0 0
        %1754 = vmatprep.subr.bf16.mxu0 0
        %1755 = vmatpush1.bf16.msra.mxu0 0
        %1756 = vmatprep.subr.bf16.mxu0 0
        %1757 = vmatpush1.bf16.msra.mxu0 0
        %1758 = vmatprep.mubr.bf16.mxu0 0
        %1759 = vmatmul.mubr.bf16.gmra.mrb[0].mxu0 %v1676
        %v1760 = vpop.f32.mrb[0].mxu0
        %v1761 = vadd.f32 0.0, %v1760
        %v1762 = vpop.f32.mrb[0].mxu0
        %v1763 = vpop.f32.mrb[0].mxu0
        %v1764 = vpop.f32.mrb[0].mxu0
        %1765 = vdwg.mxu0
        %v1767 = vunpack.c.l.b16 %v1634
        %v1768 = vpack.c.b16 %v1674, %v1767
        %v1770 = vshrl.u32 %v1768, 16
        %v1772 = vshll.u32 %v1768, 16
        %v1774 = vrot.slane %v1772, 1
        %v1775 = vor.u32 %v1770, %v1774
        %v1793 = vunpack.c.l.b16 %v1637
        %v1794 = vunpack.c.l.b16 %v1638
        %v1795 = vunpack.c.l.b16 %v1639
        %v1796 = vunpack.c.l.b16 %v1640
        %v1797 = vunpack.c.l.b16 %v1641
        %v1798 = vunpack.c.l.b16 %v1642
        %v1799 = vunpack.c.l.b16 %v1643
        %v1800 = vunpack.c.l.b16 %v1644
        %v1801 = vunpack.c.l.b16 %v1645
        %v1802 = vunpack.c.l.b16 %v1646
        %v1803 = vunpack.c.l.b16 %v1647
        %v1804 = vunpack.c.l.b16 %v1648
        %v1805 = vunpack.c.l.b16 %v1649
        %v1806 = vunpack.c.l.b16 %v1650
        %v1807 = vunpack.c.l.b16 %v1651
        %v1808 = vunpack.c.l.b16 %v1652
        %v1809 = vpack.c.b16 %v1794, %v1793
        %v1810 = vpack.c.b16 %v1796, %v1795
        %v1811 = vpack.c.b16 %v1798, %v1797
        %v1812 = vpack.c.b16 %v1800, %v1799
        %v1813 = vpack.c.b16 %v1802, %v1801
        %v1814 = vpack.c.b16 %v1804, %v1803
        %v1815 = vpack.c.b16 %v1806, %v1805
        %v1816 = vpack.c.b16 %v1808, %v1807
        %1825 = vmatprep.subr.bf16.mxu0 0
        %1826 = vmatpush1.bf16.msra.mxu0 %v1809
        %1827 = vmatprep.subr.bf16.mxu0 0
        %1828 = vmatpush1.bf16.msra.mxu0 %v1810
        %1829 = vmatprep.subr.bf16.mxu0 0
        %1830 = vmatpush1.bf16.msra.mxu0 %v1811
        %1831 = vmatprep.subr.bf16.mxu0 0
        %1832 = vmatpush1.bf16.msra.mxu0 %v1812
        %1833 = vmatprep.subr.bf16.mxu0 0
        %1834 = vmatpush1.bf16.msra.mxu0 %v1813
        %1835 = vmatprep.subr.bf16.mxu0 0
        %1836 = vmatpush1.bf16.msra.mxu0 %v1814
        %1837 = vmatprep.subr.bf16.mxu0 0
        %1838 = vmatpush1.bf16.msra.mxu0 %v1815
        %1839 = vmatprep.subr.bf16.mxu0 0
        %1840 = vmatpush1.bf16.msra.mxu0 %v1816
        %1841 = vmatprep.subr.bf16.mxu0 0
        %1842 = vmatpush1.bf16.msra.mxu0 0
        %1843 = vmatprep.subr.bf16.mxu0 0
        %1844 = vmatpush1.bf16.msra.mxu0 0
        %1845 = vmatprep.subr.bf16.mxu0 0
        %1846 = vmatpush1.bf16.msra.mxu0 0
        %1847 = vmatprep.subr.bf16.mxu0 0
        %1848 = vmatpush1.bf16.msra.mxu0 0
        %1849 = vmatprep.subr.bf16.mxu0 0
        %1850 = vmatpush1.bf16.msra.mxu0 0
        %1851 = vmatprep.subr.bf16.mxu0 0
        %1852 = vmatpush1.bf16.msra.mxu0 0
        %1853 = vmatprep.subr.bf16.mxu0 0
        %1854 = vmatpush1.bf16.msra.mxu0 0
        %1855 = vmatprep.subr.bf16.mxu0 0
        %1856 = vmatpush1.bf16.msra.mxu0 0
        %1857 = vmatprep.mubr.bf16.mxu0 0
        %1858 = vmatmul.mubr.bf16.gmra.mrb[0].mxu0 %v1775
        %v1859 = vpop.f32.mrb[0].mxu0
        %v1860 = vadd.f32 %v1761, %v1859
        %v1861 = vpop.f32.mrb[0].mxu0
        %v1862 = vpop.f32.mrb[0].mxu0
        %v1863 = vpop.f32.mrb[0].mxu0
        %1864 = vdwg.mxu0
        %v1865 = vld [vmem:[%s1387] sm:$0xf]
        %v1866 = vld [vmem:[%s1387 + $0x4] sm:$0x1]
        %s1867 = scalar_lea.vmem %s1, 896
        %v1868 = vld [vmem:[%s1867] sm:$0xf]
        %v1869 = vld [vmem:[%s1867 + $0x4] sm:$0xf]
        %v1870 = vld [vmem:[%s1867 + $0x8] sm:$0xf]
        %v1871 = vld [vmem:[%s1867 + $0xc] sm:$0xf]
        %v1872 = vld [vmem:[%s1867 + $0x10] sm:$0xf]
        %v1873 = vld [vmem:[%s1867 + $0x14] sm:$0xf]
        %v1874 = vld [vmem:[%s1867 + $0x18] sm:$0xf]
        %v1875 = vld [vmem:[%s1867 + $0x1c] sm:$0xf]
        %v1876 = vld [vmem:[%s1867 + $0x20] sm:$0xf]
        %v1877 = vld [vmem:[%s1867 + $0x24] sm:$0xf]
        %v1878 = vld [vmem:[%s1867 + $0x28] sm:$0xf]
        %v1879 = vld [vmem:[%s1867 + $0x2c] sm:$0xf]
        %v1880 = vld [vmem:[%s1867 + $0x30] sm:$0xf]
        %v1881 = vld [vmem:[%s1867 + $0x34] sm:$0xf]
        %v1882 = vld [vmem:[%s1867 + $0x38] sm:$0xf]
        %v1883 = vld [vmem:[%s1867 + $0x3c] sm:$0xf]
        %v1886 = vunpack.c.l.b16 %v1865
        %v1887 = vunpack.c.l.b16 %v1866
        %v1888 = vpack.c.b16 %v1887, %v1886
        %v1890 = vshrl.u32 %v1888, 16
        %v1892 = vshll.u32 %v1888, 16
        %v1894 = vrot.slane %v1892, 1
        %v1895 = vor.u32 %v1890, %v1894
        %v1913 = vunpack.c.l.b16 %v1868
        %v1914 = vunpack.c.l.b16 %v1869
        %v1915 = vunpack.c.l.b16 %v1870
        %v1916 = vunpack.c.l.b16 %v1871
        %v1917 = vunpack.c.l.b16 %v1872
        %v1918 = vunpack.c.l.b16 %v1873
        %v1919 = vunpack.c.l.b16 %v1874
        %v1920 = vunpack.c.l.b16 %v1875
        %v1921 = vunpack.c.l.b16 %v1876
        %v1922 = vunpack.c.l.b16 %v1877
        %v1923 = vunpack.c.l.b16 %v1878
        %v1924 = vunpack.c.l.b16 %v1879
        %v1925 = vunpack.c.l.b16 %v1880
        %v1926 = vunpack.c.l.b16 %v1881
        %v1927 = vunpack.c.l.b16 %v1882
        %v1928 = vunpack.c.l.b16 %v1883
        %v1929 = vpack.c.b16 %v1914, %v1913
        %v1930 = vpack.c.b16 %v1916, %v1915
        %v1931 = vpack.c.b16 %v1918, %v1917
        %v1932 = vpack.c.b16 %v1920, %v1919
        %v1933 = vpack.c.b16 %v1922, %v1921
        %v1934 = vpack.c.b16 %v1924, %v1923
        %v1935 = vpack.c.b16 %v1926, %v1925
        %v1936 = vpack.c.b16 %v1928, %v1927
        %1945 = vmatprep.subr.bf16.mxu0 0
        %1946 = vmatpush1.bf16.msra.mxu0 %v1929
        %1947 = vmatprep.subr.bf16.mxu0 0
        %1948 = vmatpush1.bf16.msra.mxu0 %v1930
        %1949 = vmatprep.subr.bf16.mxu0 0
        %1950 = vmatpush1.bf16.msra.mxu0 %v1931
        %1951 = vmatprep.subr.bf16.mxu0 0
        %1952 = vmatpush1.bf16.msra.mxu0 %v1932
        %1953 = vmatprep.subr.bf16.mxu0 0
        %1954 = vmatpush1.bf16.msra.mxu0 %v1933
        %1955 = vmatprep.subr.bf16.mxu0 0
        %1956 = vmatpush1.bf16.msra.mxu0 %v1934
        %1957 = vmatprep.subr.bf16.mxu0 0
        %1958 = vmatpush1.bf16.msra.mxu0 %v1935
        %1959 = vmatprep.subr.bf16.mxu0 0
        %1960 = vmatpush1.bf16.msra.mxu0 %v1936
        %1961 = vmatprep.subr.bf16.mxu0 0
        %1962 = vmatpush1.bf16.msra.mxu0 0
        %1963 = vmatprep.subr.bf16.mxu0 0
        %1964 = vmatpush1.bf16.msra.mxu0 0
        %1965 = vmatprep.subr.bf16.mxu0 0
        %1966 = vmatpush1.bf16.msra.mxu0 0
        %1967 = vmatprep.subr.bf16.mxu0 0
        %1968 = vmatpush1.bf16.msra.mxu0 0
        %1969 = vmatprep.subr.bf16.mxu0 0
        %1970 = vmatpush1.bf16.msra.mxu0 0
        %1971 = vmatprep.subr.bf16.mxu0 0
        %1972 = vmatpush1.bf16.msra.mxu0 0
        %1973 = vmatprep.subr.bf16.mxu0 0
        %1974 = vmatpush1.bf16.msra.mxu0 0
        %1975 = vmatprep.subr.bf16.mxu0 0
        %1976 = vmatpush1.bf16.msra.mxu0 0
        %1977 = vmatprep.mubr.bf16.mxu0 0
        %1978 = vmatmul.mubr.bf16.gmra.mrb[0].mxu0 %v1895
        %v1979 = vpop.f32.mrb[0].mxu0
        %v1980 = vadd.f32 0.0, %v1979
        %v1981 = vpop.f32.mrb[0].mxu0
        %v1982 = vpop.f32.mrb[0].mxu0
        %v1983 = vpop.f32.mrb[0].mxu0
        %1984 = vdwg.mxu0
        %v1985 = vadd.f32 %v1860, %v1980
        %v1986 = vld [vmem:[%s1387] sm:$0xe]
        %s1987 = scalar_lea.vmem %s1, 960
        %v1988 = vld [vmem:[%s1987] sm:$0xf]
        %v1989 = vld [vmem:[%s1987 + $0x4] sm:$0xf]
        %v1990 = vld [vmem:[%s1987 + $0x8] sm:$0xf]
        %v1991 = vld [vmem:[%s1987 + $0xc] sm:$0xf]
        %v1992 = vld [vmem:[%s1987 + $0x10] sm:$0xf]
        %v1993 = vld [vmem:[%s1987 + $0x14] sm:$0xf]
        %v1994 = vld [vmem:[%s1987 + $0x18] sm:$0xf]
        %v1995 = vld [vmem:[%s1987 + $0x1c] sm:$0xf]
        %v1996 = vld [vmem:[%s1987 + $0x20] sm:$0xf]
        %v1997 = vld [vmem:[%s1987 + $0x24] sm:$0xf]
        %v1998 = vld [vmem:[%s1987 + $0x28] sm:$0xf]
        %v1999 = vld [vmem:[%s1987 + $0x2c] sm:$0xf]
        %v2000 = vld [vmem:[%s1987 + $0x30] sm:$0xf]
        %v2001 = vld [vmem:[%s1987 + $0x34] sm:$0xf]
        %v2002 = vld [vmem:[%s1987 + $0x38] sm:$0xf]
        %v2003 = vld [vmem:[%s1987 + $0x3c] sm:$0xf]
        %v2005 = vunpack.c.l.b16 %v1986
        %v2006 = vpack.c.b16 %v1887, %v2005
        %v2007 = vrot.slane %v2006, 1
        %v2025 = vunpack.c.l.b16 %v1988
        %v2026 = vunpack.c.l.b16 %v1989
        %v2027 = vunpack.c.l.b16 %v1990
        %v2028 = vunpack.c.l.b16 %v1991
        %v2029 = vunpack.c.l.b16 %v1992
        %v2030 = vunpack.c.l.b16 %v1993
        %v2031 = vunpack.c.l.b16 %v1994
        %v2032 = vunpack.c.l.b16 %v1995
        %v2033 = vunpack.c.l.b16 %v1996
        %v2034 = vunpack.c.l.b16 %v1997
        %v2035 = vunpack.c.l.b16 %v1998
        %v2036 = vunpack.c.l.b16 %v1999
        %v2037 = vunpack.c.l.b16 %v2000
        %v2038 = vunpack.c.l.b16 %v2001
        %v2039 = vunpack.c.l.b16 %v2002
        %v2040 = vunpack.c.l.b16 %v2003
        %v2041 = vpack.c.b16 %v2026, %v2025
        %v2042 = vpack.c.b16 %v2028, %v2027
        %v2043 = vpack.c.b16 %v2030, %v2029
        %v2044 = vpack.c.b16 %v2032, %v2031
        %v2045 = vpack.c.b16 %v2034, %v2033
        %v2046 = vpack.c.b16 %v2036, %v2035
        %v2047 = vpack.c.b16 %v2038, %v2037
        %v2048 = vpack.c.b16 %v2040, %v2039
        %2057 = vmatprep.subr.bf16.mxu0 0
        %2058 = vmatpush1.bf16.msra.mxu0 %v2041
        %2059 = vmatprep.subr.bf16.mxu0 0
        %2060 = vmatpush1.bf16.msra.mxu0 %v2042
        %2061 = vmatprep.subr.bf16.mxu0 0
        %2062 = vmatpush1.bf16.msra.mxu0 %v2043
        %2063 = vmatprep.subr.bf16.mxu0 0
        %2064 = vmatpush1.bf16.msra.mxu0 %v2044
        %2065 = vmatprep.subr.bf16.mxu0 0
        %2066 = vmatpush1.bf16.msra.mxu0 %v2045
        %2067 = vmatprep.subr.bf16.mxu0 0
        %2068 = vmatpush1.bf16.msra.mxu0 %v2046
        %2069 = vmatprep.subr.bf16.mxu0 0
        %2070 = vmatpush1.bf16.msra.mxu0 %v2047
        %2071 = vmatprep.subr.bf16.mxu0 0
        %2072 = vmatpush1.bf16.msra.mxu0 %v2048
        %2073 = vmatprep.subr.bf16.mxu0 0
        %2074 = vmatpush1.bf16.msra.mxu0 0
        %2075 = vmatprep.subr.bf16.mxu0 0
        %2076 = vmatpush1.bf16.msra.mxu0 0
        %2077 = vmatprep.subr.bf16.mxu0 0
        %2078 = vmatpush1.bf16.msra.mxu0 0
        %2079 = vmatprep.subr.bf16.mxu0 0
        %2080 = vmatpush1.bf16.msra.mxu0 0
        %2081 = vmatprep.subr.bf16.mxu0 0
        %2082 = vmatpush1.bf16.msra.mxu0 0
        %2083 = vmatprep.subr.bf16.mxu0 0
        %2084 = vmatpush1.bf16.msra.mxu0 0
        %2085 = vmatprep.subr.bf16.mxu0 0
        %2086 = vmatpush1.bf16.msra.mxu0 0
        %2087 = vmatprep.subr.bf16.mxu0 0
        %2088 = vmatpush1.bf16.msra.mxu0 0
        %2089 = vmatprep.mubr.bf16.mxu0 0
        %2090 = vmatmul.mubr.bf16.gmra.mrb[0].mxu0 %v2007
        %v2091 = vpop.f32.mrb[0].mxu0
        %v2092 = vadd.f32 0.0, %v2091
        %v2093 = vpop.f32.mrb[0].mxu0
        %v2094 = vpop.f32.mrb[0].mxu0
        %v2095 = vpop.f32.mrb[0].mxu0
        %2096 = vdwg.mxu0
        %v2097 = vadd.f32 %v1985, %v2092
        %v2098 = vpack.c.bf16 %v2097, %v2097
        %s2099 = scalar_lea.vmem %s176, 12 [#allocation2]
        %2100 = vst [vmem:[%s2099] sm:$0xf] %v2098
        %v2101 = vrot.slane %v2097, 4
        %v2102 = vadd.f32 %v2097, %v2101
        %v2103 = vrot.slane %v2102, 2
        %v2104 = vadd.f32 %v2102, %v2103
        %v2105 = vrot.slane %v2104, 1
        %v2106 = vadd.f32 %v2104, %v2105
        %v2107 = vadd.f32 %v1625, %v2106
        %v2108 = vmul.f32 %v2097, %v2097
        %v2109 = vrot.slane %v2108, 4
        %v2110 = vadd.f32 %v2108, %v2109
        %v2111 = vrot.slane %v2110, 2
        %v2112 = vadd.f32 %v2110, %v2111
        %v2113 = vrot.slane %v2112, 1
        %v2114 = vadd.f32 %v2112, %v2113
        %v2115 = vadd.f32 %v1633, %v2114
        %2116 = vst [vmem:[%s199] sm:$0x1] %v2107
        %2117 = vst [vmem:[%s199 + $0x1] sm:$0x1] %v2115
        %s2118 = sand.u32 %s84, 1
        %s2119 = sand.u32 %s84, 1
        %s2120 = smul.addr %s2119, 16
        %s2121 = scalar_lea.vmem [#allocation2], %s2120
        %p2122 = scmp.lt.s32.totalorder %s19, 1
        %s2123 = scalar_select %p2122, %s19, 1
        %p2124 = scmp.lt.s32.totalorder %s20, 7
        %s2125 = scalar_select %p2124, %s20, 7
        %s2126 = smul.addr %s2123, 8
        %s2127 = sadd.s32 %s2125, %s2126
        %s2128 = smul.addr %s2127, 2
        %s2129 = scalar_lea.vmem %s3, %s2128
        // Predicated region
        $region29: #{unet_innermost_forward.3} parent=27 // pred_check
          %p2130 = pneg %p94
        $region30: #{unet_innermost_forward.3} parent=27 // pred_check_branch
          %2132 = sbr.rel (%p2130) target = $region32
        $region31: #{unet_innermost_forward.3} parent=27 // pred_region
          %s2133 = smul.addr %s19, 32
          %s2134 = sadd.s32 %s20, %s2133
          %s2135 = smul.addr %s2134, 4
          %s2136 = scalar_lea.vmem %s2, %s2135
          // Predicated region
          $region33: #{unet_innermost_forward.3} parent=31 // pred_check
            _
          $region34: #{unet_innermost_forward.3} parent=31 // pred_check_branch
            %2138 = sbr.rel (0) target = $region36
          $region35: #{unet_innermost_forward.3} parent=31 // pred_region
            // Predicated region
            $region37: #{unet_innermost_forward.3} parent=35 // pred_check
              _
            $region38: #{unet_innermost_forward.3} parent=35 // pred_check_branch
              %2140 = sbr.rel target = $region40
            $region39: #{unet_innermost_forward.3} parent=35 // pred_region
              // Predicated region
              $region52: #{unet_innermost_forward.3} parent=39 // pred_check
                _
              $region53: #{unet_innermost_forward.3} parent=39 // pred_check_branch
                %2161 = sbr.rel (0) target = $region55
              $region54: #{unet_innermost_forward.3} parent=39 // pred_region
                loop: start=0, step=1, limit=1
                $region56: #{unet_innermost_forward.3} parent=54 // loop_pre_header
                  _
                $region57: #{unet_innermost_forward.3} parent=54 // loop_header
                  %s2163 = sphi 0, %s2167
                  %p2164 = scmp.ge.s32.totalorder %s2163, 1
                  %s2168 = sphi %s2121, %s2121
                  %s2169 = sphi %s2136, %s2136
                $region58: #{unet_innermost_forward.3} parent=54 // loop_header_branch
                  %2166 = sbr.rel (%p2164) target = $region62
                $region59: #{unet_innermost_forward.3} parent=54 // loop_body
                  _
                $region60: #{unet_innermost_forward.3} parent=54 // loop_footer
                  %s2167 = sadd.s32 1, %s2163
                $region61: #{unet_innermost_forward.3} parent=54 // loop_footer_branch
                  %2162 = sbr.rel target = $region57
                $region62: #{unet_innermost_forward.3} parent=54 // loop_exit
                  _
                loop: start=0, step=1, limit=1
                $region63: #{unet_innermost_forward.3} parent=54 // loop_pre_header
                  _
                $region64: #{unet_innermost_forward.3} parent=54 // loop_header
                  %s2172 = sphi 0, %s2176
                  %p2173 = scmp.ge.s32.totalorder %s2172, 1
                  %s2177 = sphi %s2121, %s2121
                  %s2178 = sphi %s2136, %s2136
                $region65: #{unet_innermost_forward.3} parent=54 // loop_header_branch
                  %2175 = sbr.rel (%p2173) target = $region69
                $region66: #{unet_innermost_forward.3} parent=54 // loop_body
                  %v2179 = vld [vmem:[%s2177] sm:$0xf]
                  %2180 = vst [vmem:[%s2178] sm:$0xf] %v2179
                  %v2181 = vld [vmem:[%s2177 + $0x4] sm:$0xf]
                  %2182 = vst [vmem:[%s2178 + $0x20] sm:$0xf] %v2181
                  %v2183 = vld [vmem:[%s2177 + $0x8] sm:$0xf]
                  %2184 = vst [vmem:[%s2178 + $0x40] sm:$0xf] %v2183
                  %v2185 = vld [vmem:[%s2177 + $0xc] sm:$0xf]
                  %2186 = vst [vmem:[%s2178 + $0x60] sm:$0xf] %v2185
                $region67: #{unet_innermost_forward.3} parent=54 // loop_footer
                  %s2176 = sadd.s32 1, %s2172
                $region68: #{unet_innermost_forward.3} parent=54 // loop_footer_branch
                  %2171 = sbr.rel target = $region64
                $region69: #{unet_innermost_forward.3} parent=54 // loop_exit
                  _
              $region55: #{unet_innermost_forward.3} parent=39 // pred_fallthru
                _
            $region40: #{unet_innermost_forward.3} parent=35 // pred_fallthru
              _
            // Predicated region
            $region41: #{unet_innermost_forward.3} parent=35 // pred_check
              _
            $region42: #{unet_innermost_forward.3} parent=35 // pred_check_branch
              %2142 = sbr.rel (0) target = $region44
            $region43: #{unet_innermost_forward.3} parent=35 // pred_region
              loop: start=0, step=1, limit=1
              $region45: #{unet_innermost_forward.3} parent=43 // loop_pre_header
                _
              $region46: #{unet_innermost_forward.3} parent=43 // loop_header
                %s2145 = sphi 0, %s2149
                %p2146 = scmp.ge.s32.totalorder %s2145, 1
                %s2150 = sphi %s2121, %s2121
                %s2151 = sphi %s2136, %s2136
              $region47: #{unet_innermost_forward.3} parent=43 // loop_header_branch
                %2148 = sbr.rel (%p2146) target = $region51
              $region48: #{unet_innermost_forward.3} parent=43 // loop_body
                %v2152 = vld [vmem:[%s2150] sm:$0xf]
                %2153 = vst [vmem:[%s2151] sm:$0xf] %v2152
                %v2154 = vld [vmem:[%s2150 + $0x4] sm:$0xf]
                %2155 = vst [vmem:[%s2151 + $0x20] sm:$0xf] %v2154
                %v2156 = vld [vmem:[%s2150 + $0x8] sm:$0xf]
                %2157 = vst [vmem:[%s2151 + $0x40] sm:$0xf] %v2156
                %v2158 = vld [vmem:[%s2150 + $0xc] sm:$0xf]
                %2159 = vst [vmem:[%s2151 + $0x60] sm:$0xf] %v2158
              $region49: #{unet_innermost_forward.3} parent=43 // loop_footer
                %s2149 = sadd.s32 1, %s2145
              $region50: #{unet_innermost_forward.3} parent=43 // loop_footer_branch
                %2144 = sbr.rel target = $region46
              $region51: #{unet_innermost_forward.3} parent=43 // loop_exit
                _
            $region44: #{unet_innermost_forward.3} parent=35 // pred_fallthru
              _
          $region36: #{unet_innermost_forward.3} parent=31 // pred_fallthru
            _
          %2187 = vnop
        $region32: #{unet_innermost_forward.3} parent=27 // pred_fallthru
          _
        // Predicated region
        $region70: #{unet_innermost_forward.3} parent=27 // pred_check
          %p2188 = pneg %p122
        $region71: #{unet_innermost_forward.3} parent=27 // pred_check_branch
          %2190 = sbr.rel (%p2188) target = $region73
        $region72: #{unet_innermost_forward.3} parent=27 // pred_region
          _
        $region73: #{unet_innermost_forward.3} parent=27 // pred_fallthru
          _
      $region28: #{unet_innermost_forward.3} parent=5 // pred_fallthru
        _
      %p2191 = scmp.le.s32.totalorder 2, %s10
      // Predicated region
      $region74: #{unet_innermost_forward.3} parent=5 // pred_check
        %p2192 = pneg %p2191
      $region75: #{unet_innermost_forward.3} parent=5 // pred_check_branch
        %2194 = sbr.rel (%p2192) target = $region77
      $region76: #{unet_innermost_forward.3} parent=5 // pred_region
        %s2195 = ssub.s32 %s10, 2
        // Predicated region
        $region78: #{unet_innermost_forward.3} parent=76 // pred_check
          %p2196 = pneg %p100
        $region79: #{unet_innermost_forward.3} parent=76 // pred_check_branch
          %2198 = sbr.rel (%p2196) target = $region81
        $region80: #{unet_innermost_forward.3} parent=76 // pred_region
          %s2199 = sand.u32 %s85, 1
          %s2200 = sand.u32 %s85, 1
          %s2201 = smul.addr %s2200, 16
          %s2202 = scalar_lea.vmem [#allocation2], %s2201
        $region81: #{unet_innermost_forward.3} parent=76 // pred_fallthru
          _
        // Predicated region
        $region82: #{unet_innermost_forward.3} parent=76 // pred_check
          %p2203 = pneg %p128
        $region83: #{unet_innermost_forward.3} parent=76 // pred_check_branch
          %2205 = sbr.rel (%p2203) target = $region85
        $region84: #{unet_innermost_forward.3} parent=76 // pred_region
          %p2206 = scmp.lt.s32.totalorder %s21, 1
          %s2207 = scalar_select %p2206, %s21, 1
          %p2208 = scmp.lt.s32.totalorder %s22, 7
          %s2209 = scalar_select %p2208, %s22, 7
          %s2210 = smul.addr %s2207, 8
          %s2211 = sadd.s32 %s2209, %s2210
          %s2212 = smul.addr %s2211, 2
          %s2213 = scalar_lea.vmem %s3, %s2212
        $region85: #{unet_innermost_forward.3} parent=76 // pred_fallthru
          _
      $region77: #{unet_innermost_forward.3} parent=5 // pred_fallthru
        _
    $region6: #{unet_innermost_forward.3} parent=1 // loop_footer
      %s14 = sadd.s32 1, %s10
    $region7: #{unet_innermost_forward.3} parent=1 // loop_footer_branch
      %9 = sbr.rel target = $region3
    $region8: #{unet_innermost_forward.3} parent=1 // loop_exit
      _

</llo_original>
